<compile_context>
chip_gen: v7x
topology: tpu7x:2x2x1
jax: 0.10.0
libtpu: 0.0.40
codegen_flags: <defaults>
</compile_context>

<pallas_src>
import jax
import jax.numpy as jnp
from jax.experimental import pallas as pl
from jax.experimental.pallas import tpu as pltpu


# ---------------------------------------------------------------------------
# Fused BasicBlock kernel (one image per grid step)
# ---------------------------------------------------------------------------
def _basic_block_kernel(x_ref, w1_ref, s1_ref, sh1_ref,
                        w2_ref, s2_ref, sh2_ref, o_ref, y1_ref):
    # x_ref  : (1, H+2, W+2, C) f32   spatially halo-padded input, one image
    # w*_ref : (9, C, C)        bf16  conv weights, tap-major (kh*kw, Cin, Cout)
    # s*_ref : (1, C)           f32   BN scale  (gamma * rsqrt(var + eps))
    # sh*_ref: (1, C)           f32   BN shift  (beta - mean * scale)
    # o_ref  : (1, H, W, C)     f32
    # y1_ref : (H+2, W+2, C)    f32   VMEM scratch: zero-haloed conv1 output
    _, hp, wp, c = x_ref.shape
    h, w = hp - 2, wp - 2
    hw = h * w

    # ---- conv1 (3x3, pad 1) + bn1 + relu: 9-tap MXU accumulation -----------
    acc1 = jnp.zeros((hw, c), jnp.float32)
    for t in range(9):                       # static unrolled tap loop
        di, dj = divmod(t, 3)
        xs = x_ref[0, di:di + h, dj:dj + w, :].reshape(hw, c)
        acc1 = acc1 + jnp.dot(xs.astype(jnp.bfloat16), w1_ref[t],
                              preferred_element_type=jnp.float32)
    y1 = jnp.maximum(acc1 * s1_ref[...] + sh1_ref[...], 0.0)

    # Stage y1 into a zero-haloed VMEM scratch so conv2's taps can slice it.
    # (Scratch fully re-initialized every step => safe under megacore.)
    y1_ref[...] = jnp.zeros_like(y1_ref)
    y1_ref[1:h + 1, 1:w + 1, :] = y1.reshape(h, w, c)

    # ---- conv2 (3x3, pad 1) + bn2 + identity + relu -------------------------
    acc2 = jnp.zeros((hw, c), jnp.float32)
    for t in range(9):
        di, dj = divmod(t, 3)
        ys = y1_ref[di:di + h, dj:dj + w, :].reshape(hw, c)
        acc2 = acc2 + jnp.dot(ys.astype(jnp.bfloat16), w2_ref[t],
                              preferred_element_type=jnp.float32)
    # Residual comes straight from the input tile already in VMEM (exact f32).
    identity = x_ref[0, 1:h + 1, 1:w + 1, :].reshape(hw, c)
    out = jnp.maximum(acc2 * s2_ref[...] + sh2_ref[...] + identity, 0.0)
    o_ref[0] = out.reshape(h, w, c)


# ---------------------------------------------------------------------------
# Glue: weight / BN preparation and the pallas_call wrapper
# ---------------------------------------------------------------------------
def _prep_conv_bn(wgt, gamma, beta, mean, var, eps):
    """OIHW conv weight -> tap-major bf16 (9, Cin, Cout); BN scale/shift f32."""
    cout, cin, kh, kw = wgt.shape
    w_t = jnp.transpose(wgt, (2, 3, 1, 0)).reshape(kh * kw, cin, cout)
    scale = gamma * jax.lax.rsqrt(var + eps)
    shift = beta - mean * scale
    return (w_t.astype(jnp.bfloat16),
            scale.reshape(1, cout).astype(jnp.float32),
            shift.reshape(1, cout).astype(jnp.float32))


def basic_block_forward(x_nchw,
                        w1, g1, b1, m1, v1,
                        w2, g2, b2, m2, v2,
                        *, stride=1, eps=1e-5):
    # TODO(synk): downsample branch (1x1 conv + BN) not implemented; default
    # BasicBlock has downsample=None, which implies stride=1 and
    # inplanes == planes (required for the residual add).
    assert stride == 1, "stride != 1 requires a downsample module"
    n, cin, h, w = x_nchw.shape
    planes = w1.shape[0]
    assert cin == planes == w1.shape[1] == w2.shape[0] == w2.shape[1]

    # One layout change in, one out (module contract is NCHW); halo-pad once.
    x_nhwc = jnp.transpose(x_nchw, (0, 2, 3, 1))                # (N,H,W,C) f32
    x_pad = jnp.pad(x_nhwc, ((0, 0), (1, 1), (1, 1), (0, 0)))   # (N,H+2,W+2,C)

    w1m, s1, sh1 = _prep_conv_bn(w1, g1, b1, m1, v1, eps)
    w2m, s2, sh2 = _prep_conv_bn(w2, g2, b2, m2, v2, eps)

    # Real (unpadded) contraction: 2 convs x 2*N*H*W*(9*Cin)*Cout flops.
    flops = 2 * 2 * n * h * w * (9 * cin) * planes
    bytes_accessed = (x_pad.size * 4
                      + (w1m.size + w2m.size) * 2
                      + (s1.size + sh1.size + s2.size + sh2.size) * 4
                      + n * h * w * planes * 4)

    wspec = pl.BlockSpec((9, cin, planes), lambda b: (0, 0, 0))
    vspec = pl.BlockSpec((1, planes), lambda b: (0, 0))

    out_nhwc = pl.pallas_call(
        _basic_block_kernel,
        out_shape=jax.ShapeDtypeStruct((n, h, w, planes), jnp.float32),
        grid_spec=pltpu.PrefetchScalarGridSpec(
            num_scalar_prefetch=0,
            # One image per step: sharded across v7x's two TensorCores via
            # "parallel"; on single-TC v5e/v6e the extra step overhead is
            # negligible and the weight/scale blocks stay resident.
            grid=(n,),
            in_specs=[
                pl.BlockSpec((1, h + 2, w + 2, cin), lambda b: (b, 0, 0, 0)),
                wspec, vspec, vspec,     # conv1 weight, bn1 scale, bn1 shift
                wspec, vspec, vspec,     # conv2 weight, bn2 scale, bn2 shift
            ],
            out_specs=pl.BlockSpec((1, h, w, planes), lambda b: (b, 0, 0, 0)),
            scratch_shapes=[pltpu.VMEM((h + 2, w + 2, planes), jnp.float32)],
        ),
        compiler_params=pltpu.CompilerParams(
            dimension_semantics=("parallel",)),
        cost_estimate=pl.CostEstimate(
            flops=int(flops), transcendentals=0,
            bytes_accessed=int(bytes_accessed)),
    )(x_pad, w1m, s1, sh1, w2m, s2, sh2)

    # Drop back to the module's NCHW contract.
    return jnp.transpose(out_nhwc, (0, 3, 1, 2))


# ---------------------------------------------------------------------------
# Pure-JAX f32 reference (true module semantics, eval-mode BN)
# ---------------------------------------------------------------------------
def reference_forward(x, w1, g1, b1, m1, v1, w2, g2, b2, m2, v2,
                      *, stride=1, eps=1e-5):
    def conv_bn(z, wgt, g, b, m, v, s):
        y = jax.lax.conv_general_dilated(
            z, wgt, window_strides=(s, s), padding=((1, 1), (1, 1)),
            dimension_numbers=('NCHW', 'OIHW', 'NCHW'),
            preferred_element_type=jnp.float32)
        scale = g / jnp.sqrt(v + eps)
        shift = b - m * scale
        return y * scale[None, :, None, None] + shift[None, :, None, None]

    out = jnp.maximum(conv_bn(x, w1, g1, b1, m1, v1, stride), 0.0)
    out = conv_bn(out, w2, g2, b2, m2, v2, 1)
    out = out + x  # identity (downsample=None)
    return jnp.maximum(out, 0.0)


if __name__ == "__main__":
    # BasicBlock(inplanes=16, planes=16, stride=1, downsample=None)
    N, C, H, W = 2, 16, 16, 16

    key = jax.random.PRNGKey(0)
    ks = jax.random.split(key, 11)
    x = jax.random.normal(ks[0], (N, C, H, W), dtype=jnp.float32)
    w1 = 0.1 * jax.random.normal(ks[1], (C, C, 3, 3), dtype=jnp.float32)
    g1 = 1.0 + 0.1 * jax.random.normal(ks[2], (C,), dtype=jnp.float32)
    b1 = 0.1 * jax.random.normal(ks[3], (C,), dtype=jnp.float32)
    m1 = 0.1 * jax.random.normal(ks[4], (C,), dtype=jnp.float32)
    v1 = 0.5 + jnp.abs(jax.random.normal(ks[5], (C,), dtype=jnp.float32))
    w2 = 0.1 * jax.random.normal(ks[6], (C, C, 3, 3), dtype=jnp.float32)
    g2 = 1.0 + 0.1 * jax.random.normal(ks[7], (C,), dtype=jnp.float32)
    b2 = 0.1 * jax.random.normal(ks[8], (C,), dtype=jnp.float32)
    m2 = 0.1 * jax.random.normal(ks[9], (C,), dtype=jnp.float32)
    v2 = 0.5 + jnp.abs(jax.random.normal(ks[10], (C,), dtype=jnp.float32))

    fwd = jax.jit(basic_block_forward)
    out = jax.block_until_ready(fwd(x, w1, g1, b1, m1, v1,
                                    w2, g2, b2, m2, v2))
    ref = jax.block_until_ready(
        reference_forward(x, w1, g1, b1, m1, v1, w2, g2, b2, m2, v2))

    assert out.shape == (N, C, H, W), out.shape
    # bf16 matmul operands with f32 accumulation vs a pure-f32 reference.
    if not jnp.allclose(out, ref, rtol=2e-2, atol=2e-2):
        max_err = jnp.max(jnp.abs(out - ref))
        raise AssertionError(
            f"Pallas kernel mismatch vs reference, max|err|={max_err}")
    print("KERNEL_OK")
</pallas_src>

<mosaic_0001>
module attributes {stable_mosaic.version = 11 : i64} {
  func.func @_basic_block_kernel(%arg0: i32, %arg1: memref<1x18x18x16xf32, #tpu.memory_space<vmem>>, %arg2: memref<9x16x16xbf16, #tpu.memory_space<vmem>>, %arg3: memref<1x16xf32, #tpu.memory_space<vmem>>, %arg4: memref<1x16xf32, #tpu.memory_space<vmem>>, %arg5: memref<9x16x16xbf16, #tpu.memory_space<vmem>>, %arg6: memref<1x16xf32, #tpu.memory_space<vmem>>, %arg7: memref<1x16xf32, #tpu.memory_space<vmem>>, %arg8: memref<1x16x16x16xf32, #tpu.memory_space<vmem>>, %arg9: memref<18x18x16xf32, #tpu.memory_space<vmem>>) attributes {dimension_semantics = [#tpu.dimension_semantics<parallel>], iteration_bounds = array<i64: 2>, scalar_prefetch = 0 : i64, scratch_operands = 1 : i64, tpu.core_type = #tpu.core_type<tc>, window_params = [{transform_indices = @transform_0, window_bounds = array<i64: 1, 18, 18, 16>}, {pipeline_mode = #tpu.pipeline_mode<synchronous>, transform_indices = @transform_1, window_bounds = array<i64: 9, 16, 16>}, {pipeline_mode = #tpu.pipeline_mode<synchronous>, transform_indices = @transform_2, window_bounds = array<i64: 1, 16>}, {pipeline_mode = #tpu.pipeline_mode<synchronous>, transform_indices = @transform_3, window_bounds = array<i64: 1, 16>}, {pipeline_mode = #tpu.pipeline_mode<synchronous>, transform_indices = @transform_4, window_bounds = array<i64: 9, 16, 16>}, {pipeline_mode = #tpu.pipeline_mode<synchronous>, transform_indices = @transform_5, window_bounds = array<i64: 1, 16>}, {pipeline_mode = #tpu.pipeline_mode<synchronous>, transform_indices = @transform_6, window_bounds = array<i64: 1, 16>}, {transform_indices = @transform_7, window_bounds = array<i64: 1, 16, 16, 16>}]} {
    %cst = arith.constant 0.000000e+00 : f32
    %0 = vector.broadcast %cst : f32 to vector<256x16xf32>
    %c0 = arith.constant 0 : index
    %c0_0 = arith.constant 0 : index
    %c0_1 = arith.constant 0 : index
    %c0_2 = arith.constant 0 : index
    %1 = vector.load %arg1[%c0, %c0_0, %c0_1, %c0_2] : memref<1x18x18x16xf32, #tpu.memory_space<vmem>>, vector<1x16x16x16xf32>
    %2 = vector.shape_cast %1 : vector<1x16x16x16xf32> to vector<16x16x16xf32>
    %3 = vector.shape_cast %2 : vector<16x16x16xf32> to vector<256x16xf32>
    %4 = arith.truncf %3 : vector<256x16xf32> to vector<256x16xbf16>
    %c0_3 = arith.constant 0 : index
    %c0_4 = arith.constant 0 : index
    %c0_5 = arith.constant 0 : index
    %5 = vector.load %arg2[%c0_3, %c0_4, %c0_5] : memref<9x16x16xbf16, #tpu.memory_space<vmem>>, vector<1x16x16xbf16>
    %6 = vector.shape_cast %5 : vector<1x16x16xbf16> to vector<16x16xbf16>
    %cst_6 = arith.constant dense<0.000000e+00> : vector<256x16xf32>
    %7 = tpu.matmul %4, %6, %cst_6 {dimension_numbers = #tpu.dot_dimension_numbers<[1], [0], [0], [1], [0, 0, 1, 1], [], []>} : vector<256x16xbf16>, vector<16x16xbf16>, vector<256x16xf32> -> vector<256x16xf32>
    %8 = arith.addf %0, %7 : vector<256x16xf32>
    %c0_7 = arith.constant 0 : index
    %c0_8 = arith.constant 0 : index
    %c1 = arith.constant 1 : index
    %c0_9 = arith.constant 0 : index
    %9 = vector.load %arg1[%c0_7, %c0_8, %c1, %c0_9] : memref<1x18x18x16xf32, #tpu.memory_space<vmem>>, vector<1x16x16x16xf32>
    %10 = vector.shape_cast %9 : vector<1x16x16x16xf32> to vector<16x16x16xf32>
    %11 = vector.shape_cast %10 : vector<16x16x16xf32> to vector<256x16xf32>
    %12 = arith.truncf %11 : vector<256x16xf32> to vector<256x16xbf16>
    %c1_10 = arith.constant 1 : index
    %c0_11 = arith.constant 0 : index
    %c0_12 = arith.constant 0 : index
    %13 = vector.load %arg2[%c1_10, %c0_11, %c0_12] : memref<9x16x16xbf16, #tpu.memory_space<vmem>>, vector<1x16x16xbf16>
    %14 = vector.shape_cast %13 : vector<1x16x16xbf16> to vector<16x16xbf16>
    %cst_13 = arith.constant dense<0.000000e+00> : vector<256x16xf32>
    %15 = tpu.matmul %12, %14, %cst_13 {dimension_numbers = #tpu.dot_dimension_numbers<[1], [0], [0], [1], [0, 0, 1, 1], [], []>} : vector<256x16xbf16>, vector<16x16xbf16>, vector<256x16xf32> -> vector<256x16xf32>
    %16 = arith.addf %8, %15 : vector<256x16xf32>
    %c0_14 = arith.constant 0 : index
    %c0_15 = arith.constant 0 : index
    %c2 = arith.constant 2 : index
    %c0_16 = arith.constant 0 : index
    %17 = vector.load %arg1[%c0_14, %c0_15, %c2, %c0_16] : memref<1x18x18x16xf32, #tpu.memory_space<vmem>>, vector<1x16x16x16xf32>
    %18 = vector.shape_cast %17 : vector<1x16x16x16xf32> to vector<16x16x16xf32>
    %19 = vector.shape_cast %18 : vector<16x16x16xf32> to vector<256x16xf32>
    %20 = arith.truncf %19 : vector<256x16xf32> to vector<256x16xbf16>
    %c2_17 = arith.constant 2 : index
    %c0_18 = arith.constant 0 : index
    %c0_19 = arith.constant 0 : index
    %21 = vector.load %arg2[%c2_17, %c0_18, %c0_19] : memref<9x16x16xbf16, #tpu.memory_space<vmem>>, vector<1x16x16xbf16>
    %22 = vector.shape_cast %21 : vector<1x16x16xbf16> to vector<16x16xbf16>
    %cst_20 = arith.constant dense<0.000000e+00> : vector<256x16xf32>
    %23 = tpu.matmul %20, %22, %cst_20 {dimension_numbers = #tpu.dot_dimension_numbers<[1], [0], [0], [1], [0, 0, 1, 1], [], []>} : vector<256x16xbf16>, vector<16x16xbf16>, vector<256x16xf32> -> vector<256x16xf32>
    %24 = arith.addf %16, %23 : vector<256x16xf32>
    %c0_21 = arith.constant 0 : index
    %c1_22 = arith.constant 1 : index
    %c0_23 = arith.constant 0 : index
    %c0_24 = arith.constant 0 : index
    %25 = vector.load %arg1[%c0_21, %c1_22, %c0_23, %c0_24] : memref<1x18x18x16xf32, #tpu.memory_space<vmem>>, vector<1x16x16x16xf32>
    %26 = vector.shape_cast %25 : vector<1x16x16x16xf32> to vector<16x16x16xf32>
    %27 = vector.shape_cast %26 : vector<16x16x16xf32> to vector<256x16xf32>
    %28 = arith.truncf %27 : vector<256x16xf32> to vector<256x16xbf16>
    %c3 = arith.constant 3 : index
    %c0_25 = arith.constant 0 : index
    %c0_26 = arith.constant 0 : index
    %29 = vector.load %arg2[%c3, %c0_25, %c0_26] : memref<9x16x16xbf16, #tpu.memory_space<vmem>>, vector<1x16x16xbf16>
    %30 = vector.shape_cast %29 : vector<1x16x16xbf16> to vector<16x16xbf16>
    %cst_27 = arith.constant dense<0.000000e+00> : vector<256x16xf32>
    %31 = tpu.matmul %28, %30, %cst_27 {dimension_numbers = #tpu.dot_dimension_numbers<[1], [0], [0], [1], [0, 0, 1, 1], [], []>} : vector<256x16xbf16>, vector<16x16xbf16>, vector<256x16xf32> -> vector<256x16xf32>
    %32 = arith.addf %24, %31 : vector<256x16xf32>
    %c0_28 = arith.constant 0 : index
    %c1_29 = arith.constant 1 : index
    %c1_30 = arith.constant 1 : index
    %c0_31 = arith.constant 0 : index
    %33 = vector.load %arg1[%c0_28, %c1_29, %c1_30, %c0_31] : memref<1x18x18x16xf32, #tpu.memory_space<vmem>>, vector<1x16x16x16xf32>
    %34 = vector.shape_cast %33 : vector<1x16x16x16xf32> to vector<16x16x16xf32>
    %35 = vector.shape_cast %34 : vector<16x16x16xf32> to vector<256x16xf32>
    %36 = arith.truncf %35 : vector<256x16xf32> to vector<256x16xbf16>
    %c4 = arith.constant 4 : index
    %c0_32 = arith.constant 0 : index
    %c0_33 = arith.constant 0 : index
    %37 = vector.load %arg2[%c4, %c0_32, %c0_33] : memref<9x16x16xbf16, #tpu.memory_space<vmem>>, vector<1x16x16xbf16>
    %38 = vector.shape_cast %37 : vector<1x16x16xbf16> to vector<16x16xbf16>
    %cst_34 = arith.constant dense<0.000000e+00> : vector<256x16xf32>
    %39 = tpu.matmul %36, %38, %cst_34 {dimension_numbers = #tpu.dot_dimension_numbers<[1], [0], [0], [1], [0, 0, 1, 1], [], []>} : vector<256x16xbf16>, vector<16x16xbf16>, vector<256x16xf32> -> vector<256x16xf32>
    %40 = arith.addf %32, %39 : vector<256x16xf32>
    %c0_35 = arith.constant 0 : index
    %c1_36 = arith.constant 1 : index
    %c2_37 = arith.constant 2 : index
    %c0_38 = arith.constant 0 : index
    %41 = vector.load %arg1[%c0_35, %c1_36, %c2_37, %c0_38] : memref<1x18x18x16xf32, #tpu.memory_space<vmem>>, vector<1x16x16x16xf32>
    %42 = vector.shape_cast %41 : vector<1x16x16x16xf32> to vector<16x16x16xf32>
    %43 = vector.shape_cast %42 : vector<16x16x16xf32> to vector<256x16xf32>
    %44 = arith.truncf %43 : vector<256x16xf32> to vector<256x16xbf16>
    %c5 = arith.constant 5 : index
    %c0_39 = arith.constant 0 : index
    %c0_40 = arith.constant 0 : index
    %45 = vector.load %arg2[%c5, %c0_39, %c0_40] : memref<9x16x16xbf16, #tpu.memory_space<vmem>>, vector<1x16x16xbf16>
    %46 = vector.shape_cast %45 : vector<1x16x16xbf16> to vector<16x16xbf16>
    %cst_41 = arith.constant dense<0.000000e+00> : vector<256x16xf32>
    %47 = tpu.matmul %44, %46, %cst_41 {dimension_numbers = #tpu.dot_dimension_numbers<[1], [0], [0], [1], [0, 0, 1, 1], [], []>} : vector<256x16xbf16>, vector<16x16xbf16>, vector<256x16xf32> -> vector<256x16xf32>
    %48 = arith.addf %40, %47 : vector<256x16xf32>
    %c0_42 = arith.constant 0 : index
    %c2_43 = arith.constant 2 : index
    %c0_44 = arith.constant 0 : index
    %c0_45 = arith.constant 0 : index
    %49 = vector.load %arg1[%c0_42, %c2_43, %c0_44, %c0_45] : memref<1x18x18x16xf32, #tpu.memory_space<vmem>>, vector<1x16x16x16xf32>
    %50 = vector.shape_cast %49 : vector<1x16x16x16xf32> to vector<16x16x16xf32>
    %51 = vector.shape_cast %50 : vector<16x16x16xf32> to vector<256x16xf32>
    %52 = arith.truncf %51 : vector<256x16xf32> to vector<256x16xbf16>
    %c6 = arith.constant 6 : index
    %c0_46 = arith.constant 0 : index
    %c0_47 = arith.constant 0 : index
    %53 = vector.load %arg2[%c6, %c0_46, %c0_47] : memref<9x16x16xbf16, #tpu.memory_space<vmem>>, vector<1x16x16xbf16>
    %54 = vector.shape_cast %53 : vector<1x16x16xbf16> to vector<16x16xbf16>
    %cst_48 = arith.constant dense<0.000000e+00> : vector<256x16xf32>
    %55 = tpu.matmul %52, %54, %cst_48 {dimension_numbers = #tpu.dot_dimension_numbers<[1], [0], [0], [1], [0, 0, 1, 1], [], []>} : vector<256x16xbf16>, vector<16x16xbf16>, vector<256x16xf32> -> vector<256x16xf32>
    %56 = arith.addf %48, %55 : vector<256x16xf32>
    %c0_49 = arith.constant 0 : index
    %c2_50 = arith.constant 2 : index
    %c1_51 = arith.constant 1 : index
    %c0_52 = arith.constant 0 : index
    %57 = vector.load %arg1[%c0_49, %c2_50, %c1_51, %c0_52] : memref<1x18x18x16xf32, #tpu.memory_space<vmem>>, vector<1x16x16x16xf32>
    %58 = vector.shape_cast %57 : vector<1x16x16x16xf32> to vector<16x16x16xf32>
    %59 = vector.shape_cast %58 : vector<16x16x16xf32> to vector<256x16xf32>
    %60 = arith.truncf %59 : vector<256x16xf32> to vector<256x16xbf16>
    %c7 = arith.constant 7 : index
    %c0_53 = arith.constant 0 : index
    %c0_54 = arith.constant 0 : index
    %61 = vector.load %arg2[%c7, %c0_53, %c0_54] : memref<9x16x16xbf16, #tpu.memory_space<vmem>>, vector<1x16x16xbf16>
    %62 = vector.shape_cast %61 : vector<1x16x16xbf16> to vector<16x16xbf16>
    %cst_55 = arith.constant dense<0.000000e+00> : vector<256x16xf32>
    %63 = tpu.matmul %60, %62, %cst_55 {dimension_numbers = #tpu.dot_dimension_numbers<[1], [0], [0], [1], [0, 0, 1, 1], [], []>} : vector<256x16xbf16>, vector<16x16xbf16>, vector<256x16xf32> -> vector<256x16xf32>
    %64 = arith.addf %56, %63 : vector<256x16xf32>
    %c0_56 = arith.constant 0 : index
    %c2_57 = arith.constant 2 : index
    %c2_58 = arith.constant 2 : index
    %c0_59 = arith.constant 0 : index
    %65 = vector.load %arg1[%c0_56, %c2_57, %c2_58, %c0_59] : memref<1x18x18x16xf32, #tpu.memory_space<vmem>>, vector<1x16x16x16xf32>
    %66 = vector.shape_cast %65 : vector<1x16x16x16xf32> to vector<16x16x16xf32>
    %67 = vector.shape_cast %66 : vector<16x16x16xf32> to vector<256x16xf32>
    %68 = arith.truncf %67 : vector<256x16xf32> to vector<256x16xbf16>
    %c8 = arith.constant 8 : index
    %c0_60 = arith.constant 0 : index
    %c0_61 = arith.constant 0 : index
    %69 = vector.load %arg2[%c8, %c0_60, %c0_61] : memref<9x16x16xbf16, #tpu.memory_space<vmem>>, vector<1x16x16xbf16>
    %70 = vector.shape_cast %69 : vector<1x16x16xbf16> to vector<16x16xbf16>
    %cst_62 = arith.constant dense<0.000000e+00> : vector<256x16xf32>
    %71 = tpu.matmul %68, %70, %cst_62 {dimension_numbers = #tpu.dot_dimension_numbers<[1], [0], [0], [1], [0, 0, 1, 1], [], []>} : vector<256x16xbf16>, vector<16x16xbf16>, vector<256x16xf32> -> vector<256x16xf32>
    %72 = arith.addf %64, %71 : vector<256x16xf32>
    %c0_63 = arith.constant 0 : index
    %c0_64 = arith.constant 0 : index
    %73 = vector.load %arg3[%c0_63, %c0_64] : memref<1x16xf32, #tpu.memory_space<vmem>>, vector<1x16xf32>
    %74 = vector.broadcast %73 : vector<1x16xf32> to vector<256x16xf32>
    %75 = arith.mulf %72, %74 : vector<256x16xf32>
    %c0_65 = arith.constant 0 : index
    %c0_66 = arith.constant 0 : index
    %76 = vector.load %arg4[%c0_65, %c0_66] : memref<1x16xf32, #tpu.memory_space<vmem>>, vector<1x16xf32>
    %77 = vector.broadcast %76 : vector<1x16xf32> to vector<256x16xf32>
    %78 = arith.addf %75, %77 : vector<256x16xf32>
    %cst_67 = arith.constant 0.000000e+00 : f32
    %79 = vector.broadcast %cst_67 : f32 to vector<256x16xf32>
    %80 = arith.maximumf %78, %79 : vector<256x16xf32>
    %cst_68 = arith.constant 0.000000e+00 : f32
    %81 = vector.broadcast %cst_68 : f32 to vector<18x18x16xf32>
    %c0_69 = arith.constant 0 : index
    %c0_70 = arith.constant 0 : index
    %c0_71 = arith.constant 0 : index
    %82 = vector.load %arg9[%c0_69, %c0_70, %c0_71] : memref<18x18x16xf32, #tpu.memory_space<vmem>>, vector<18x18x16xf32>
    tpu.vector_store %arg9[%c0_69, %c0_70, %c0_71], %81 {strides = array<i32>} : memref<18x18x16xf32, #tpu.memory_space<vmem>>, vector<18x18x16xf32>,
    %83 = vector.shape_cast %80 : vector<256x16xf32> to vector<16x16x16xf32>
    %c1_72 = arith.constant 1 : index
    %c1_73 = arith.constant 1 : index
    %c0_74 = arith.constant 0 : index
    %84 = vector.load %arg9[%c1_72, %c1_73, %c0_74] : memref<18x18x16xf32, #tpu.memory_space<vmem>>, vector<16x16x16xf32>
    tpu.vector_store %arg9[%c1_72, %c1_73, %c0_74], %83 {strides = array<i32>} : memref<18x18x16xf32, #tpu.memory_space<vmem>>, vector<16x16x16xf32>,
    %cst_75 = arith.constant 0.000000e+00 : f32
    %85 = vector.broadcast %cst_75 : f32 to vector<256x16xf32>
    %c0_76 = arith.constant 0 : index
    %c0_77 = arith.constant 0 : index
    %c0_78 = arith.constant 0 : index
    %86 = vector.load %arg9[%c0_76, %c0_77, %c0_78] : memref<18x18x16xf32, #tpu.memory_space<vmem>>, vector<16x16x16xf32>
    %87 = vector.shape_cast %86 : vector<16x16x16xf32> to vector<256x16xf32>
    %88 = arith.truncf %87 : vector<256x16xf32> to vector<256x16xbf16>
    %c0_79 = arith.constant 0 : index
    %c0_80 = arith.constant 0 : index
    %c0_81 = arith.constant 0 : index
    %89 = vector.load %arg5[%c0_79, %c0_80, %c0_81] : memref<9x16x16xbf16, #tpu.memory_space<vmem>>, vector<1x16x16xbf16>
    %90 = vector.shape_cast %89 : vector<1x16x16xbf16> to vector<16x16xbf16>
    %cst_82 = arith.constant dense<0.000000e+00> : vector<256x16xf32>
    %91 = tpu.matmul %88, %90, %cst_82 {dimension_numbers = #tpu.dot_dimension_numbers<[1], [0], [0], [1], [0, 0, 1, 1], [], []>} : vector<256x16xbf16>, vector<16x16xbf16>, vector<256x16xf32> -> vector<256x16xf32>
    %92 = arith.addf %85, %91 : vector<256x16xf32>
    %c0_83 = arith.constant 0 : index
    %c1_84 = arith.constant 1 : index
    %c0_85 = arith.constant 0 : index
    %93 = vector.load %arg9[%c0_83, %c1_84, %c0_85] : memref<18x18x16xf32, #tpu.memory_space<vmem>>, vector<16x16x16xf32>
    %94 = vector.shape_cast %93 : vector<16x16x16xf32> to vector<256x16xf32>
    %95 = arith.truncf %94 : vector<256x16xf32> to vector<256x16xbf16>
    %c1_86 = arith.constant 1 : index
    %c0_87 = arith.constant 0 : index
    %c0_88 = arith.constant 0 : index
    %96 = vector.load %arg5[%c1_86, %c0_87, %c0_88] : memref<9x16x16xbf16, #tpu.memory_space<vmem>>, vector<1x16x16xbf16>
    %97 = vector.shape_cast %96 : vector<1x16x16xbf16> to vector<16x16xbf16>
    %cst_89 = arith.constant dense<0.000000e+00> : vector<256x16xf32>
    %98 = tpu.matmul %95, %97, %cst_89 {dimension_numbers = #tpu.dot_dimension_numbers<[1], [0], [0], [1], [0, 0, 1, 1], [], []>} : vector<256x16xbf16>, vector<16x16xbf16>, vector<256x16xf32> -> vector<256x16xf32>
    %99 = arith.addf %92, %98 : vector<256x16xf32>
    %c0_90 = arith.constant 0 : index
    %c2_91 = arith.constant 2 : index
    %c0_92 = arith.constant 0 : index
    %100 = vector.load %arg9[%c0_90, %c2_91, %c0_92] : memref<18x18x16xf32, #tpu.memory_space<vmem>>, vector<16x16x16xf32>
    %101 = vector.shape_cast %100 : vector<16x16x16xf32> to vector<256x16xf32>
    %102 = arith.truncf %101 : vector<256x16xf32> to vector<256x16xbf16>
    %c2_93 = arith.constant 2 : index
    %c0_94 = arith.constant 0 : index
    %c0_95 = arith.constant 0 : index
    %103 = vector.load %arg5[%c2_93, %c0_94, %c0_95] : memref<9x16x16xbf16, #tpu.memory_space<vmem>>, vector<1x16x16xbf16>
    %104 = vector.shape_cast %103 : vector<1x16x16xbf16> to vector<16x16xbf16>
    %cst_96 = arith.constant dense<0.000000e+00> : vector<256x16xf32>
    %105 = tpu.matmul %102, %104, %cst_96 {dimension_numbers = #tpu.dot_dimension_numbers<[1], [0], [0], [1], [0, 0, 1, 1], [], []>} : vector<256x16xbf16>, vector<16x16xbf16>, vector<256x16xf32> -> vector<256x16xf32>
    %106 = arith.addf %99, %105 : vector<256x16xf32>
    %c1_97 = arith.constant 1 : index
    %c0_98 = arith.constant 0 : index
    %c0_99 = arith.constant 0 : index
    %107 = vector.load %arg9[%c1_97, %c0_98, %c0_99] : memref<18x18x16xf32, #tpu.memory_space<vmem>>, vector<16x16x16xf32>
    %108 = vector.shape_cast %107 : vector<16x16x16xf32> to vector<256x16xf32>
    %109 = arith.truncf %108 : vector<256x16xf32> to vector<256x16xbf16>
    %c3_100 = arith.constant 3 : index
    %c0_101 = arith.constant 0 : index
    %c0_102 = arith.constant 0 : index
    %110 = vector.load %arg5[%c3_100, %c0_101, %c0_102] : memref<9x16x16xbf16, #tpu.memory_space<vmem>>, vector<1x16x16xbf16>
    %111 = vector.shape_cast %110 : vector<1x16x16xbf16> to vector<16x16xbf16>
    %cst_103 = arith.constant dense<0.000000e+00> : vector<256x16xf32>
    %112 = tpu.matmul %109, %111, %cst_103 {dimension_numbers = #tpu.dot_dimension_numbers<[1], [0], [0], [1], [0, 0, 1, 1], [], []>} : vector<256x16xbf16>, vector<16x16xbf16>, vector<256x16xf32> -> vector<256x16xf32>
    %113 = arith.addf %106, %112 : vector<256x16xf32>
    %c1_104 = arith.constant 1 : index
    %c1_105 = arith.constant 1 : index
    %c0_106 = arith.constant 0 : index
    %114 = vector.load %arg9[%c1_104, %c1_105, %c0_106] : memref<18x18x16xf32, #tpu.memory_space<vmem>>, vector<16x16x16xf32>
    %115 = vector.shape_cast %114 : vector<16x16x16xf32> to vector<256x16xf32>
    %116 = arith.truncf %115 : vector<256x16xf32> to vector<256x16xbf16>
    %c4_107 = arith.constant 4 : index
    %c0_108 = arith.constant 0 : index
    %c0_109 = arith.constant 0 : index
    %117 = vector.load %arg5[%c4_107, %c0_108, %c0_109] : memref<9x16x16xbf16, #tpu.memory_space<vmem>>, vector<1x16x16xbf16>
    %118 = vector.shape_cast %117 : vector<1x16x16xbf16> to vector<16x16xbf16>
    %cst_110 = arith.constant dense<0.000000e+00> : vector<256x16xf32>
    %119 = tpu.matmul %116, %118, %cst_110 {dimension_numbers = #tpu.dot_dimension_numbers<[1], [0], [0], [1], [0, 0, 1, 1], [], []>} : vector<256x16xbf16>, vector<16x16xbf16>, vector<256x16xf32> -> vector<256x16xf32>
    %120 = arith.addf %113, %119 : vector<256x16xf32>
    %c1_111 = arith.constant 1 : index
    %c2_112 = arith.constant 2 : index
    %c0_113 = arith.constant 0 : index
    %121 = vector.load %arg9[%c1_111, %c2_112, %c0_113] : memref<18x18x16xf32, #tpu.memory_space<vmem>>, vector<16x16x16xf32>
    %122 = vector.shape_cast %121 : vector<16x16x16xf32> to vector<256x16xf32>
    %123 = arith.truncf %122 : vector<256x16xf32> to vector<256x16xbf16>
    %c5_114 = arith.constant 5 : index
    %c0_115 = arith.constant 0 : index
    %c0_116 = arith.constant 0 : index
    %124 = vector.load %arg5[%c5_114, %c0_115, %c0_116] : memref<9x16x16xbf16, #tpu.memory_space<vmem>>, vector<1x16x16xbf16>
    %125 = vector.shape_cast %124 : vector<1x16x16xbf16> to vector<16x16xbf16>
    %cst_117 = arith.constant dense<0.000000e+00> : vector<256x16xf32>
    %126 = tpu.matmul %123, %125, %cst_117 {dimension_numbers = #tpu.dot_dimension_numbers<[1], [0], [0], [1], [0, 0, 1, 1], [], []>} : vector<256x16xbf16>, vector<16x16xbf16>, vector<256x16xf32> -> vector<256x16xf32>
    %127 = arith.addf %120, %126 : vector<256x16xf32>
    %c2_118 = arith.constant 2 : index
    %c0_119 = arith.constant 0 : index
    %c0_120 = arith.constant 0 : index
    %128 = vector.load %arg9[%c2_118, %c0_119, %c0_120] : memref<18x18x16xf32, #tpu.memory_space<vmem>>, vector<16x16x16xf32>
    %129 = vector.shape_cast %128 : vector<16x16x16xf32> to vector<256x16xf32>
    %130 = arith.truncf %129 : vector<256x16xf32> to vector<256x16xbf16>
    %c6_121 = arith.constant 6 : index
    %c0_122 = arith.constant 0 : index
    %c0_123 = arith.constant 0 : index
    %131 = vector.load %arg5[%c6_121, %c0_122, %c0_123] : memref<9x16x16xbf16, #tpu.memory_space<vmem>>, vector<1x16x16xbf16>
    %132 = vector.shape_cast %131 : vector<1x16x16xbf16> to vector<16x16xbf16>
    %cst_124 = arith.constant dense<0.000000e+00> : vector<256x16xf32>
    %133 = tpu.matmul %130, %132, %cst_124 {dimension_numbers = #tpu.dot_dimension_numbers<[1], [0], [0], [1], [0, 0, 1, 1], [], []>} : vector<256x16xbf16>, vector<16x16xbf16>, vector<256x16xf32> -> vector<256x16xf32>
    %134 = arith.addf %127, %133 : vector<256x16xf32>
    %c2_125 = arith.constant 2 : index
    %c1_126 = arith.constant 1 : index
    %c0_127 = arith.constant 0 : index
    %135 = vector.load %arg9[%c2_125, %c1_126, %c0_127] : memref<18x18x16xf32, #tpu.memory_space<vmem>>, vector<16x16x16xf32>
    %136 = vector.shape_cast %135 : vector<16x16x16xf32> to vector<256x16xf32>
    %137 = arith.truncf %136 : vector<256x16xf32> to vector<256x16xbf16>
    %c7_128 = arith.constant 7 : index
    %c0_129 = arith.constant 0 : index
    %c0_130 = arith.constant 0 : index
    %138 = vector.load %arg5[%c7_128, %c0_129, %c0_130] : memref<9x16x16xbf16, #tpu.memory_space<vmem>>, vector<1x16x16xbf16>
    %139 = vector.shape_cast %138 : vector<1x16x16xbf16> to vector<16x16xbf16>
    %cst_131 = arith.constant dense<0.000000e+00> : vector<256x16xf32>
    %140 = tpu.matmul %137, %139, %cst_131 {dimension_numbers = #tpu.dot_dimension_numbers<[1], [0], [0], [1], [0, 0, 1, 1], [], []>} : vector<256x16xbf16>, vector<16x16xbf16>, vector<256x16xf32> -> vector<256x16xf32>
    %141 = arith.addf %134, %140 : vector<256x16xf32>
    %c2_132 = arith.constant 2 : index
    %c2_133 = arith.constant 2 : index
    %c0_134 = arith.constant 0 : index
    %142 = vector.load %arg9[%c2_132, %c2_133, %c0_134] : memref<18x18x16xf32, #tpu.memory_space<vmem>>, vector<16x16x16xf32>
    %143 = vector.shape_cast %142 : vector<16x16x16xf32> to vector<256x16xf32>
    %144 = arith.truncf %143 : vector<256x16xf32> to vector<256x16xbf16>
    %c8_135 = arith.constant 8 : index
    %c0_136 = arith.constant 0 : index
    %c0_137 = arith.constant 0 : index
    %145 = vector.load %arg5[%c8_135, %c0_136, %c0_137] : memref<9x16x16xbf16, #tpu.memory_space<vmem>>, vector<1x16x16xbf16>
    %146 = vector.shape_cast %145 : vector<1x16x16xbf16> to vector<16x16xbf16>
    %cst_138 = arith.constant dense<0.000000e+00> : vector<256x16xf32>
    %147 = tpu.matmul %144, %146, %cst_138 {dimension_numbers = #tpu.dot_dimension_numbers<[1], [0], [0], [1], [0, 0, 1, 1], [], []>} : vector<256x16xbf16>, vector<16x16xbf16>, vector<256x16xf32> -> vector<256x16xf32>
    %148 = arith.addf %141, %147 : vector<256x16xf32>
    %c0_139 = arith.constant 0 : index
    %c1_140 = arith.constant 1 : index
    %c1_141 = arith.constant 1 : index
    %c0_142 = arith.constant 0 : index
    %149 = vector.load %arg1[%c0_139, %c1_140, %c1_141, %c0_142] : memref<1x18x18x16xf32, #tpu.memory_space<vmem>>, vector<1x16x16x16xf32>
    %150 = vector.shape_cast %149 : vector<1x16x16x16xf32> to vector<16x16x16xf32>
    %151 = vector.shape_cast %150 : vector<16x16x16xf32> to vector<256x16xf32>
    %c0_143 = arith.constant 0 : index
    %c0_144 = arith.constant 0 : index
    %152 = vector.load %arg6[%c0_143, %c0_144] : memref<1x16xf32, #tpu.memory_space<vmem>>, vector<1x16xf32>
    %153 = vector.broadcast %152 : vector<1x16xf32> to vector<256x16xf32>
    %154 = arith.mulf %148, %153 : vector<256x16xf32>
    %c0_145 = arith.constant 0 : index
    %c0_146 = arith.constant 0 : index
    %155 = vector.load %arg7[%c0_145, %c0_146] : memref<1x16xf32, #tpu.memory_space<vmem>>, vector<1x16xf32>
    %156 = vector.broadcast %155 : vector<1x16xf32> to vector<256x16xf32>
    %157 = arith.addf %154, %156 : vector<256x16xf32>
    %158 = arith.addf %157, %151 : vector<256x16xf32>
    %cst_147 = arith.constant 0.000000e+00 : f32
    %159 = vector.broadcast %cst_147 : f32 to vector<256x16xf32>
    %160 = arith.maximumf %158, %159 : vector<256x16xf32>
    %161 = vector.shape_cast %160 : vector<256x16xf32> to vector<16x16x16xf32>
    %c0_148 = arith.constant 0 : index
    %c0_149 = arith.constant 0 : index
    %c0_150 = arith.constant 0 : index
    %c0_151 = arith.constant 0 : index
    %162 = vector.load %arg8[%c0_148, %c0_149, %c0_150, %c0_151] : memref<1x16x16x16xf32, #tpu.memory_space<vmem>>, vector<1x16x16x16xf32>
    %163 = vector.shape_cast %162 : vector<1x16x16x16xf32> to vector<16x16x16xf32>
    %164 = vector.shape_cast %161 : vector<16x16x16xf32> to vector<1x16x16x16xf32>
    tpu.vector_store %arg8[%c0_148, %c0_149, %c0_150, %c0_151], %164 {strides = array<i32>} : memref<1x16x16x16xf32, #tpu.memory_space<vmem>>, vector<1x16x16x16xf32>,
    return
  }
  func.func @transform_0(%arg0: i32) -> (i32, i32, i32, i32) {
    %c0_i32 = arith.constant 0 : i32
    %c0_i32_0 = arith.constant 0 : i32
    %c0_i32_1 = arith.constant 0 : i32
    %c0_i32_2 = arith.constant 0 : i32
    return %arg0, %c0_i32, %c0_i32_0, %c0_i32_1 : i32, i32, i32, i32
  }
  func.func @transform_1(%arg0: i32) -> (i32, i32, i32) {
    %c0_i32 = arith.constant 0 : i32
    %c0_i32_0 = arith.constant 0 : i32
    %c0_i32_1 = arith.constant 0 : i32
    %c0_i32_2 = arith.constant 0 : i32
    return %c0_i32, %c0_i32_0, %c0_i32_1 : i32, i32, i32
  }
  func.func @transform_2(%arg0: i32) -> (i32, i32) {
    %c0_i32 = arith.constant 0 : i32
    %c0_i32_0 = arith.constant 0 : i32
    %c0_i32_1 = arith.constant 0 : i32
    return %c0_i32, %c0_i32_0 : i32, i32
  }
  func.func @transform_3(%arg0: i32) -> (i32, i32) {
    %c0_i32 = arith.constant 0 : i32
    %c0_i32_0 = arith.constant 0 : i32
    %c0_i32_1 = arith.constant 0 : i32
    return %c0_i32, %c0_i32_0 : i32, i32
  }
  func.func @transform_4(%arg0: i32) -> (i32, i32, i32) {
    %c0_i32 = arith.constant 0 : i32
    %c0_i32_0 = arith.constant 0 : i32
    %c0_i32_1 = arith.constant 0 : i32
    %c0_i32_2 = arith.constant 0 : i32
    return %c0_i32, %c0_i32_0, %c0_i32_1 : i32, i32, i32
  }
  func.func @transform_5(%arg0: i32) -> (i32, i32) {
    %c0_i32 = arith.constant 0 : i32
    %c0_i32_0 = arith.constant 0 : i32
    %c0_i32_1 = arith.constant 0 : i32
    return %c0_i32, %c0_i32_0 : i32, i32
  }
  func.func @transform_6(%arg0: i32) -> (i32, i32) {
    %c0_i32 = arith.constant 0 : i32
    %c0_i32_0 = arith.constant 0 : i32
    %c0_i32_1 = arith.constant 0 : i32
    return %c0_i32, %c0_i32_0 : i32, i32
  }
  func.func @transform_7(%arg0: i32) -> (i32, i32, i32, i32) {
    %c0_i32 = arith.constant 0 : i32
    %c0_i32_0 = arith.constant 0 : i32
    %c0_i32_1 = arith.constant 0 : i32
    %c0_i32_2 = arith.constant 0 : i32
    return %arg0, %c0_i32, %c0_i32_0, %c0_i32_1 : i32, i32, i32, i32
  }
}

</mosaic_0001>

<llo_original>
// kernel: basic_block_forward.1
$region0: #{basic_block_forward.1}
  #allocation0 [shape = 'u32[]', space=smem, size = 0x4, offset = 0x4, fixed_abs, tag = 'smem constant byte address 0x4 - core index']
  #allocation1 [shape = 'u32[144,128]{1,0:T(1,128)}', space=vmem, size = 0x12000, scoped, tag = 'internal scratch']
  #allocation2 [shape = 'f32[18,18,16]{2,1,0:T(8,128)}', space=vmem, size = 0x36000, scoped, tag = 'scratch operand']
  %s0 = inlined_call_operand.vmem [shape: f32[2,18,18,16], index: 0, kind: input, shape index: {}]
  %s1 = inlined_call_operand.vmem [shape: bf16[9,16,16], index: 1, kind: input, shape index: {}]
  %s2 = inlined_call_operand.vmem [shape: f32[1,16], index: 2, kind: input, shape index: {}]
  %s3 = inlined_call_operand.vmem [shape: f32[1,16], index: 3, kind: input, shape index: {}]
  %s4 = inlined_call_operand.vmem [shape: bf16[9,16,16], index: 4, kind: input, shape index: {}]
  %s5 = inlined_call_operand.vmem [shape: f32[1,16], index: 5, kind: input, shape index: {}]
  %s6 = inlined_call_operand.vmem [shape: f32[1,16], index: 6, kind: input, shape index: {}]
  %s7 = inlined_call_operand.vmem [shape: f32[2,16,16,16], index: 7, kind: output, shape index: {}]
  %s8 = sld [smem:[#allocation0]]
  $region61: #{basic_block_forward.1} parent=0
    _
  %s10 = ssub.s32 1, %s8
  %s11 = scalar_select 0, %s10, %s8
  loop: start=0, step=1, limit=4
  $region2: #{basic_block_forward.1} parent=0 // loop_pre_header
    _
  $region3: #{basic_block_forward.1} parent=0 // loop_header
    %s13 = sphi 0, %s17
    %p14 = scmp.ge.s32.totalorder %s13, 4
    %s23 = sphi 0, %s25
    %s26 = sphi 0, %s23
    %s27 = sphi 0, %s26
    %s43 = sphi 0, %s27
    %s47 = sphi 0, %s47
    %s49 = sphi 0, %s47
    %s50 = sphi 0, %s49
    %s64 = sphi 0, %s50
    %s68 = sphi 0, %s68
    %s70 = sphi 0, %s68
    %s71 = sphi 0, %s70
    %s85 = sphi 0, %s71
    %s89 = sphi 0, %s89
    %s91 = sphi 0, %s89
    %s92 = sphi 0, %s91
    %s106 = sphi 0, %s92
    %s110 = sphi 0, %s110
    %s112 = sphi 0, %s110
    %s113 = sphi 0, %s112
    %s127 = sphi 0, %s113
    %s131 = sphi 0, %s131
    %s133 = sphi 0, %s131
    %s134 = sphi 0, %s133
    %s148 = sphi 0, %s134
    %s152 = sphi 0, %s152
    %s154 = sphi 0, %s152
    %s155 = sphi 0, %s154
    %s169 = sphi 0, %s155
    %s175 = sphi 0, %s177
    %s178 = sphi 0, %s175
    %s179 = sphi 0, %s178
    %s195 = sphi 0, %s179
  $region4: #{basic_block_forward.1} parent=0 // loop_header_branch
    %16 = sbr.rel (%p14) target = $region8
  $region5: #{basic_block_forward.1} parent=0 // loop_body
    %s18 = ssub.s32 %s13, 1
    %s19 = ssub.s32 %s13, 2
    %s20 = sadd.s32 %s13, 1
    %s21 = ssub.s32 %s13, %s20
    %p22 = scmp.eq.s32.totalorder %s21, 0
    %s24 = sadd.s32 %s23, 1
    %s25 = scalar_select %p22, %s23, %s24
    %p28 = pneg %p22
    %p29 = scmp.eq.s32.totalorder %s13, 1
    %p30 = por %p28, %p29
    %p31 = scmp.ne.s32.totalorder %s23, %s26
    %p32 = scmp.eq.s32.totalorder %s13, 0
    %p33 = por %p31, %p32
    %p34 = scmp.ne.s32.totalorder %s23, %s26
    %p35 = scmp.eq.s32.totalorder %s18, 1
    %p36 = por %p34, %p35
    %p37 = scmp.ne.s32.totalorder %s26, %s27
    %p38 = scmp.eq.s32.totalorder %s18, 0
    %p39 = por %p37, %p38
    %p40 = scmp.ne.s32.totalorder %s26, %s27
    %p41 = scmp.eq.s32.totalorder %s19, 1
    %p42 = por %p40, %p41
    %p44 = scmp.ne.s32.totalorder %s27, %s43
    %p45 = scmp.eq.s32.totalorder %s19, 0
    %p46 = por %p44, %p45
    %s48 = sadd.s32 %s47, 1
    %p51 = scmp.eq.s32.totalorder %s13, 1
    %p52 = scmp.ne.s32.totalorder %s47, %s49
    %p53 = scmp.eq.s32.totalorder %s13, 0
    %p54 = por %p52, %p53
    %p55 = scmp.ne.s32.totalorder %s47, %s49
    %p56 = scmp.eq.s32.totalorder %s18, 1
    %p57 = por %p55, %p56
    %p58 = scmp.ne.s32.totalorder %s49, %s50
    %p59 = scmp.eq.s32.totalorder %s18, 0
    %p60 = por %p58, %p59
    %p61 = scmp.ne.s32.totalorder %s49, %s50
    %p62 = scmp.eq.s32.totalorder %s19, 1
    %p63 = por %p61, %p62
    %p65 = scmp.ne.s32.totalorder %s50, %s64
    %p66 = scmp.eq.s32.totalorder %s19, 0
    %p67 = por %p65, %p66
    %s69 = sadd.s32 %s68, 1
    %p72 = scmp.eq.s32.totalorder %s13, 1
    %p73 = scmp.ne.s32.totalorder %s68, %s70
    %p74 = scmp.eq.s32.totalorder %s13, 0
    %p75 = por %p73, %p74
    %p76 = scmp.ne.s32.totalorder %s68, %s70
    %p77 = scmp.eq.s32.totalorder %s18, 1
    %p78 = por %p76, %p77
    %p79 = scmp.ne.s32.totalorder %s70, %s71
    %p80 = scmp.eq.s32.totalorder %s18, 0
    %p81 = por %p79, %p80
    %p82 = scmp.ne.s32.totalorder %s70, %s71
    %p83 = scmp.eq.s32.totalorder %s19, 1
    %p84 = por %p82, %p83
    %p86 = scmp.ne.s32.totalorder %s71, %s85
    %p87 = scmp.eq.s32.totalorder %s19, 0
    %p88 = por %p86, %p87
    %s90 = sadd.s32 %s89, 1
    %p93 = scmp.eq.s32.totalorder %s13, 1
    %p94 = scmp.ne.s32.totalorder %s89, %s91
    %p95 = scmp.eq.s32.totalorder %s13, 0
    %p96 = por %p94, %p95
    %p97 = scmp.ne.s32.totalorder %s89, %s91
    %p98 = scmp.eq.s32.totalorder %s18, 1
    %p99 = por %p97, %p98
    %p100 = scmp.ne.s32.totalorder %s91, %s92
    %p101 = scmp.eq.s32.totalorder %s18, 0
    %p102 = por %p100, %p101
    %p103 = scmp.ne.s32.totalorder %s91, %s92
    %p104 = scmp.eq.s32.totalorder %s19, 1
    %p105 = por %p103, %p104
    %p107 = scmp.ne.s32.totalorder %s92, %s106
    %p108 = scmp.eq.s32.totalorder %s19, 0
    %p109 = por %p107, %p108
    %s111 = sadd.s32 %s110, 1
    %p114 = scmp.eq.s32.totalorder %s13, 1
    %p115 = scmp.ne.s32.totalorder %s110, %s112
    %p116 = scmp.eq.s32.totalorder %s13, 0
    %p117 = por %p115, %p116
    %p118 = scmp.ne.s32.totalorder %s110, %s112
    %p119 = scmp.eq.s32.totalorder %s18, 1
    %p120 = por %p118, %p119
    %p121 = scmp.ne.s32.totalorder %s112, %s113
    %p122 = scmp.eq.s32.totalorder %s18, 0
    %p123 = por %p121, %p122
    %p124 = scmp.ne.s32.totalorder %s112, %s113
    %p125 = scmp.eq.s32.totalorder %s19, 1
    %p126 = por %p124, %p125
    %p128 = scmp.ne.s32.totalorder %s113, %s127
    %p129 = scmp.eq.s32.totalorder %s19, 0
    %p130 = por %p128, %p129
    %s132 = sadd.s32 %s131, 1
    %p135 = scmp.eq.s32.totalorder %s13, 1
    %p136 = scmp.ne.s32.totalorder %s131, %s133
    %p137 = scmp.eq.s32.totalorder %s13, 0
    %p138 = por %p136, %p137
    %p139 = scmp.ne.s32.totalorder %s131, %s133
    %p140 = scmp.eq.s32.totalorder %s18, 1
    %p141 = por %p139, %p140
    %p142 = scmp.ne.s32.totalorder %s133, %s134
    %p143 = scmp.eq.s32.totalorder %s18, 0
    %p144 = por %p142, %p143
    %p145 = scmp.ne.s32.totalorder %s133, %s134
    %p146 = scmp.eq.s32.totalorder %s19, 1
    %p147 = por %p145, %p146
    %p149 = scmp.ne.s32.totalorder %s134, %s148
    %p150 = scmp.eq.s32.totalorder %s19, 0
    %p151 = por %p149, %p150
    %s153 = sadd.s32 %s152, 1
    %p156 = scmp.eq.s32.totalorder %s13, 1
    %p157 = scmp.ne.s32.totalorder %s152, %s154
    %p158 = scmp.eq.s32.totalorder %s13, 0
    %p159 = por %p157, %p158
    %p160 = scmp.ne.s32.totalorder %s152, %s154
    %p161 = scmp.eq.s32.totalorder %s18, 1
    %p162 = por %p160, %p161
    %p163 = scmp.ne.s32.totalorder %s154, %s155
    %p164 = scmp.eq.s32.totalorder %s18, 0
    %p165 = por %p163, %p164
    %p166 = scmp.ne.s32.totalorder %s154, %s155
    %p167 = scmp.eq.s32.totalorder %s19, 1
    %p168 = por %p166, %p167
    %p170 = scmp.ne.s32.totalorder %s155, %s169
    %p171 = scmp.eq.s32.totalorder %s19, 0
    %p172 = por %p170, %p171
    %s173 = ssub.s32 %s13, %s20
    %p174 = scmp.eq.s32.totalorder %s173, 0
    %s176 = sadd.s32 %s175, 1
    %s177 = scalar_select %p174, %s175, %s176
    %p180 = pneg %p174
    %p181 = scmp.eq.s32.totalorder %s13, 1
    %p182 = por %p180, %p181
    %p183 = scmp.ne.s32.totalorder %s175, %s178
    %p184 = scmp.eq.s32.totalorder %s13, 0
    %p185 = por %p183, %p184
    %p186 = scmp.ne.s32.totalorder %s175, %s178
    %p187 = scmp.eq.s32.totalorder %s18, 1
    %p188 = por %p186, %p187
    %p189 = scmp.ne.s32.totalorder %s178, %s179
    %p190 = scmp.eq.s32.totalorder %s18, 0
    %p191 = por %p189, %p190
    %p192 = scmp.ne.s32.totalorder %s178, %s179
    %p193 = scmp.eq.s32.totalorder %s19, 1
    %p194 = por %p192, %p193
    %p196 = scmp.ne.s32.totalorder %s179, %s195
    %p197 = scmp.eq.s32.totalorder %s19, 0
    %p198 = por %p196, %p197
    %p199 = scmp.le.s32.totalorder 1, %s13
    %p200 = scmp.lt.s32.totalorder %s13, 3
    %p201 = pnand %p199, %p200
    %p202 = pneg %p201
    // Predicated region
    $region9: #{basic_block_forward.1} parent=5 // pred_check
      _
    $region10: #{basic_block_forward.1} parent=5 // pred_check_branch
      %204 = sbr.rel (%p201) target = $region12
    $region11: #{basic_block_forward.1} parent=5 // pred_region
      %s205 = ssub.s32 %s13, 1
      // Predicated region
      $region13: #{basic_block_forward.1} parent=11 // pred_check
        %p206 = pneg %p60
      $region14: #{basic_block_forward.1} parent=11 // pred_check_branch
        %208 = sbr.rel (%p206) target = $region16
      $region15: #{basic_block_forward.1} parent=11 // pred_region
        _
      $region16: #{basic_block_forward.1} parent=11 // pred_fallthru
        _
      // Predicated region
      $region17: #{basic_block_forward.1} parent=11 // pred_check
        %p209 = pneg %p81
      $region18: #{basic_block_forward.1} parent=11 // pred_check_branch
        %211 = sbr.rel (%p209) target = $region20
      $region19: #{basic_block_forward.1} parent=11 // pred_region
        _
      $region20: #{basic_block_forward.1} parent=11 // pred_fallthru
        _
      // Predicated region
      $region21: #{basic_block_forward.1} parent=11 // pred_check
        %p212 = pneg %p102
      $region22: #{basic_block_forward.1} parent=11 // pred_check_branch
        %214 = sbr.rel (%p212) target = $region24
      $region23: #{basic_block_forward.1} parent=11 // pred_region
        _
      $region24: #{basic_block_forward.1} parent=11 // pred_fallthru
        _
      // Predicated region
      $region25: #{basic_block_forward.1} parent=11 // pred_check
        %p215 = pneg %p123
      $region26: #{basic_block_forward.1} parent=11 // pred_check_branch
        %217 = sbr.rel (%p215) target = $region28
      $region27: #{basic_block_forward.1} parent=11 // pred_region
        _
      $region28: #{basic_block_forward.1} parent=11 // pred_fallthru
        _
      // Predicated region
      $region29: #{basic_block_forward.1} parent=11 // pred_check
        %p218 = pneg %p144
      $region30: #{basic_block_forward.1} parent=11 // pred_check_branch
        %220 = sbr.rel (%p218) target = $region32
      $region31: #{basic_block_forward.1} parent=11 // pred_region
        _
      $region32: #{basic_block_forward.1} parent=11 // pred_fallthru
        _
      // Predicated region
      $region33: #{basic_block_forward.1} parent=11 // pred_check
        %p221 = pneg %p165
      $region34: #{basic_block_forward.1} parent=11 // pred_check_branch
        %223 = sbr.rel (%p221) target = $region36
      $region35: #{basic_block_forward.1} parent=11 // pred_region
        _
      $region36: #{basic_block_forward.1} parent=11 // pred_fallthru
        _
    $region12: #{basic_block_forward.1} parent=5 // pred_fallthru
      _
    %p224 = scmp.lt.s32.totalorder %s13, 2
    // Predicated region
    $region37: #{basic_block_forward.1} parent=5 // pred_check
      %p225 = pneg %p224
    $region38: #{basic_block_forward.1} parent=5 // pred_check_branch
      %227 = sbr.rel (%p225) target = $region40
    $region39: #{basic_block_forward.1} parent=5 // pred_region
      // Predicated region
      $region41: #{basic_block_forward.1} parent=39 // pred_check
        %p228 = pneg %p33
      $region42: #{basic_block_forward.1} parent=39 // pred_check_branch
        %230 = sbr.rel (%p228) target = $region44
      $region43: #{basic_block_forward.1} parent=39 // pred_region
        %p231 = scmp.lt.s32.totalorder %s13, 1
        %s232 = scalar_select %p231, %s13, 1
        %s233 = smul.addr %s232, 54
        %s234 = smul.addr %s233, 8
        %s235 = scalar_lea.vmem %s0, %s234
      $region44: #{basic_block_forward.1} parent=39 // pred_fallthru
        _
    $region40: #{basic_block_forward.1} parent=5 // pred_fallthru
      _
    %p236 = scmp.le.s32.totalorder 1, %s13
    %p237 = scmp.lt.s32.totalorder %s13, 3
    %p238 = pnand %p236, %p237
    %p239 = pneg %p238
    // Predicated region
    $region45: #{basic_block_forward.1} parent=5 // pred_check
      _
    $region46: #{basic_block_forward.1} parent=5 // pred_check_branch
      %241 = sbr.rel (%p238) target = $region48
    $region47: #{basic_block_forward.1} parent=5 // pred_region
      %s242 = ssub.s32 %s13, 1
      %p243 = scmp.lt.s32.totalorder %s18, 1
      %s244 = scalar_select %p243, %s18, 1
      %s245 = smul.addr %s244, 54
      %s246 = smul.addr %s245, 8
      %s247 = scalar_lea.vmem %s0, %s246
      %p248 = pneg %p39
      %p249 = pneg %p36
      %p250 = pneg %p60
      %p251 = pneg %p57
      %p252 = pneg %p81
      %p253 = pneg %p78
      %p254 = pneg %p102
      %p255 = pneg %p99
      %p256 = pneg %p123
      %p257 = pneg %p120
      %p258 = pneg %p144
      %p259 = pneg %p141
      %p260 = pneg %p165
      %p261 = pneg %p162
      %p262 = pneg %p191
      %p263 = pneg %p188
      %p264 = scmp.lt.s32.totalorder %s18, 1
      %s265 = scalar_select %p264, %s18, 1
      %s266 = smul.addr %s265, 32
      %s267 = smul.addr %s266, 8
      %s268 = scalar_lea.vmem %s7, %s267
      %p269 = scmp.lt.s32.totalorder %s18, 1
      %s270 = scalar_select %p269, %s18, 1
      %s271 = smul.addr %s270, 54
      %s272 = smul.addr %s271, 8
      %s273 = scalar_lea.vmem %s0, %s272
      %p274 = scmp.lt.s32.totalorder %s18, 1
      %s275 = scalar_select %p274, %s18, 1
      %s276 = smul.addr %s275, 32
      %s277 = smul.addr %s276, 8
      %s278 = scalar_lea.vmem %s7, %s277
      %v280 = vld [vmem:[%s273] sm:$0xff]
      %v281 = vld [vmem:[%s273 + $0x8] sm:$0xff]
      %v282 = vld [vmem:[%s273 + $0x18] sm:$0xff]
      %v283 = vld [vmem:[%s273 + $0x20] sm:$0xff]
      %v284 = vld [vmem:[%s273 + $0x30] sm:$0xff]
      %v285 = vld [vmem:[%s273 + $0x38] sm:$0xff]
      %v286 = vld [vmem:[%s273 + $0x48] sm:$0xff]
      %v287 = vld [vmem:[%s273 + $0x50] sm:$0xff]
      %v288 = vld [vmem:[%s273 + $0x60] sm:$0xff]
      %v289 = vld [vmem:[%s273 + $0x68] sm:$0xff]
      %v290 = vld [vmem:[%s273 + $0x78] sm:$0xff]
      %v291 = vld [vmem:[%s273 + $0x80] sm:$0xff]
      %v292 = vld [vmem:[%s273 + $0x90] sm:$0xff]
      %v293 = vld [vmem:[%s273 + $0x98] sm:$0xff]
      %v294 = vld [vmem:[%s273 + $0xa8] sm:$0xff]
      %v295 = vld [vmem:[%s273 + $0xb0] sm:$0xff]
      %v296 = vld [vmem:[%s273 + $0xc0] sm:$0xff]
      %v297 = vld [vmem:[%s273 + $0xc8] sm:$0xff]
      %v298 = vld [vmem:[%s273 + $0xd8] sm:$0xff]
      %v299 = vld [vmem:[%s273 + $0xe0] sm:$0xff]
      %v300 = vld [vmem:[%s273 + $0xf0] sm:$0xff]
      %v301 = vld [vmem:[%s273 + $0xf8] sm:$0xff]
      %v302 = vld [vmem:[%s273 + $0x108] sm:$0xff]
      %v303 = vld [vmem:[%s273 + $0x110] sm:$0xff]
      %v304 = vld [vmem:[%s273 + $0x120] sm:$0xff]
      %v305 = vld [vmem:[%s273 + $0x128] sm:$0xff]
      %v306 = vld [vmem:[%s273 + $0x138] sm:$0xff]
      %v307 = vld [vmem:[%s273 + $0x140] sm:$0xff]
      %v308 = vld [vmem:[%s273 + $0x150] sm:$0xff]
      %v309 = vld [vmem:[%s273 + $0x158] sm:$0xff]
      %v310 = vld [vmem:[%s273 + $0x168] sm:$0xff]
      %v311 = vld [vmem:[%s273 + $0x170] sm:$0xff]
      %v312 = vpack.c.bf16 %v281, %v280
      %v313 = vpack.c.bf16 %v283, %v282
      %v314 = vpack.c.bf16 %v285, %v284
      %v315 = vpack.c.bf16 %v287, %v286
      %v316 = vpack.c.bf16 %v289, %v288
      %v317 = vpack.c.bf16 %v291, %v290
      %v318 = vpack.c.bf16 %v293, %v292
      %v319 = vpack.c.bf16 %v295, %v294
      %v320 = vpack.c.bf16 %v297, %v296
      %v321 = vpack.c.bf16 %v299, %v298
      %v322 = vpack.c.bf16 %v301, %v300
      %v323 = vpack.c.bf16 %v303, %v302
      %v324 = vpack.c.bf16 %v305, %v304
      %v325 = vpack.c.bf16 %v307, %v306
      %v326 = vpack.c.bf16 %v309, %v308
      %v327 = vpack.c.bf16 %v311, %v310
      %v328 = vld [vmem:[%s1] sm:$0xf]
      %v329 = vld [vmem:[%s1 + $0x4] sm:$0xf]
      %v330 = vld [vmem:[%s273 + $0x1] sm:$0xff]
      %v331 = vld [vmem:[%s273 + $0x9] sm:$0xff]
      %v332 = vld [vmem:[%s273 + $0x19] sm:$0xff]
      %v333 = vld [vmem:[%s273 + $0x21] sm:$0xff]
      %v334 = vld [vmem:[%s273 + $0x31] sm:$0xff]
      %v335 = vld [vmem:[%s273 + $0x39] sm:$0xff]
      %v336 = vld [vmem:[%s273 + $0x49] sm:$0xff]
      %v337 = vld [vmem:[%s273 + $0x51] sm:$0xff]
      %v338 = vld [vmem:[%s273 + $0x61] sm:$0xff]
      %v339 = vld [vmem:[%s273 + $0x69] sm:$0xff]
      %v340 = vld [vmem:[%s273 + $0x79] sm:$0xff]
      %v341 = vld [vmem:[%s273 + $0x81] sm:$0xff]
      %v342 = vld [vmem:[%s273 + $0x91] sm:$0xff]
      %v343 = vld [vmem:[%s273 + $0x99] sm:$0xff]
      %v344 = vld [vmem:[%s273 + $0xa9] sm:$0xff]
      %v345 = vld [vmem:[%s273 + $0xb1] sm:$0xff]
      %v346 = vld [vmem:[%s273 + $0xc1] sm:$0xff]
      %v347 = vld [vmem:[%s273 + $0xc9] sm:$0xff]
      %v348 = vld [vmem:[%s273 + $0xd9] sm:$0xff]
      %v349 = vld [vmem:[%s273 + $0xe1] sm:$0xff]
      %v350 = vld [vmem:[%s273 + $0xf1] sm:$0xff]
      %v351 = vld [vmem:[%s273 + $0xf9] sm:$0xff]
      %v352 = vld [vmem:[%s273 + $0x109] sm:$0xff]
      %v353 = vld [vmem:[%s273 + $0x111] sm:$0xff]
      %v354 = vld [vmem:[%s273 + $0x121] sm:$0xff]
      %v355 = vld [vmem:[%s273 + $0x129] sm:$0xff]
      %v356 = vld [vmem:[%s273 + $0x139] sm:$0xff]
      %v357 = vld [vmem:[%s273 + $0x141] sm:$0xff]
      %v358 = vld [vmem:[%s273 + $0x151] sm:$0xff]
      %v359 = vld [vmem:[%s273 + $0x159] sm:$0xff]
      %v360 = vld [vmem:[%s273 + $0x169] sm:$0xff]
      %v361 = vld [vmem:[%s273 + $0x171] sm:$0xff]
      %v362 = vpack.c.bf16 %v331, %v330
      %v363 = vpack.c.bf16 %v333, %v332
      %v364 = vpack.c.bf16 %v335, %v334
      %v365 = vpack.c.bf16 %v337, %v336
      %v366 = vpack.c.bf16 %v339, %v338
      %v367 = vpack.c.bf16 %v341, %v340
      %v368 = vpack.c.bf16 %v343, %v342
      %v369 = vpack.c.bf16 %v345, %v344
      %v370 = vpack.c.bf16 %v347, %v346
      %v371 = vpack.c.bf16 %v349, %v348
      %v372 = vpack.c.bf16 %v351, %v350
      %v373 = vpack.c.bf16 %v353, %v352
      %v374 = vpack.c.bf16 %v355, %v354
      %v375 = vpack.c.bf16 %v357, %v356
      %v376 = vpack.c.bf16 %v359, %v358
      %v377 = vpack.c.bf16 %v361, %v360
      %s378 = scalar_lea.vmem %s1, 8
      %v379 = vld [vmem:[%s378] sm:$0xf]
      %v380 = vld [vmem:[%s378 + $0x4] sm:$0xf]
      %v383 = vunpack.c.l.b16 %v379
      %v384 = vunpack.c.l.b16 %v380
      %v385 = vpack.c.b16 %v384, %v383
      %vm387 = vcmask 130048
      %v389 = vsel %vm387, %v362, 0
      %v392 = vsel %vm387, %v363, 0
      %v395 = vsel %vm387, %v364, 0
      %v398 = vsel %vm387, %v365, 0
      %v401 = vsel %vm387, %v366, 0
      %v404 = vsel %vm387, %v367, 0
      %v407 = vsel %vm387, %v368, 0
      %v410 = vsel %vm387, %v369, 0
      %v413 = vsel %vm387, %v370, 0
      %v416 = vsel %vm387, %v371, 0
      %v419 = vsel %vm387, %v372, 0
      %v422 = vsel %vm387, %v373, 0
      %v425 = vsel %vm387, %v374, 0
      %v428 = vsel %vm387, %v375, 0
      %v431 = vsel %vm387, %v376, 0
      %v434 = vsel %vm387, %v377, 0
      %436 = vmatprep.subr.bf16.mxu0 0
      %437 = vmatpush1.bf16.msra.mxu0 %v385
      %438 = vmatprep.subr.bf16.mxu0 0
      %439 = vmatpush1.bf16.msra.mxu0 0
      %440 = vmatprep.subr.bf16.mxu0 0
      %441 = vmatpush1.bf16.msra.mxu0 0
      %442 = vmatprep.subr.bf16.mxu0 0
      %443 = vmatpush1.bf16.msra.mxu0 0
      %444 = vmatprep.subr.bf16.mxu0 0
      %445 = vmatpush1.bf16.msra.mxu0 0
      %446 = vmatprep.subr.bf16.mxu0 0
      %447 = vmatpush1.bf16.msra.mxu0 0
      %448 = vmatprep.subr.bf16.mxu0 0
      %449 = vmatpush1.bf16.msra.mxu0 0
      %450 = vmatprep.subr.bf16.mxu0 0
      %451 = vmatpush1.bf16.msra.mxu0 0
      %452 = vmatprep.subr.bf16.mxu0 0
      %453 = vmatpush1.bf16.msra.mxu0 0
      %454 = vmatprep.subr.bf16.mxu0 0
      %455 = vmatpush1.bf16.msra.mxu0 0
      %456 = vmatprep.subr.bf16.mxu0 0
      %457 = vmatpush1.bf16.msra.mxu0 0
      %458 = vmatprep.subr.bf16.mxu0 0
      %459 = vmatpush1.bf16.msra.mxu0 0
      %460 = vmatprep.subr.bf16.mxu0 0
      %461 = vmatpush1.bf16.msra.mxu0 0
      %462 = vmatprep.subr.bf16.mxu0 0
      %463 = vmatpush1.bf16.msra.mxu0 0
      %464 = vmatprep.subr.bf16.mxu0 0
      %465 = vmatpush1.bf16.msra.mxu0 0
      %466 = vmatprep.subr.bf16.mxu0 0
      %467 = vmatpush1.bf16.msra.mxu0 0
      %468 = vmatprep.mubr.bf16.mxu0 0
      %469 = vmatmul.mubr.bf16.gmra.mrb[0].mxu0 %v389
      %v470 = vpop.f32.mrb[0].mxu0
      %v471 = vadd.f32 0.0, %v470
      %v472 = vpop.f32.mrb[0].mxu0
      %v473 = vpop.f32.mrb[0].mxu0
      %v474 = vadd.f32 0.0, %v473
      %v475 = vpop.f32.mrb[0].mxu0
      %476 = vmatprep.mubr.bf16.mxu0 0
      %477 = vmatmul.mubr.bf16.gmra.mrb[0].mxu0 %v392
      %v478 = vpop.f32.mrb[0].mxu0
      %v479 = vadd.f32 0.0, %v478
      %v480 = vpop.f32.mrb[0].mxu0
      %v481 = vpop.f32.mrb[0].mxu0
      %v482 = vadd.f32 0.0, %v481
      %v483 = vpop.f32.mrb[0].mxu0
      %484 = vmatprep.mubr.bf16.mxu0 0
      %485 = vmatmul.mubr.bf16.gmra.mrb[0].mxu0 %v395
      %v486 = vpop.f32.mrb[0].mxu0
      %v487 = vadd.f32 0.0, %v486
      %v488 = vpop.f32.mrb[0].mxu0
      %v489 = vpop.f32.mrb[0].mxu0
      %v490 = vadd.f32 0.0, %v489
      %v491 = vpop.f32.mrb[0].mxu0
      %492 = vmatprep.mubr.bf16.mxu0 0
      %493 = vmatmul.mubr.bf16.gmra.mrb[0].mxu0 %v398
      %v494 = vpop.f32.mrb[0].mxu0
      %v495 = vadd.f32 0.0, %v494
      %v496 = vpop.f32.mrb[0].mxu0
      %v497 = vpop.f32.mrb[0].mxu0
      %v498 = vadd.f32 0.0, %v497
      %v499 = vpop.f32.mrb[0].mxu0
      %500 = vmatprep.mubr.bf16.mxu0 0
      %501 = vmatmul.mubr.bf16.gmra.mrb[0].mxu0 %v401
      %v502 = vpop.f32.mrb[0].mxu0
      %v503 = vadd.f32 0.0, %v502
      %v504 = vpop.f32.mrb[0].mxu0
      %v505 = vpop.f32.mrb[0].mxu0
      %v506 = vadd.f32 0.0, %v505
      %v507 = vpop.f32.mrb[0].mxu0
      %508 = vmatprep.mubr.bf16.mxu0 0
      %509 = vmatmul.mubr.bf16.gmra.mrb[0].mxu0 %v404
      %v510 = vpop.f32.mrb[0].mxu0
      %v511 = vadd.f32 0.0, %v510
      %v512 = vpop.f32.mrb[0].mxu0
      %v513 = vpop.f32.mrb[0].mxu0
      %v514 = vadd.f32 0.0, %v513
      %v515 = vpop.f32.mrb[0].mxu0
      %516 = vmatprep.mubr.bf16.mxu0 0
      %517 = vmatmul.mubr.bf16.gmra.mrb[0].mxu0 %v407
      %v518 = vpop.f32.mrb[0].mxu0
      %v519 = vadd.f32 0.0, %v518
      %v520 = vpop.f32.mrb[0].mxu0
      %v521 = vpop.f32.mrb[0].mxu0
      %v522 = vadd.f32 0.0, %v521
      %v523 = vpop.f32.mrb[0].mxu0
      %524 = vmatprep.mubr.bf16.mxu0 0
      %525 = vmatmul.mubr.bf16.gmra.mrb[0].mxu0 %v410
      %v526 = vpop.f32.mrb[0].mxu0
      %v527 = vadd.f32 0.0, %v526
      %v528 = vpop.f32.mrb[0].mxu0
      %v529 = vpop.f32.mrb[0].mxu0
      %v530 = vadd.f32 0.0, %v529
      %v531 = vpop.f32.mrb[0].mxu0
      %532 = vmatprep.mubr.bf16.mxu0 0
      %533 = vmatmul.mubr.bf16.gmra.mrb[0].mxu0 %v413
      %v534 = vpop.f32.mrb[0].mxu0
      %v535 = vadd.f32 0.0, %v534
      %v536 = vpop.f32.mrb[0].mxu0
      %v537 = vpop.f32.mrb[0].mxu0
      %v538 = vadd.f32 0.0, %v537
      %v539 = vpop.f32.mrb[0].mxu0
      %540 = vmatprep.mubr.bf16.mxu0 0
      %541 = vmatmul.mubr.bf16.gmra.mrb[0].mxu0 %v416
      %v542 = vpop.f32.mrb[0].mxu0
      %v543 = vadd.f32 0.0, %v542
      %v544 = vpop.f32.mrb[0].mxu0
      %v545 = vpop.f32.mrb[0].mxu0
      %v546 = vadd.f32 0.0, %v545
      %v547 = vpop.f32.mrb[0].mxu0
      %548 = vmatprep.mubr.bf16.mxu0 0
      %549 = vmatmul.mubr.bf16.gmra.mrb[0].mxu0 %v419
      %v550 = vpop.f32.mrb[0].mxu0
      %v551 = vadd.f32 0.0, %v550
      %v552 = vpop.f32.mrb[0].mxu0
      %v553 = vpop.f32.mrb[0].mxu0
      %v554 = vadd.f32 0.0, %v553
      %v555 = vpop.f32.mrb[0].mxu0
      %556 = vmatprep.mubr.bf16.mxu0 0
      %557 = vmatmul.mubr.bf16.gmra.mrb[0].mxu0 %v422
      %v558 = vpop.f32.mrb[0].mxu0
      %v559 = vadd.f32 0.0, %v558
      %v560 = vpop.f32.mrb[0].mxu0
      %v561 = vpop.f32.mrb[0].mxu0
      %v562 = vadd.f32 0.0, %v561
      %v563 = vpop.f32.mrb[0].mxu0
      %564 = vmatprep.mubr.bf16.mxu0 0
      %565 = vmatmul.mubr.bf16.gmra.mrb[0].mxu0 %v425
      %v566 = vpop.f32.mrb[0].mxu0
      %v567 = vadd.f32 0.0, %v566
      %v568 = vpop.f32.mrb[0].mxu0
      %v569 = vpop.f32.mrb[0].mxu0
      %v570 = vadd.f32 0.0, %v569
      %v571 = vpop.f32.mrb[0].mxu0
      %572 = vmatprep.mubr.bf16.mxu0 0
      %573 = vmatmul.mubr.bf16.gmra.mrb[0].mxu0 %v428
      %v574 = vpop.f32.mrb[0].mxu0
      %v575 = vadd.f32 0.0, %v574
      %v576 = vpop.f32.mrb[0].mxu0
      %v577 = vpop.f32.mrb[0].mxu0
      %v578 = vadd.f32 0.0, %v577
      %v579 = vpop.f32.mrb[0].mxu0
      %580 = vmatprep.mubr.bf16.mxu0 0
      %581 = vmatmul.mubr.bf16.gmra.mrb[0].mxu0 %v431
      %v582 = vpop.f32.mrb[0].mxu0
      %v583 = vadd.f32 0.0, %v582
      %v584 = vpop.f32.mrb[0].mxu0
      %v585 = vpop.f32.mrb[0].mxu0
      %v586 = vadd.f32 0.0, %v585
      %v587 = vpop.f32.mrb[0].mxu0
      %588 = vmatprep.mubr.bf16.mxu0 0
      %589 = vmatmul.mubr.bf16.gmra.mrb[0].mxu0 %v434
      %v590 = vpop.f32.mrb[0].mxu0
      %v591 = vadd.f32 0.0, %v590
      %v592 = vpop.f32.mrb[0].mxu0
      %v593 = vpop.f32.mrb[0].mxu0
      %v594 = vadd.f32 0.0, %v593
      %v595 = vpop.f32.mrb[0].mxu0
      %596 = vdwg.mxu0
      %v599 = vunpack.c.l.b16 %v328
      %v600 = vunpack.c.l.b16 %v329
      %v601 = vpack.c.b16 %v600, %v599
      %v604 = vsel %vm387, %v312, 0
      %v607 = vsel %vm387, %v313, 0
      %v610 = vsel %vm387, %v314, 0
      %v613 = vsel %vm387, %v315, 0
      %v616 = vsel %vm387, %v316, 0
      %v619 = vsel %vm387, %v317, 0
      %v622 = vsel %vm387, %v318, 0
      %v625 = vsel %vm387, %v319, 0
      %v628 = vsel %vm387, %v320, 0
      %v631 = vsel %vm387, %v321, 0
      %v634 = vsel %vm387, %v322, 0
      %v637 = vsel %vm387, %v323, 0
      %v640 = vsel %vm387, %v324, 0
      %v643 = vsel %vm387, %v325, 0
      %v646 = vsel %vm387, %v326, 0
      %v649 = vsel %vm387, %v327, 0
      %651 = vmatprep.subr.bf16.mxu0 0
      %652 = vmatpush1.bf16.msra.mxu0 %v601
      %653 = vmatprep.subr.bf16.mxu0 0
      %654 = vmatpush1.bf16.msra.mxu0 0
      %655 = vmatprep.subr.bf16.mxu0 0
      %656 = vmatpush1.bf16.msra.mxu0 0
      %657 = vmatprep.subr.bf16.mxu0 0
      %658 = vmatpush1.bf16.msra.mxu0 0
      %659 = vmatprep.subr.bf16.mxu0 0
      %660 = vmatpush1.bf16.msra.mxu0 0
      %661 = vmatprep.subr.bf16.mxu0 0
      %662 = vmatpush1.bf16.msra.mxu0 0
      %663 = vmatprep.subr.bf16.mxu0 0
      %664 = vmatpush1.bf16.msra.mxu0 0
      %665 = vmatprep.subr.bf16.mxu0 0
      %666 = vmatpush1.bf16.msra.mxu0 0
      %667 = vmatprep.subr.bf16.mxu0 0
      %668 = vmatpush1.bf16.msra.mxu0 0
      %669 = vmatprep.subr.bf16.mxu0 0
      %670 = vmatpush1.bf16.msra.mxu0 0
      %671 = vmatprep.subr.bf16.mxu0 0
      %672 = vmatpush1.bf16.msra.mxu0 0
      %673 = vmatprep.subr.bf16.mxu0 0
      %674 = vmatpush1.bf16.msra.mxu0 0
      %675 = vmatprep.subr.bf16.mxu0 0
      %676 = vmatpush1.bf16.msra.mxu0 0
      %677 = vmatprep.subr.bf16.mxu0 0
      %678 = vmatpush1.bf16.msra.mxu0 0
      %679 = vmatprep.subr.bf16.mxu0 0
      %680 = vmatpush1.bf16.msra.mxu0 0
      %681 = vmatprep.subr.bf16.mxu0 0
      %682 = vmatpush1.bf16.msra.mxu0 0
      %683 = vmatprep.mubr.bf16.mxu0 0
      %684 = vmatmul.mubr.bf16.gmra.mrb[0].mxu0 %v604
      %v685 = vpop.f32.mrb[0].mxu0
      %v686 = vadd.f32 %v471, %v685
      %v687 = vpop.f32.mrb[0].mxu0
      %v688 = vpop.f32.mrb[0].mxu0
      %v689 = vadd.f32 %v474, %v688
      %v690 = vpop.f32.mrb[0].mxu0
      %691 = vmatprep.mubr.bf16.mxu0 0
      %692 = vmatmul.mubr.bf16.gmra.mrb[0].mxu0 %v607
      %v693 = vpop.f32.mrb[0].mxu0
      %v694 = vadd.f32 %v479, %v693
      %v695 = vpop.f32.mrb[0].mxu0
      %v696 = vpop.f32.mrb[0].mxu0
      %v697 = vadd.f32 %v482, %v696
      %v698 = vpop.f32.mrb[0].mxu0
      %699 = vmatprep.mubr.bf16.mxu0 0
      %700 = vmatmul.mubr.bf16.gmra.mrb[0].mxu0 %v610
      %v701 = vpop.f32.mrb[0].mxu0
      %v702 = vadd.f32 %v487, %v701
      %v703 = vpop.f32.mrb[0].mxu0
      %v704 = vpop.f32.mrb[0].mxu0
      %v705 = vadd.f32 %v490, %v704
      %v706 = vpop.f32.mrb[0].mxu0
      %707 = vmatprep.mubr.bf16.mxu0 0
      %708 = vmatmul.mubr.bf16.gmra.mrb[0].mxu0 %v613
      %v709 = vpop.f32.mrb[0].mxu0
      %v710 = vadd.f32 %v495, %v709
      %v711 = vpop.f32.mrb[0].mxu0
      %v712 = vpop.f32.mrb[0].mxu0
      %v713 = vadd.f32 %v498, %v712
      %v714 = vpop.f32.mrb[0].mxu0
      %715 = vmatprep.mubr.bf16.mxu0 0
      %716 = vmatmul.mubr.bf16.gmra.mrb[0].mxu0 %v616
      %v717 = vpop.f32.mrb[0].mxu0
      %v718 = vadd.f32 %v503, %v717
      %v719 = vpop.f32.mrb[0].mxu0
      %v720 = vpop.f32.mrb[0].mxu0
      %v721 = vadd.f32 %v506, %v720
      %v722 = vpop.f32.mrb[0].mxu0
      %723 = vmatprep.mubr.bf16.mxu0 0
      %724 = vmatmul.mubr.bf16.gmra.mrb[0].mxu0 %v619
      %v725 = vpop.f32.mrb[0].mxu0
      %v726 = vadd.f32 %v511, %v725
      %v727 = vpop.f32.mrb[0].mxu0
      %v728 = vpop.f32.mrb[0].mxu0
      %v729 = vadd.f32 %v514, %v728
      %v730 = vpop.f32.mrb[0].mxu0
      %731 = vmatprep.mubr.bf16.mxu0 0
      %732 = vmatmul.mubr.bf16.gmra.mrb[0].mxu0 %v622
      %v733 = vpop.f32.mrb[0].mxu0
      %v734 = vadd.f32 %v519, %v733
      %v735 = vpop.f32.mrb[0].mxu0
      %v736 = vpop.f32.mrb[0].mxu0
      %v737 = vadd.f32 %v522, %v736
      %v738 = vpop.f32.mrb[0].mxu0
      %739 = vmatprep.mubr.bf16.mxu0 0
      %740 = vmatmul.mubr.bf16.gmra.mrb[0].mxu0 %v625
      %v741 = vpop.f32.mrb[0].mxu0
      %v742 = vadd.f32 %v527, %v741
      %v743 = vpop.f32.mrb[0].mxu0
      %v744 = vpop.f32.mrb[0].mxu0
      %v745 = vadd.f32 %v530, %v744
      %v746 = vpop.f32.mrb[0].mxu0
      %747 = vmatprep.mubr.bf16.mxu0 0
      %748 = vmatmul.mubr.bf16.gmra.mrb[0].mxu0 %v628
      %v749 = vpop.f32.mrb[0].mxu0
      %v750 = vadd.f32 %v535, %v749
      %v751 = vpop.f32.mrb[0].mxu0
      %v752 = vpop.f32.mrb[0].mxu0
      %v753 = vadd.f32 %v538, %v752
      %v754 = vpop.f32.mrb[0].mxu0
      %755 = vmatprep.mubr.bf16.mxu0 0
      %756 = vmatmul.mubr.bf16.gmra.mrb[0].mxu0 %v631
      %v757 = vpop.f32.mrb[0].mxu0
      %v758 = vadd.f32 %v543, %v757
      %v759 = vpop.f32.mrb[0].mxu0
      %v760 = vpop.f32.mrb[0].mxu0
      %v761 = vadd.f32 %v546, %v760
      %v762 = vpop.f32.mrb[0].mxu0
      %763 = vmatprep.mubr.bf16.mxu0 0
      %764 = vmatmul.mubr.bf16.gmra.mrb[0].mxu0 %v634
      %v765 = vpop.f32.mrb[0].mxu0
      %v766 = vadd.f32 %v551, %v765
      %v767 = vpop.f32.mrb[0].mxu0
      %v768 = vpop.f32.mrb[0].mxu0
      %v769 = vadd.f32 %v554, %v768
      %v770 = vpop.f32.mrb[0].mxu0
      %771 = vmatprep.mubr.bf16.mxu0 0
      %772 = vmatmul.mubr.bf16.gmra.mrb[0].mxu0 %v637
      %v773 = vpop.f32.mrb[0].mxu0
      %v774 = vadd.f32 %v559, %v773
      %v775 = vpop.f32.mrb[0].mxu0
      %v776 = vpop.f32.mrb[0].mxu0
      %v777 = vadd.f32 %v562, %v776
      %v778 = vpop.f32.mrb[0].mxu0
      %779 = vmatprep.mubr.bf16.mxu0 0
      %780 = vmatmul.mubr.bf16.gmra.mrb[0].mxu0 %v640
      %v781 = vpop.f32.mrb[0].mxu0
      %v782 = vadd.f32 %v567, %v781
      %v783 = vpop.f32.mrb[0].mxu0
      %v784 = vpop.f32.mrb[0].mxu0
      %v785 = vadd.f32 %v570, %v784
      %v786 = vpop.f32.mrb[0].mxu0
      %787 = vmatprep.mubr.bf16.mxu0 0
      %788 = vmatmul.mubr.bf16.gmra.mrb[0].mxu0 %v643
      %v789 = vpop.f32.mrb[0].mxu0
      %v790 = vadd.f32 %v575, %v789
      %v791 = vpop.f32.mrb[0].mxu0
      %v792 = vpop.f32.mrb[0].mxu0
      %v793 = vadd.f32 %v578, %v792
      %v794 = vpop.f32.mrb[0].mxu0
      %795 = vmatprep.mubr.bf16.mxu0 0
      %796 = vmatmul.mubr.bf16.gmra.mrb[0].mxu0 %v646
      %v797 = vpop.f32.mrb[0].mxu0
      %v798 = vadd.f32 %v583, %v797
      %v799 = vpop.f32.mrb[0].mxu0
      %v800 = vpop.f32.mrb[0].mxu0
      %v801 = vadd.f32 %v586, %v800
      %v802 = vpop.f32.mrb[0].mxu0
      %803 = vmatprep.mubr.bf16.mxu0 0
      %804 = vmatmul.mubr.bf16.gmra.mrb[0].mxu0 %v649
      %v805 = vpop.f32.mrb[0].mxu0
      %v806 = vadd.f32 %v591, %v805
      %v807 = vpop.f32.mrb[0].mxu0
      %v808 = vpop.f32.mrb[0].mxu0
      %v809 = vadd.f32 %v594, %v808
      %v810 = vpop.f32.mrb[0].mxu0
      %811 = vdwg.mxu0
      %v812 = vld [vmem:[%s273 + $0x2] sm:$0xff]
      %v813 = vld [vmem:[%s273 + $0xa] sm:$0xff]
      %v814 = vld [vmem:[%s273 + $0x1a] sm:$0xff]
      %v815 = vld [vmem:[%s273 + $0x22] sm:$0xff]
      %v816 = vld [vmem:[%s273 + $0x32] sm:$0xff]
      %v817 = vld [vmem:[%s273 + $0x3a] sm:$0xff]
      %v818 = vld [vmem:[%s273 + $0x4a] sm:$0xff]
      %v819 = vld [vmem:[%s273 + $0x52] sm:$0xff]
      %v820 = vld [vmem:[%s273 + $0x62] sm:$0xff]
      %v821 = vld [vmem:[%s273 + $0x6a] sm:$0xff]
      %v822 = vld [vmem:[%s273 + $0x7a] sm:$0xff]
      %v823 = vld [vmem:[%s273 + $0x82] sm:$0xff]
      %v824 = vld [vmem:[%s273 + $0x92] sm:$0xff]
      %v825 = vld [vmem:[%s273 + $0x9a] sm:$0xff]
      %v826 = vld [vmem:[%s273 + $0xaa] sm:$0xff]
      %v827 = vld [vmem:[%s273 + $0xb2] sm:$0xff]
      %v828 = vld [vmem:[%s273 + $0xc2] sm:$0xff]
      %v829 = vld [vmem:[%s273 + $0xca] sm:$0xff]
      %v830 = vld [vmem:[%s273 + $0xda] sm:$0xff]
      %v831 = vld [vmem:[%s273 + $0xe2] sm:$0xff]
      %v832 = vld [vmem:[%s273 + $0xf2] sm:$0xff]
      %v833 = vld [vmem:[%s273 + $0xfa] sm:$0xff]
      %v834 = vld [vmem:[%s273 + $0x10a] sm:$0xff]
      %v835 = vld [vmem:[%s273 + $0x112] sm:$0xff]
      %v836 = vld [vmem:[%s273 + $0x122] sm:$0xff]
      %v837 = vld [vmem:[%s273 + $0x12a] sm:$0xff]
      %v838 = vld [vmem:[%s273 + $0x13a] sm:$0xff]
      %v839 = vld [vmem:[%s273 + $0x142] sm:$0xff]
      %v840 = vld [vmem:[%s273 + $0x152] sm:$0xff]
      %v841 = vld [vmem:[%s273 + $0x15a] sm:$0xff]
      %v842 = vld [vmem:[%s273 + $0x16a] sm:$0xff]
      %v843 = vld [vmem:[%s273 + $0x172] sm:$0xff]
      %v844 = vpack.c.bf16 %v813, %v812
      %v845 = vpack.c.bf16 %v815, %v814
      %v846 = vpack.c.bf16 %v817, %v816
      %v847 = vpack.c.bf16 %v819, %v818
      %v848 = vpack.c.bf16 %v821, %v820
      %v849 = vpack.c.bf16 %v823, %v822
      %v850 = vpack.c.bf16 %v825, %v824
      %v851 = vpack.c.bf16 %v827, %v826
      %v852 = vpack.c.bf16 %v829, %v828
      %v853 = vpack.c.bf16 %v831, %v830
      %v854 = vpack.c.bf16 %v833, %v832
      %v855 = vpack.c.bf16 %v835, %v834
      %v856 = vpack.c.bf16 %v837, %v836
      %v857 = vpack.c.bf16 %v839, %v838
      %v858 = vpack.c.bf16 %v841, %v840
      %v859 = vpack.c.bf16 %v843, %v842
      %s860 = scalar_lea.vmem %s1, 16
      %v861 = vld [vmem:[%s860] sm:$0xf]
      %v862 = vld [vmem:[%s860 + $0x4] sm:$0xf]
      %v865 = vunpack.c.l.b16 %v861
      %v866 = vunpack.c.l.b16 %v862
      %v867 = vpack.c.b16 %v866, %v865
      %v870 = vsel %vm387, %v844, 0
      %v873 = vsel %vm387, %v845, 0
      %v876 = vsel %vm387, %v846, 0
      %v879 = vsel %vm387, %v847, 0
      %v882 = vsel %vm387, %v848, 0
      %v885 = vsel %vm387, %v849, 0
      %v888 = vsel %vm387, %v850, 0
      %v891 = vsel %vm387, %v851, 0
      %v894 = vsel %vm387, %v852, 0
      %v897 = vsel %vm387, %v853, 0
      %v900 = vsel %vm387, %v854, 0
      %v903 = vsel %vm387, %v855, 0
      %v906 = vsel %vm387, %v856, 0
      %v909 = vsel %vm387, %v857, 0
      %v912 = vsel %vm387, %v858, 0
      %v915 = vsel %vm387, %v859, 0
      %917 = vmatprep.subr.bf16.mxu0 0
      %918 = vmatpush1.bf16.msra.mxu0 %v867
      %919 = vmatprep.subr.bf16.mxu0 0
      %920 = vmatpush1.bf16.msra.mxu0 0
      %921 = vmatprep.subr.bf16.mxu0 0
      %922 = vmatpush1.bf16.msra.mxu0 0
      %923 = vmatprep.subr.bf16.mxu0 0
      %924 = vmatpush1.bf16.msra.mxu0 0
      %925 = vmatprep.subr.bf16.mxu0 0
      %926 = vmatpush1.bf16.msra.mxu0 0
      %927 = vmatprep.subr.bf16.mxu0 0
      %928 = vmatpush1.bf16.msra.mxu0 0
      %929 = vmatprep.subr.bf16.mxu0 0
      %930 = vmatpush1.bf16.msra.mxu0 0
      %931 = vmatprep.subr.bf16.mxu0 0
      %932 = vmatpush1.bf16.msra.mxu0 0
      %933 = vmatprep.subr.bf16.mxu0 0
      %934 = vmatpush1.bf16.msra.mxu0 0
      %935 = vmatprep.subr.bf16.mxu0 0
      %936 = vmatpush1.bf16.msra.mxu0 0
      %937 = vmatprep.subr.bf16.mxu0 0
      %938 = vmatpush1.bf16.msra.mxu0 0
      %939 = vmatprep.subr.bf16.mxu0 0
      %940 = vmatpush1.bf16.msra.mxu0 0
      %941 = vmatprep.subr.bf16.mxu0 0
      %942 = vmatpush1.bf16.msra.mxu0 0
      %943 = vmatprep.subr.bf16.mxu0 0
      %944 = vmatpush1.bf16.msra.mxu0 0
      %945 = vmatprep.subr.bf16.mxu0 0
      %946 = vmatpush1.bf16.msra.mxu0 0
      %947 = vmatprep.subr.bf16.mxu0 0
      %948 = vmatpush1.bf16.msra.mxu0 0
      %949 = vmatprep.mubr.bf16.mxu0 0
      %950 = vmatmul.mubr.bf16.gmra.mrb[0].mxu0 %v870
      %v951 = vpop.f32.mrb[0].mxu0
      %v952 = vadd.f32 0.0, %v951
      %v953 = vpop.f32.mrb[0].mxu0
      %v954 = vpop.f32.mrb[0].mxu0
      %v955 = vadd.f32 0.0, %v954
      %v956 = vpop.f32.mrb[0].mxu0
      %957 = vmatprep.mubr.bf16.mxu0 0
      %958 = vmatmul.mubr.bf16.gmra.mrb[0].mxu0 %v873
      %v959 = vpop.f32.mrb[0].mxu0
      %v960 = vadd.f32 0.0, %v959
      %v961 = vpop.f32.mrb[0].mxu0
      %v962 = vpop.f32.mrb[0].mxu0
      %v963 = vadd.f32 0.0, %v962
      %v964 = vpop.f32.mrb[0].mxu0
      %965 = vmatprep.mubr.bf16.mxu0 0
      %966 = vmatmul.mubr.bf16.gmra.mrb[0].mxu0 %v876
      %v967 = vpop.f32.mrb[0].mxu0
      %v968 = vadd.f32 0.0, %v967
      %v969 = vpop.f32.mrb[0].mxu0
      %v970 = vpop.f32.mrb[0].mxu0
      %v971 = vadd.f32 0.0, %v970
      %v972 = vpop.f32.mrb[0].mxu0
      %973 = vmatprep.mubr.bf16.mxu0 0
      %974 = vmatmul.mubr.bf16.gmra.mrb[0].mxu0 %v879
      %v975 = vpop.f32.mrb[0].mxu0
      %v976 = vadd.f32 0.0, %v975
      %v977 = vpop.f32.mrb[0].mxu0
      %v978 = vpop.f32.mrb[0].mxu0
      %v979 = vadd.f32 0.0, %v978
      %v980 = vpop.f32.mrb[0].mxu0
      %981 = vmatprep.mubr.bf16.mxu0 0
      %982 = vmatmul.mubr.bf16.gmra.mrb[0].mxu0 %v882
      %v983 = vpop.f32.mrb[0].mxu0
      %v984 = vadd.f32 0.0, %v983
      %v985 = vpop.f32.mrb[0].mxu0
      %v986 = vpop.f32.mrb[0].mxu0
      %v987 = vadd.f32 0.0, %v986
      %v988 = vpop.f32.mrb[0].mxu0
      %989 = vmatprep.mubr.bf16.mxu0 0
      %990 = vmatmul.mubr.bf16.gmra.mrb[0].mxu0 %v885
      %v991 = vpop.f32.mrb[0].mxu0
      %v992 = vadd.f32 0.0, %v991
      %v993 = vpop.f32.mrb[0].mxu0
      %v994 = vpop.f32.mrb[0].mxu0
      %v995 = vadd.f32 0.0, %v994
      %v996 = vpop.f32.mrb[0].mxu0
      %997 = vmatprep.mubr.bf16.mxu0 0
      %998 = vmatmul.mubr.bf16.gmra.mrb[0].mxu0 %v888
      %v999 = vpop.f32.mrb[0].mxu0
      %v1000 = vadd.f32 0.0, %v999
      %v1001 = vpop.f32.mrb[0].mxu0
      %v1002 = vpop.f32.mrb[0].mxu0
      %v1003 = vadd.f32 0.0, %v1002
      %v1004 = vpop.f32.mrb[0].mxu0
      %1005 = vmatprep.mubr.bf16.mxu0 0
      %1006 = vmatmul.mubr.bf16.gmra.mrb[0].mxu0 %v891
      %v1007 = vpop.f32.mrb[0].mxu0
      %v1008 = vadd.f32 0.0, %v1007
      %v1009 = vpop.f32.mrb[0].mxu0
      %v1010 = vpop.f32.mrb[0].mxu0
      %v1011 = vadd.f32 0.0, %v1010
      %v1012 = vpop.f32.mrb[0].mxu0
      %1013 = vmatprep.mubr.bf16.mxu0 0
      %1014 = vmatmul.mubr.bf16.gmra.mrb[0].mxu0 %v894
      %v1015 = vpop.f32.mrb[0].mxu0
      %v1016 = vadd.f32 0.0, %v1015
      %v1017 = vpop.f32.mrb[0].mxu0
      %v1018 = vpop.f32.mrb[0].mxu0
      %v1019 = vadd.f32 0.0, %v1018
      %v1020 = vpop.f32.mrb[0].mxu0
      %1021 = vmatprep.mubr.bf16.mxu0 0
      %1022 = vmatmul.mubr.bf16.gmra.mrb[0].mxu0 %v897
      %v1023 = vpop.f32.mrb[0].mxu0
      %v1024 = vadd.f32 0.0, %v1023
      %v1025 = vpop.f32.mrb[0].mxu0
      %v1026 = vpop.f32.mrb[0].mxu0
      %v1027 = vadd.f32 0.0, %v1026
      %v1028 = vpop.f32.mrb[0].mxu0
      %1029 = vmatprep.mubr.bf16.mxu0 0
      %1030 = vmatmul.mubr.bf16.gmra.mrb[0].mxu0 %v900
      %v1031 = vpop.f32.mrb[0].mxu0
      %v1032 = vadd.f32 0.0, %v1031
      %v1033 = vpop.f32.mrb[0].mxu0
      %v1034 = vpop.f32.mrb[0].mxu0
      %v1035 = vadd.f32 0.0, %v1034
      %v1036 = vpop.f32.mrb[0].mxu0
      %1037 = vmatprep.mubr.bf16.mxu0 0
      %1038 = vmatmul.mubr.bf16.gmra.mrb[0].mxu0 %v903
      %v1039 = vpop.f32.mrb[0].mxu0
      %v1040 = vadd.f32 0.0, %v1039
      %v1041 = vpop.f32.mrb[0].mxu0
      %v1042 = vpop.f32.mrb[0].mxu0
      %v1043 = vadd.f32 0.0, %v1042
      %v1044 = vpop.f32.mrb[0].mxu0
      %1045 = vmatprep.mubr.bf16.mxu0 0
      %1046 = vmatmul.mubr.bf16.gmra.mrb[0].mxu0 %v906
      %v1047 = vpop.f32.mrb[0].mxu0
      %v1048 = vadd.f32 0.0, %v1047
      %v1049 = vpop.f32.mrb[0].mxu0
      %v1050 = vpop.f32.mrb[0].mxu0
      %v1051 = vadd.f32 0.0, %v1050
      %v1052 = vpop.f32.mrb[0].mxu0
      %1053 = vmatprep.mubr.bf16.mxu0 0
      %1054 = vmatmul.mubr.bf16.gmra.mrb[0].mxu0 %v909
      %v1055 = vpop.f32.mrb[0].mxu0
      %v1056 = vadd.f32 0.0, %v1055
      %v1057 = vpop.f32.mrb[0].mxu0
      %v1058 = vpop.f32.mrb[0].mxu0
      %v1059 = vadd.f32 0.0, %v1058
      %v1060 = vpop.f32.mrb[0].mxu0
      %1061 = vmatprep.mubr.bf16.mxu0 0
      %1062 = vmatmul.mubr.bf16.gmra.mrb[0].mxu0 %v912
      %v1063 = vpop.f32.mrb[0].mxu0
      %v1064 = vadd.f32 0.0, %v1063
      %v1065 = vpop.f32.mrb[0].mxu0
      %v1066 = vpop.f32.mrb[0].mxu0
      %v1067 = vadd.f32 0.0, %v1066
      %v1068 = vpop.f32.mrb[0].mxu0
      %1069 = vmatprep.mubr.bf16.mxu0 0
      %1070 = vmatmul.mubr.bf16.gmra.mrb[0].mxu0 %v915
      %v1071 = vpop.f32.mrb[0].mxu0
      %v1072 = vadd.f32 0.0, %v1071
      %v1073 = vpop.f32.mrb[0].mxu0
      %v1074 = vpop.f32.mrb[0].mxu0
      %v1075 = vadd.f32 0.0, %v1074
      %v1076 = vpop.f32.mrb[0].mxu0
      %1077 = vdwg.mxu0
      %v1078 = vadd.f32 %v686, %v952
      %v1079 = vadd.f32 %v689, %v955
      %v1080 = vadd.f32 %v694, %v960
      %v1081 = vadd.f32 %v697, %v963
      %v1082 = vadd.f32 %v702, %v968
      %v1083 = vadd.f32 %v705, %v971
      %v1084 = vadd.f32 %v710, %v976
      %v1085 = vadd.f32 %v713, %v979
      %v1086 = vadd.f32 %v718, %v984
      %v1087 = vadd.f32 %v721, %v987
      %v1088 = vadd.f32 %v726, %v992
      %v1089 = vadd.f32 %v729, %v995
      %v1090 = vadd.f32 %v734, %v1000
      %v1091 = vadd.f32 %v737, %v1003
      %v1092 = vadd.f32 %v742, %v1008
      %v1093 = vadd.f32 %v745, %v1011
      %v1094 = vadd.f32 %v750, %v1016
      %v1095 = vadd.f32 %v753, %v1019
      %v1096 = vadd.f32 %v758, %v1024
      %v1097 = vadd.f32 %v761, %v1027
      %v1098 = vadd.f32 %v766, %v1032
      %v1099 = vadd.f32 %v769, %v1035
      %v1100 = vadd.f32 %v774, %v1040
      %v1101 = vadd.f32 %v777, %v1043
      %v1102 = vadd.f32 %v782, %v1048
      %v1103 = vadd.f32 %v785, %v1051
      %v1104 = vadd.f32 %v790, %v1056
      %v1105 = vadd.f32 %v793, %v1059
      %v1106 = vadd.f32 %v798, %v1064
      %v1107 = vadd.f32 %v801, %v1067
      %v1108 = vadd.f32 %v806, %v1072
      %v1109 = vadd.f32 %v809, %v1075
      %s1110 = scalar_lea.vmem %s273, 24
      %v1111 = vld [vmem:[%s1110] sm:$0xff]
      %v1112 = vld [vmem:[%s1110 + $0x8] sm:$0xff]
      %v1113 = vld [vmem:[%s1110 + $0x18] sm:$0xff]
      %v1114 = vld [vmem:[%s1110 + $0x20] sm:$0xff]
      %v1115 = vld [vmem:[%s1110 + $0x30] sm:$0xff]
      %v1116 = vld [vmem:[%s1110 + $0x38] sm:$0xff]
      %v1117 = vld [vmem:[%s1110 + $0x48] sm:$0xff]
      %v1118 = vld [vmem:[%s1110 + $0x50] sm:$0xff]
      %v1119 = vld [vmem:[%s1110 + $0x60] sm:$0xff]
      %v1120 = vld [vmem:[%s1110 + $0x68] sm:$0xff]
      %v1121 = vld [vmem:[%s1110 + $0x78] sm:$0xff]
      %v1122 = vld [vmem:[%s1110 + $0x80] sm:$0xff]
      %v1123 = vld [vmem:[%s1110 + $0x90] sm:$0xff]
      %v1124 = vld [vmem:[%s1110 + $0x98] sm:$0xff]
      %v1125 = vld [vmem:[%s1110 + $0xa8] sm:$0xff]
      %v1126 = vld [vmem:[%s1110 + $0xb0] sm:$0xff]
      %v1127 = vld [vmem:[%s1110 + $0xc0] sm:$0xff]
      %v1128 = vld [vmem:[%s1110 + $0xc8] sm:$0xff]
      %v1129 = vld [vmem:[%s1110 + $0xd8] sm:$0xff]
      %v1130 = vld [vmem:[%s1110 + $0xe0] sm:$0xff]
      %v1131 = vld [vmem:[%s1110 + $0xf0] sm:$0xff]
      %v1132 = vld [vmem:[%s1110 + $0xf8] sm:$0xff]
      %v1133 = vld [vmem:[%s1110 + $0x108] sm:$0xff]
      %v1134 = vld [vmem:[%s1110 + $0x110] sm:$0xff]
      %v1135 = vld [vmem:[%s1110 + $0x120] sm:$0xff]
      %v1136 = vld [vmem:[%s1110 + $0x128] sm:$0xff]
      %v1137 = vld [vmem:[%s1110 + $0x138] sm:$0xff]
      %v1138 = vld [vmem:[%s1110 + $0x140] sm:$0xff]
      %v1139 = vld [vmem:[%s1110 + $0x150] sm:$0xff]
      %v1140 = vld [vmem:[%s1110 + $0x158] sm:$0xff]
      %v1141 = vld [vmem:[%s1110 + $0x168] sm:$0xff]
      %v1142 = vld [vmem:[%s1110 + $0x170] sm:$0xff]
      %v1143 = vpack.c.bf16 %v1112, %v1111
      %v1144 = vpack.c.bf16 %v1114, %v1113
      %v1145 = vpack.c.bf16 %v1116, %v1115
      %v1146 = vpack.c.bf16 %v1118, %v1117
      %v1147 = vpack.c.bf16 %v1120, %v1119
      %v1148 = vpack.c.bf16 %v1122, %v1121
      %v1149 = vpack.c.bf16 %v1124, %v1123
      %v1150 = vpack.c.bf16 %v1126, %v1125
      %v1151 = vpack.c.bf16 %v1128, %v1127
      %v1152 = vpack.c.bf16 %v1130, %v1129
      %v1153 = vpack.c.bf16 %v1132, %v1131
      %v1154 = vpack.c.bf16 %v1134, %v1133
      %v1155 = vpack.c.bf16 %v1136, %v1135
      %v1156 = vpack.c.bf16 %v1138, %v1137
      %v1157 = vpack.c.bf16 %v1140, %v1139
      %v1158 = vpack.c.bf16 %v1142, %v1141
      %s1159 = scalar_lea.vmem %s1, 24
      %v1160 = vld [vmem:[%s1159] sm:$0xf]
      %v1161 = vld [vmem:[%s1159 + $0x4] sm:$0xf]
      %v1164 = vunpack.c.l.b16 %v1160
      %v1165 = vunpack.c.l.b16 %v1161
      %v1166 = vpack.c.b16 %v1165, %v1164
      %v1169 = vsel %vm387, %v1143, 0
      %v1172 = vsel %vm387, %v1144, 0
      %v1175 = vsel %vm387, %v1145, 0
      %v1178 = vsel %vm387, %v1146, 0
      %v1181 = vsel %vm387, %v1147, 0
      %v1184 = vsel %vm387, %v1148, 0
      %v1187 = vsel %vm387, %v1149, 0
      %v1190 = vsel %vm387, %v1150, 0
      %v1193 = vsel %vm387, %v1151, 0
      %v1196 = vsel %vm387, %v1152, 0
      %v1199 = vsel %vm387, %v1153, 0
      %v1202 = vsel %vm387, %v1154, 0
      %v1205 = vsel %vm387, %v1155, 0
      %v1208 = vsel %vm387, %v1156, 0
      %v1211 = vsel %vm387, %v1157, 0
      %v1214 = vsel %vm387, %v1158, 0
      %1216 = vmatprep.subr.bf16.mxu0 0
      %1217 = vmatpush1.bf16.msra.mxu0 %v1166
      %1218 = vmatprep.subr.bf16.mxu0 0
      %1219 = vmatpush1.bf16.msra.mxu0 0
      %1220 = vmatprep.subr.bf16.mxu0 0
      %1221 = vmatpush1.bf16.msra.mxu0 0
      %1222 = vmatprep.subr.bf16.mxu0 0
      %1223 = vmatpush1.bf16.msra.mxu0 0
      %1224 = vmatprep.subr.bf16.mxu0 0
      %1225 = vmatpush1.bf16.msra.mxu0 0
      %1226 = vmatprep.subr.bf16.mxu0 0
      %1227 = vmatpush1.bf16.msra.mxu0 0
      %1228 = vmatprep.subr.bf16.mxu0 0
      %1229 = vmatpush1.bf16.msra.mxu0 0
      %1230 = vmatprep.subr.bf16.mxu0 0
      %1231 = vmatpush1.bf16.msra.mxu0 0
      %1232 = vmatprep.subr.bf16.mxu0 0
      %1233 = vmatpush1.bf16.msra.mxu0 0
      %1234 = vmatprep.subr.bf16.mxu0 0
      %1235 = vmatpush1.bf16.msra.mxu0 0
      %1236 = vmatprep.subr.bf16.mxu0 0
      %1237 = vmatpush1.bf16.msra.mxu0 0
      %1238 = vmatprep.subr.bf16.mxu0 0
      %1239 = vmatpush1.bf16.msra.mxu0 0
      %1240 = vmatprep.subr.bf16.mxu0 0
      %1241 = vmatpush1.bf16.msra.mxu0 0
      %1242 = vmatprep.subr.bf16.mxu0 0
      %1243 = vmatpush1.bf16.msra.mxu0 0
      %1244 = vmatprep.subr.bf16.mxu0 0
      %1245 = vmatpush1.bf16.msra.mxu0 0
      %1246 = vmatprep.subr.bf16.mxu0 0
      %1247 = vmatpush1.bf16.msra.mxu0 0
      %1248 = vmatprep.mubr.bf16.mxu0 0
      %1249 = vmatmul.mubr.bf16.gmra.mrb[0].mxu0 %v1169
      %v1250 = vpop.f32.mrb[0].mxu0
      %v1251 = vadd.f32 0.0, %v1250
      %v1252 = vpop.f32.mrb[0].mxu0
      %v1253 = vpop.f32.mrb[0].mxu0
      %v1254 = vadd.f32 0.0, %v1253
      %v1255 = vpop.f32.mrb[0].mxu0
      %1256 = vmatprep.mubr.bf16.mxu0 0
      %1257 = vmatmul.mubr.bf16.gmra.mrb[0].mxu0 %v1172
      %v1258 = vpop.f32.mrb[0].mxu0
      %v1259 = vadd.f32 0.0, %v1258
      %v1260 = vpop.f32.mrb[0].mxu0
      %v1261 = vpop.f32.mrb[0].mxu0
      %v1262 = vadd.f32 0.0, %v1261
      %v1263 = vpop.f32.mrb[0].mxu0
      %1264 = vmatprep.mubr.bf16.mxu0 0
      %1265 = vmatmul.mubr.bf16.gmra.mrb[0].mxu0 %v1175
      %v1266 = vpop.f32.mrb[0].mxu0
      %v1267 = vadd.f32 0.0, %v1266
      %v1268 = vpop.f32.mrb[0].mxu0
      %v1269 = vpop.f32.mrb[0].mxu0
      %v1270 = vadd.f32 0.0, %v1269
      %v1271 = vpop.f32.mrb[0].mxu0
      %1272 = vmatprep.mubr.bf16.mxu0 0
      %1273 = vmatmul.mubr.bf16.gmra.mrb[0].mxu0 %v1178
      %v1274 = vpop.f32.mrb[0].mxu0
      %v1275 = vadd.f32 0.0, %v1274
      %v1276 = vpop.f32.mrb[0].mxu0
      %v1277 = vpop.f32.mrb[0].mxu0
      %v1278 = vadd.f32 0.0, %v1277
      %v1279 = vpop.f32.mrb[0].mxu0
      %1280 = vmatprep.mubr.bf16.mxu0 0
      %1281 = vmatmul.mubr.bf16.gmra.mrb[0].mxu0 %v1181
      %v1282 = vpop.f32.mrb[0].mxu0
      %v1283 = vadd.f32 0.0, %v1282
      %v1284 = vpop.f32.mrb[0].mxu0
      %v1285 = vpop.f32.mrb[0].mxu0
      %v1286 = vadd.f32 0.0, %v1285
      %v1287 = vpop.f32.mrb[0].mxu0
      %1288 = vmatprep.mubr.bf16.mxu0 0
      %1289 = vmatmul.mubr.bf16.gmra.mrb[0].mxu0 %v1184
      %v1290 = vpop.f32.mrb[0].mxu0
      %v1291 = vadd.f32 0.0, %v1290
      %v1292 = vpop.f32.mrb[0].mxu0
      %v1293 = vpop.f32.mrb[0].mxu0
      %v1294 = vadd.f32 0.0, %v1293
      %v1295 = vpop.f32.mrb[0].mxu0
      %1296 = vmatprep.mubr.bf16.mxu0 0
      %1297 = vmatmul.mubr.bf16.gmra.mrb[0].mxu0 %v1187
      %v1298 = vpop.f32.mrb[0].mxu0
      %v1299 = vadd.f32 0.0, %v1298
      %v1300 = vpop.f32.mrb[0].mxu0
      %v1301 = vpop.f32.mrb[0].mxu0
      %v1302 = vadd.f32 0.0, %v1301
      %v1303 = vpop.f32.mrb[0].mxu0
      %1304 = vmatprep.mubr.bf16.mxu0 0
      %1305 = vmatmul.mubr.bf16.gmra.mrb[0].mxu0 %v1190
      %v1306 = vpop.f32.mrb[0].mxu0
      %v1307 = vadd.f32 0.0, %v1306
      %v1308 = vpop.f32.mrb[0].mxu0
      %v1309 = vpop.f32.mrb[0].mxu0
      %v1310 = vadd.f32 0.0, %v1309
      %v1311 = vpop.f32.mrb[0].mxu0
      %1312 = vmatprep.mubr.bf16.mxu0 0
      %1313 = vmatmul.mubr.bf16.gmra.mrb[0].mxu0 %v1193
      %v1314 = vpop.f32.mrb[0].mxu0
      %v1315 = vadd.f32 0.0, %v1314
      %v1316 = vpop.f32.mrb[0].mxu0
      %v1317 = vpop.f32.mrb[0].mxu0
      %v1318 = vadd.f32 0.0, %v1317
      %v1319 = vpop.f32.mrb[0].mxu0
      %1320 = vmatprep.mubr.bf16.mxu0 0
      %1321 = vmatmul.mubr.bf16.gmra.mrb[0].mxu0 %v1196
      %v1322 = vpop.f32.mrb[0].mxu0
      %v1323 = vadd.f32 0.0, %v1322
      %v1324 = vpop.f32.mrb[0].mxu0
      %v1325 = vpop.f32.mrb[0].mxu0
      %v1326 = vadd.f32 0.0, %v1325
      %v1327 = vpop.f32.mrb[0].mxu0
      %1328 = vmatprep.mubr.bf16.mxu0 0
      %1329 = vmatmul.mubr.bf16.gmra.mrb[0].mxu0 %v1199
      %v1330 = vpop.f32.mrb[0].mxu0
      %v1331 = vadd.f32 0.0, %v1330
      %v1332 = vpop.f32.mrb[0].mxu0
      %v1333 = vpop.f32.mrb[0].mxu0
      %v1334 = vadd.f32 0.0, %v1333
      %v1335 = vpop.f32.mrb[0].mxu0
      %1336 = vmatprep.mubr.bf16.mxu0 0
      %1337 = vmatmul.mubr.bf16.gmra.mrb[0].mxu0 %v1202
      %v1338 = vpop.f32.mrb[0].mxu0
      %v1339 = vadd.f32 0.0, %v1338
      %v1340 = vpop.f32.mrb[0].mxu0
      %v1341 = vpop.f32.mrb[0].mxu0
      %v1342 = vadd.f32 0.0, %v1341
      %v1343 = vpop.f32.mrb[0].mxu0
      %1344 = vmatprep.mubr.bf16.mxu0 0
      %1345 = vmatmul.mubr.bf16.gmra.mrb[0].mxu0 %v1205
      %v1346 = vpop.f32.mrb[0].mxu0
      %v1347 = vadd.f32 0.0, %v1346
      %v1348 = vpop.f32.mrb[0].mxu0
      %v1349 = vpop.f32.mrb[0].mxu0
      %v1350 = vadd.f32 0.0, %v1349
      %v1351 = vpop.f32.mrb[0].mxu0
      %1352 = vmatprep.mubr.bf16.mxu0 0
      %1353 = vmatmul.mubr.bf16.gmra.mrb[0].mxu0 %v1208
      %v1354 = vpop.f32.mrb[0].mxu0
      %v1355 = vadd.f32 0.0, %v1354
      %v1356 = vpop.f32.mrb[0].mxu0
      %v1357 = vpop.f32.mrb[0].mxu0
      %v1358 = vadd.f32 0.0, %v1357
      %v1359 = vpop.f32.mrb[0].mxu0
      %1360 = vmatprep.mubr.bf16.mxu0 0
      %1361 = vmatmul.mubr.bf16.gmra.mrb[0].mxu0 %v1211
      %v1362 = vpop.f32.mrb[0].mxu0
      %v1363 = vadd.f32 0.0, %v1362
      %v1364 = vpop.f32.mrb[0].mxu0
      %v1365 = vpop.f32.mrb[0].mxu0
      %v1366 = vadd.f32 0.0, %v1365
      %v1367 = vpop.f32.mrb[0].mxu0
      %1368 = vmatprep.mubr.bf16.mxu0 0
      %1369 = vmatmul.mubr.bf16.gmra.mrb[0].mxu0 %v1214
      %v1370 = vpop.f32.mrb[0].mxu0
      %v1371 = vadd.f32 0.0, %v1370
      %v1372 = vpop.f32.mrb[0].mxu0
      %v1373 = vpop.f32.mrb[0].mxu0
      %v1374 = vadd.f32 0.0, %v1373
      %v1375 = vpop.f32.mrb[0].mxu0
      %1376 = vdwg.mxu0
      %v1377 = vadd.f32 %v1078, %v1251
      %v1378 = vadd.f32 %v1079, %v1254
      %v1379 = vadd.f32 %v1080, %v1259
      %v1380 = vadd.f32 %v1081, %v1262
      %v1381 = vadd.f32 %v1082, %v1267
      %v1382 = vadd.f32 %v1083, %v1270
      %v1383 = vadd.f32 %v1084, %v1275
      %v1384 = vadd.f32 %v1085, %v1278
      %v1385 = vadd.f32 %v1086, %v1283
      %v1386 = vadd.f32 %v1087, %v1286
      %v1387 = vadd.f32 %v1088, %v1291
      %v1388 = vadd.f32 %v1089, %v1294
      %v1389 = vadd.f32 %v1090, %v1299
      %v1390 = vadd.f32 %v1091, %v1302
      %v1391 = vadd.f32 %v1092, %v1307
      %v1392 = vadd.f32 %v1093, %v1310
      %v1393 = vadd.f32 %v1094, %v1315
      %v1394 = vadd.f32 %v1095, %v1318
      %v1395 = vadd.f32 %v1096, %v1323
      %v1396 = vadd.f32 %v1097, %v1326
      %v1397 = vadd.f32 %v1098, %v1331
      %v1398 = vadd.f32 %v1099, %v1334
      %v1399 = vadd.f32 %v1100, %v1339
      %v1400 = vadd.f32 %v1101, %v1342
      %v1401 = vadd.f32 %v1102, %v1347
      %v1402 = vadd.f32 %v1103, %v1350
      %v1403 = vadd.f32 %v1104, %v1355
      %v1404 = vadd.f32 %v1105, %v1358
      %v1405 = vadd.f32 %v1106, %v1363
      %v1406 = vadd.f32 %v1107, %v1366
      %v1407 = vadd.f32 %v1108, %v1371
      %v1408 = vadd.f32 %v1109, %v1374
      %v1409 = vld [vmem:[%s1110 + $0x1] sm:$0xff]
      %v1410 = vld [vmem:[%s1110 + $0x9] sm:$0xff]
      %v1411 = vld [vmem:[%s1110 + $0x19] sm:$0xff]
      %v1412 = vld [vmem:[%s1110 + $0x21] sm:$0xff]
      %v1413 = vld [vmem:[%s1110 + $0x31] sm:$0xff]
      %v1414 = vld [vmem:[%s1110 + $0x39] sm:$0xff]
      %v1415 = vld [vmem:[%s1110 + $0x49] sm:$0xff]
      %v1416 = vld [vmem:[%s1110 + $0x51] sm:$0xff]
      %v1417 = vld [vmem:[%s1110 + $0x61] sm:$0xff]
      %v1418 = vld [vmem:[%s1110 + $0x69] sm:$0xff]
      %v1419 = vld [vmem:[%s1110 + $0x79] sm:$0xff]
      %v1420 = vld [vmem:[%s1110 + $0x81] sm:$0xff]
      %v1421 = vld [vmem:[%s1110 + $0x91] sm:$0xff]
      %v1422 = vld [vmem:[%s1110 + $0x99] sm:$0xff]
      %v1423 = vld [vmem:[%s1110 + $0xa9] sm:$0xff]
      %v1424 = vld [vmem:[%s1110 + $0xb1] sm:$0xff]
      %v1425 = vld [vmem:[%s1110 + $0xc1] sm:$0xff]
      %v1426 = vld [vmem:[%s1110 + $0xc9] sm:$0xff]
      %v1427 = vld [vmem:[%s1110 + $0xd9] sm:$0xff]
      %v1428 = vld [vmem:[%s1110 + $0xe1] sm:$0xff]
      %v1429 = vld [vmem:[%s1110 + $0xf1] sm:$0xff]
      %v1430 = vld [vmem:[%s1110 + $0xf9] sm:$0xff]
      %v1431 = vld [vmem:[%s1110 + $0x109] sm:$0xff]
      %v1432 = vld [vmem:[%s1110 + $0x111] sm:$0xff]
      %v1433 = vld [vmem:[%s1110 + $0x121] sm:$0xff]
      %v1434 = vld [vmem:[%s1110 + $0x129] sm:$0xff]
      %v1435 = vld [vmem:[%s1110 + $0x139] sm:$0xff]
      %v1436 = vld [vmem:[%s1110 + $0x141] sm:$0xff]
      %v1437 = vld [vmem:[%s1110 + $0x151] sm:$0xff]
      %v1438 = vld [vmem:[%s1110 + $0x159] sm:$0xff]
      %v1439 = vld [vmem:[%s1110 + $0x169] sm:$0xff]
      %v1440 = vld [vmem:[%s1110 + $0x171] sm:$0xff]
      %v1441 = vpack.c.bf16 %v1410, %v1409
      %v1442 = vpack.c.bf16 %v1412, %v1411
      %v1443 = vpack.c.bf16 %v1414, %v1413
      %v1444 = vpack.c.bf16 %v1416, %v1415
      %v1445 = vpack.c.bf16 %v1418, %v1417
      %v1446 = vpack.c.bf16 %v1420, %v1419
      %v1447 = vpack.c.bf16 %v1422, %v1421
      %v1448 = vpack.c.bf16 %v1424, %v1423
      %v1449 = vpack.c.bf16 %v1426, %v1425
      %v1450 = vpack.c.bf16 %v1428, %v1427
      %v1451 = vpack.c.bf16 %v1430, %v1429
      %v1452 = vpack.c.bf16 %v1432, %v1431
      %v1453 = vpack.c.bf16 %v1434, %v1433
      %v1454 = vpack.c.bf16 %v1436, %v1435
      %v1455 = vpack.c.bf16 %v1438, %v1437
      %v1456 = vpack.c.bf16 %v1440, %v1439
      %s1457 = scalar_lea.vmem %s1, 32
      %v1458 = vld [vmem:[%s1457] sm:$0xf]
      %v1459 = vld [vmem:[%s1457 + $0x4] sm:$0xf]
      %v1462 = vunpack.c.l.b16 %v1458
      %v1463 = vunpack.c.l.b16 %v1459
      %v1464 = vpack.c.b16 %v1463, %v1462
      %v1467 = vsel %vm387, %v1441, 0
      %v1470 = vsel %vm387, %v1442, 0
      %v1473 = vsel %vm387, %v1443, 0
      %v1476 = vsel %vm387, %v1444, 0
      %v1479 = vsel %vm387, %v1445, 0
      %v1482 = vsel %vm387, %v1446, 0
      %v1485 = vsel %vm387, %v1447, 0
      %v1488 = vsel %vm387, %v1448, 0
      %v1491 = vsel %vm387, %v1449, 0
      %v1494 = vsel %vm387, %v1450, 0
      %v1497 = vsel %vm387, %v1451, 0
      %v1500 = vsel %vm387, %v1452, 0
      %v1503 = vsel %vm387, %v1453, 0
      %v1506 = vsel %vm387, %v1454, 0
      %v1509 = vsel %vm387, %v1455, 0
      %v1512 = vsel %vm387, %v1456, 0
      %1514 = vmatprep.subr.bf16.mxu0 0
      %1515 = vmatpush1.bf16.msra.mxu0 %v1464
      %1516 = vmatprep.subr.bf16.mxu0 0
      %1517 = vmatpush1.bf16.msra.mxu0 0
      %1518 = vmatprep.subr.bf16.mxu0 0
      %1519 = vmatpush1.bf16.msra.mxu0 0
      %1520 = vmatprep.subr.bf16.mxu0 0
      %1521 = vmatpush1.bf16.msra.mxu0 0
      %1522 = vmatprep.subr.bf16.mxu0 0
      %1523 = vmatpush1.bf16.msra.mxu0 0
      %1524 = vmatprep.subr.bf16.mxu0 0
      %1525 = vmatpush1.bf16.msra.mxu0 0
      %1526 = vmatprep.subr.bf16.mxu0 0
      %1527 = vmatpush1.bf16.msra.mxu0 0
      %1528 = vmatprep.subr.bf16.mxu0 0
      %1529 = vmatpush1.bf16.msra.mxu0 0
      %1530 = vmatprep.subr.bf16.mxu0 0
      %1531 = vmatpush1.bf16.msra.mxu0 0
      %1532 = vmatprep.subr.bf16.mxu0 0
      %1533 = vmatpush1.bf16.msra.mxu0 0
      %1534 = vmatprep.subr.bf16.mxu0 0
      %1535 = vmatpush1.bf16.msra.mxu0 0
      %1536 = vmatprep.subr.bf16.mxu0 0
      %1537 = vmatpush1.bf16.msra.mxu0 0
      %1538 = vmatprep.subr.bf16.mxu0 0
      %1539 = vmatpush1.bf16.msra.mxu0 0
      %1540 = vmatprep.subr.bf16.mxu0 0
      %1541 = vmatpush1.bf16.msra.mxu0 0
      %1542 = vmatprep.subr.bf16.mxu0 0
      %1543 = vmatpush1.bf16.msra.mxu0 0
      %1544 = vmatprep.subr.bf16.mxu0 0
      %1545 = vmatpush1.bf16.msra.mxu0 0
      %1546 = vmatprep.mubr.bf16.mxu0 0
      %1547 = vmatmul.mubr.bf16.gmra.mrb[0].mxu0 %v1467
      %v1548 = vpop.f32.mrb[0].mxu0
      %v1549 = vadd.f32 0.0, %v1548
      %v1550 = vpop.f32.mrb[0].mxu0
      %v1551 = vpop.f32.mrb[0].mxu0
      %v1552 = vadd.f32 0.0, %v1551
      %v1553 = vpop.f32.mrb[0].mxu0
      %1554 = vmatprep.mubr.bf16.mxu0 0
      %1555 = vmatmul.mubr.bf16.gmra.mrb[0].mxu0 %v1470
      %v1556 = vpop.f32.mrb[0].mxu0
      %v1557 = vadd.f32 0.0, %v1556
      %v1558 = vpop.f32.mrb[0].mxu0
      %v1559 = vpop.f32.mrb[0].mxu0
      %v1560 = vadd.f32 0.0, %v1559
      %v1561 = vpop.f32.mrb[0].mxu0
      %1562 = vmatprep.mubr.bf16.mxu0 0
      %1563 = vmatmul.mubr.bf16.gmra.mrb[0].mxu0 %v1473
      %v1564 = vpop.f32.mrb[0].mxu0
      %v1565 = vadd.f32 0.0, %v1564
      %v1566 = vpop.f32.mrb[0].mxu0
      %v1567 = vpop.f32.mrb[0].mxu0
      %v1568 = vadd.f32 0.0, %v1567
      %v1569 = vpop.f32.mrb[0].mxu0
      %1570 = vmatprep.mubr.bf16.mxu0 0
      %1571 = vmatmul.mubr.bf16.gmra.mrb[0].mxu0 %v1476
      %v1572 = vpop.f32.mrb[0].mxu0
      %v1573 = vadd.f32 0.0, %v1572
      %v1574 = vpop.f32.mrb[0].mxu0
      %v1575 = vpop.f32.mrb[0].mxu0
      %v1576 = vadd.f32 0.0, %v1575
      %v1577 = vpop.f32.mrb[0].mxu0
      %1578 = vmatprep.mubr.bf16.mxu0 0
      %1579 = vmatmul.mubr.bf16.gmra.mrb[0].mxu0 %v1479
      %v1580 = vpop.f32.mrb[0].mxu0
      %v1581 = vadd.f32 0.0, %v1580
      %v1582 = vpop.f32.mrb[0].mxu0
      %v1583 = vpop.f32.mrb[0].mxu0
      %v1584 = vadd.f32 0.0, %v1583
      %v1585 = vpop.f32.mrb[0].mxu0
      %1586 = vmatprep.mubr.bf16.mxu0 0
      %1587 = vmatmul.mubr.bf16.gmra.mrb[0].mxu0 %v1482
      %v1588 = vpop.f32.mrb[0].mxu0
      %v1589 = vadd.f32 0.0, %v1588
      %v1590 = vpop.f32.mrb[0].mxu0
      %v1591 = vpop.f32.mrb[0].mxu0
      %v1592 = vadd.f32 0.0, %v1591
      %v1593 = vpop.f32.mrb[0].mxu0
      %1594 = vmatprep.mubr.bf16.mxu0 0
      %1595 = vmatmul.mubr.bf16.gmra.mrb[0].mxu0 %v1485
      %v1596 = vpop.f32.mrb[0].mxu0
      %v1597 = vadd.f32 0.0, %v1596
      %v1598 = vpop.f32.mrb[0].mxu0
      %v1599 = vpop.f32.mrb[0].mxu0
      %v1600 = vadd.f32 0.0, %v1599
      %v1601 = vpop.f32.mrb[0].mxu0
      %1602 = vmatprep.mubr.bf16.mxu0 0
      %1603 = vmatmul.mubr.bf16.gmra.mrb[0].mxu0 %v1488
      %v1604 = vpop.f32.mrb[0].mxu0
      %v1605 = vadd.f32 0.0, %v1604
      %v1606 = vpop.f32.mrb[0].mxu0
      %v1607 = vpop.f32.mrb[0].mxu0
      %v1608 = vadd.f32 0.0, %v1607
      %v1609 = vpop.f32.mrb[0].mxu0
      %1610 = vmatprep.mubr.bf16.mxu0 0
      %1611 = vmatmul.mubr.bf16.gmra.mrb[0].mxu0 %v1491
      %v1612 = vpop.f32.mrb[0].mxu0
      %v1613 = vadd.f32 0.0, %v1612
      %v1614 = vpop.f32.mrb[0].mxu0
      %v1615 = vpop.f32.mrb[0].mxu0
      %v1616 = vadd.f32 0.0, %v1615
      %v1617 = vpop.f32.mrb[0].mxu0
      %1618 = vmatprep.mubr.bf16.mxu0 0
      %1619 = vmatmul.mubr.bf16.gmra.mrb[0].mxu0 %v1494
      %v1620 = vpop.f32.mrb[0].mxu0
      %v1621 = vadd.f32 0.0, %v1620
      %v1622 = vpop.f32.mrb[0].mxu0
      %v1623 = vpop.f32.mrb[0].mxu0
      %v1624 = vadd.f32 0.0, %v1623
      %v1625 = vpop.f32.mrb[0].mxu0
      %1626 = vmatprep.mubr.bf16.mxu0 0
      %1627 = vmatmul.mubr.bf16.gmra.mrb[0].mxu0 %v1497
      %v1628 = vpop.f32.mrb[0].mxu0
      %v1629 = vadd.f32 0.0, %v1628
      %v1630 = vpop.f32.mrb[0].mxu0
      %v1631 = vpop.f32.mrb[0].mxu0
      %v1632 = vadd.f32 0.0, %v1631
      %v1633 = vpop.f32.mrb[0].mxu0
      %1634 = vmatprep.mubr.bf16.mxu0 0
      %1635 = vmatmul.mubr.bf16.gmra.mrb[0].mxu0 %v1500
      %v1636 = vpop.f32.mrb[0].mxu0
      %v1637 = vadd.f32 0.0, %v1636
      %v1638 = vpop.f32.mrb[0].mxu0
      %v1639 = vpop.f32.mrb[0].mxu0
      %v1640 = vadd.f32 0.0, %v1639
      %v1641 = vpop.f32.mrb[0].mxu0
      %1642 = vmatprep.mubr.bf16.mxu0 0
      %1643 = vmatmul.mubr.bf16.gmra.mrb[0].mxu0 %v1503
      %v1644 = vpop.f32.mrb[0].mxu0
      %v1645 = vadd.f32 0.0, %v1644
      %v1646 = vpop.f32.mrb[0].mxu0
      %v1647 = vpop.f32.mrb[0].mxu0
      %v1648 = vadd.f32 0.0, %v1647
      %v1649 = vpop.f32.mrb[0].mxu0
      %1650 = vmatprep.mubr.bf16.mxu0 0
      %1651 = vmatmul.mubr.bf16.gmra.mrb[0].mxu0 %v1506
      %v1652 = vpop.f32.mrb[0].mxu0
      %v1653 = vadd.f32 0.0, %v1652
      %v1654 = vpop.f32.mrb[0].mxu0
      %v1655 = vpop.f32.mrb[0].mxu0
      %v1656 = vadd.f32 0.0, %v1655
      %v1657 = vpop.f32.mrb[0].mxu0
      %1658 = vmatprep.mubr.bf16.mxu0 0
      %1659 = vmatmul.mubr.bf16.gmra.mrb[0].mxu0 %v1509
      %v1660 = vpop.f32.mrb[0].mxu0
      %v1661 = vadd.f32 0.0, %v1660
      %v1662 = vpop.f32.mrb[0].mxu0
      %v1663 = vpop.f32.mrb[0].mxu0
      %v1664 = vadd.f32 0.0, %v1663
      %v1665 = vpop.f32.mrb[0].mxu0
      %1666 = vmatprep.mubr.bf16.mxu0 0
      %1667 = vmatmul.mubr.bf16.gmra.mrb[0].mxu0 %v1512
      %v1668 = vpop.f32.mrb[0].mxu0
      %v1669 = vadd.f32 0.0, %v1668
      %v1670 = vpop.f32.mrb[0].mxu0
      %v1671 = vpop.f32.mrb[0].mxu0
      %v1672 = vadd.f32 0.0, %v1671
      %v1673 = vpop.f32.mrb[0].mxu0
      %1674 = vdwg.mxu0
      %v1675 = vadd.f32 %v1377, %v1549
      %v1676 = vadd.f32 %v1378, %v1552
      %v1677 = vadd.f32 %v1379, %v1557
      %v1678 = vadd.f32 %v1380, %v1560
      %v1679 = vadd.f32 %v1381, %v1565
      %v1680 = vadd.f32 %v1382, %v1568
      %v1681 = vadd.f32 %v1383, %v1573
      %v1682 = vadd.f32 %v1384, %v1576
      %v1683 = vadd.f32 %v1385, %v1581
      %v1684 = vadd.f32 %v1386, %v1584
      %v1685 = vadd.f32 %v1387, %v1589
      %v1686 = vadd.f32 %v1388, %v1592
      %v1687 = vadd.f32 %v1389, %v1597
      %v1688 = vadd.f32 %v1390, %v1600
      %v1689 = vadd.f32 %v1391, %v1605
      %v1690 = vadd.f32 %v1392, %v1608
      %v1691 = vadd.f32 %v1393, %v1613
      %v1692 = vadd.f32 %v1394, %v1616
      %v1693 = vadd.f32 %v1395, %v1621
      %v1694 = vadd.f32 %v1396, %v1624
      %v1695 = vadd.f32 %v1397, %v1629
      %v1696 = vadd.f32 %v1398, %v1632
      %v1697 = vadd.f32 %v1399, %v1637
      %v1698 = vadd.f32 %v1400, %v1640
      %v1699 = vadd.f32 %v1401, %v1645
      %v1700 = vadd.f32 %v1402, %v1648
      %v1701 = vadd.f32 %v1403, %v1653
      %v1702 = vadd.f32 %v1404, %v1656
      %v1703 = vadd.f32 %v1405, %v1661
      %v1704 = vadd.f32 %v1406, %v1664
      %v1705 = vadd.f32 %v1407, %v1669
      %v1706 = vadd.f32 %v1408, %v1672
      %v1707 = vld [vmem:[%s1110 + $0x2] sm:$0xff]
      %v1708 = vld [vmem:[%s1110 + $0xa] sm:$0xff]
      %v1709 = vld [vmem:[%s1110 + $0x1a] sm:$0xff]
      %v1710 = vld [vmem:[%s1110 + $0x22] sm:$0xff]
      %v1711 = vld [vmem:[%s1110 + $0x32] sm:$0xff]
      %v1712 = vld [vmem:[%s1110 + $0x3a] sm:$0xff]
      %v1713 = vld [vmem:[%s1110 + $0x4a] sm:$0xff]
      %v1714 = vld [vmem:[%s1110 + $0x52] sm:$0xff]
      %v1715 = vld [vmem:[%s1110 + $0x62] sm:$0xff]
      %v1716 = vld [vmem:[%s1110 + $0x6a] sm:$0xff]
      %v1717 = vld [vmem:[%s1110 + $0x7a] sm:$0xff]
      %v1718 = vld [vmem:[%s1110 + $0x82] sm:$0xff]
      %v1719 = vld [vmem:[%s1110 + $0x92] sm:$0xff]
      %v1720 = vld [vmem:[%s1110 + $0x9a] sm:$0xff]
      %v1721 = vld [vmem:[%s1110 + $0xaa] sm:$0xff]
      %v1722 = vld [vmem:[%s1110 + $0xb2] sm:$0xff]
      %v1723 = vld [vmem:[%s1110 + $0xc2] sm:$0xff]
      %v1724 = vld [vmem:[%s1110 + $0xca] sm:$0xff]
      %v1725 = vld [vmem:[%s1110 + $0xda] sm:$0xff]
      %v1726 = vld [vmem:[%s1110 + $0xe2] sm:$0xff]
      %v1727 = vld [vmem:[%s1110 + $0xf2] sm:$0xff]
      %v1728 = vld [vmem:[%s1110 + $0xfa] sm:$0xff]
      %v1729 = vld [vmem:[%s1110 + $0x10a] sm:$0xff]
      %v1730 = vld [vmem:[%s1110 + $0x112] sm:$0xff]
      %v1731 = vld [vmem:[%s1110 + $0x122] sm:$0xff]
      %v1732 = vld [vmem:[%s1110 + $0x12a] sm:$0xff]
      %v1733 = vld [vmem:[%s1110 + $0x13a] sm:$0xff]
      %v1734 = vld [vmem:[%s1110 + $0x142] sm:$0xff]
      %v1735 = vld [vmem:[%s1110 + $0x152] sm:$0xff]
      %v1736 = vld [vmem:[%s1110 + $0x15a] sm:$0xff]
      %v1737 = vld [vmem:[%s1110 + $0x16a] sm:$0xff]
      %v1738 = vld [vmem:[%s1110 + $0x172] sm:$0xff]
      %v1739 = vpack.c.bf16 %v1708, %v1707
      %v1740 = vpack.c.bf16 %v1710, %v1709
      %v1741 = vpack.c.bf16 %v1712, %v1711
      %v1742 = vpack.c.bf16 %v1714, %v1713
      %v1743 = vpack.c.bf16 %v1716, %v1715
      %v1744 = vpack.c.bf16 %v1718, %v1717
      %v1745 = vpack.c.bf16 %v1720, %v1719
      %v1746 = vpack.c.bf16 %v1722, %v1721
      %v1747 = vpack.c.bf16 %v1724, %v1723
      %v1748 = vpack.c.bf16 %v1726, %v1725
      %v1749 = vpack.c.bf16 %v1728, %v1727
      %v1750 = vpack.c.bf16 %v1730, %v1729
      %v1751 = vpack.c.bf16 %v1732, %v1731
      %v1752 = vpack.c.bf16 %v1734, %v1733
      %v1753 = vpack.c.bf16 %v1736, %v1735
      %v1754 = vpack.c.bf16 %v1738, %v1737
      %s1755 = scalar_lea.vmem %s1, 40
      %v1756 = vld [vmem:[%s1755] sm:$0xf]
      %v1757 = vld [vmem:[%s1755 + $0x4] sm:$0xf]
      %v1760 = vunpack.c.l.b16 %v1756
      %v1761 = vunpack.c.l.b16 %v1757
      %v1762 = vpack.c.b16 %v1761, %v1760
      %v1765 = vsel %vm387, %v1739, 0
      %v1768 = vsel %vm387, %v1740, 0
      %v1771 = vsel %vm387, %v1741, 0
      %v1774 = vsel %vm387, %v1742, 0
      %v1777 = vsel %vm387, %v1743, 0
      %v1780 = vsel %vm387, %v1744, 0
      %v1783 = vsel %vm387, %v1745, 0
      %v1786 = vsel %vm387, %v1746, 0
      %v1789 = vsel %vm387, %v1747, 0
      %v1792 = vsel %vm387, %v1748, 0
      %v1795 = vsel %vm387, %v1749, 0
      %v1798 = vsel %vm387, %v1750, 0
      %v1801 = vsel %vm387, %v1751, 0
      %v1804 = vsel %vm387, %v1752, 0
      %v1807 = vsel %vm387, %v1753, 0
      %v1810 = vsel %vm387, %v1754, 0
      %1812 = vmatprep.subr.bf16.mxu0 0
      %1813 = vmatpush1.bf16.msra.mxu0 %v1762
      %1814 = vmatprep.subr.bf16.mxu0 0
      %1815 = vmatpush1.bf16.msra.mxu0 0
      %1816 = vmatprep.subr.bf16.mxu0 0
      %1817 = vmatpush1.bf16.msra.mxu0 0
      %1818 = vmatprep.subr.bf16.mxu0 0
      %1819 = vmatpush1.bf16.msra.mxu0 0
      %1820 = vmatprep.subr.bf16.mxu0 0
      %1821 = vmatpush1.bf16.msra.mxu0 0
      %1822 = vmatprep.subr.bf16.mxu0 0
      %1823 = vmatpush1.bf16.msra.mxu0 0
      %1824 = vmatprep.subr.bf16.mxu0 0
      %1825 = vmatpush1.bf16.msra.mxu0 0
      %1826 = vmatprep.subr.bf16.mxu0 0
      %1827 = vmatpush1.bf16.msra.mxu0 0
      %1828 = vmatprep.subr.bf16.mxu0 0
      %1829 = vmatpush1.bf16.msra.mxu0 0
      %1830 = vmatprep.subr.bf16.mxu0 0
      %1831 = vmatpush1.bf16.msra.mxu0 0
      %1832 = vmatprep.subr.bf16.mxu0 0
      %1833 = vmatpush1.bf16.msra.mxu0 0
      %1834 = vmatprep.subr.bf16.mxu0 0
      %1835 = vmatpush1.bf16.msra.mxu0 0
      %1836 = vmatprep.subr.bf16.mxu0 0
      %1837 = vmatpush1.bf16.msra.mxu0 0
      %1838 = vmatprep.subr.bf16.mxu0 0
      %1839 = vmatpush1.bf16.msra.mxu0 0
      %1840 = vmatprep.subr.bf16.mxu0 0
      %1841 = vmatpush1.bf16.msra.mxu0 0
      %1842 = vmatprep.subr.bf16.mxu0 0
      %1843 = vmatpush1.bf16.msra.mxu0 0
      %1844 = vmatprep.mubr.bf16.mxu0 0
      %1845 = vmatmul.mubr.bf16.gmra.mrb[0].mxu0 %v1765
      %v1846 = vpop.f32.mrb[0].mxu0
      %v1847 = vadd.f32 0.0, %v1846
      %v1848 = vpop.f32.mrb[0].mxu0
      %v1849 = vpop.f32.mrb[0].mxu0
      %v1850 = vadd.f32 0.0, %v1849
      %v1851 = vpop.f32.mrb[0].mxu0
      %1852 = vmatprep.mubr.bf16.mxu0 0
      %1853 = vmatmul.mubr.bf16.gmra.mrb[0].mxu0 %v1768
      %v1854 = vpop.f32.mrb[0].mxu0
      %v1855 = vadd.f32 0.0, %v1854
      %v1856 = vpop.f32.mrb[0].mxu0
      %v1857 = vpop.f32.mrb[0].mxu0
      %v1858 = vadd.f32 0.0, %v1857
      %v1859 = vpop.f32.mrb[0].mxu0
      %1860 = vmatprep.mubr.bf16.mxu0 0
      %1861 = vmatmul.mubr.bf16.gmra.mrb[0].mxu0 %v1771
      %v1862 = vpop.f32.mrb[0].mxu0
      %v1863 = vadd.f32 0.0, %v1862
      %v1864 = vpop.f32.mrb[0].mxu0
      %v1865 = vpop.f32.mrb[0].mxu0
      %v1866 = vadd.f32 0.0, %v1865
      %v1867 = vpop.f32.mrb[0].mxu0
      %1868 = vmatprep.mubr.bf16.mxu0 0
      %1869 = vmatmul.mubr.bf16.gmra.mrb[0].mxu0 %v1774
      %v1870 = vpop.f32.mrb[0].mxu0
      %v1871 = vadd.f32 0.0, %v1870
      %v1872 = vpop.f32.mrb[0].mxu0
      %v1873 = vpop.f32.mrb[0].mxu0
      %v1874 = vadd.f32 0.0, %v1873
      %v1875 = vpop.f32.mrb[0].mxu0
      %1876 = vmatprep.mubr.bf16.mxu0 0
      %1877 = vmatmul.mubr.bf16.gmra.mrb[0].mxu0 %v1777
      %v1878 = vpop.f32.mrb[0].mxu0
      %v1879 = vadd.f32 0.0, %v1878
      %v1880 = vpop.f32.mrb[0].mxu0
      %v1881 = vpop.f32.mrb[0].mxu0
      %v1882 = vadd.f32 0.0, %v1881
      %v1883 = vpop.f32.mrb[0].mxu0
      %1884 = vmatprep.mubr.bf16.mxu0 0
      %1885 = vmatmul.mubr.bf16.gmra.mrb[0].mxu0 %v1780
      %v1886 = vpop.f32.mrb[0].mxu0
      %v1887 = vadd.f32 0.0, %v1886
      %v1888 = vpop.f32.mrb[0].mxu0
      %v1889 = vpop.f32.mrb[0].mxu0
      %v1890 = vadd.f32 0.0, %v1889
      %v1891 = vpop.f32.mrb[0].mxu0
      %1892 = vmatprep.mubr.bf16.mxu0 0
      %1893 = vmatmul.mubr.bf16.gmra.mrb[0].mxu0 %v1783
      %v1894 = vpop.f32.mrb[0].mxu0
      %v1895 = vadd.f32 0.0, %v1894
      %v1896 = vpop.f32.mrb[0].mxu0
      %v1897 = vpop.f32.mrb[0].mxu0
      %v1898 = vadd.f32 0.0, %v1897
      %v1899 = vpop.f32.mrb[0].mxu0
      %1900 = vmatprep.mubr.bf16.mxu0 0
      %1901 = vmatmul.mubr.bf16.gmra.mrb[0].mxu0 %v1786
      %v1902 = vpop.f32.mrb[0].mxu0
      %v1903 = vadd.f32 0.0, %v1902
      %v1904 = vpop.f32.mrb[0].mxu0
      %v1905 = vpop.f32.mrb[0].mxu0
      %v1906 = vadd.f32 0.0, %v1905
      %v1907 = vpop.f32.mrb[0].mxu0
      %1908 = vmatprep.mubr.bf16.mxu0 0
      %1909 = vmatmul.mubr.bf16.gmra.mrb[0].mxu0 %v1789
      %v1910 = vpop.f32.mrb[0].mxu0
      %v1911 = vadd.f32 0.0, %v1910
      %v1912 = vpop.f32.mrb[0].mxu0
      %v1913 = vpop.f32.mrb[0].mxu0
      %v1914 = vadd.f32 0.0, %v1913
      %v1915 = vpop.f32.mrb[0].mxu0
      %1916 = vmatprep.mubr.bf16.mxu0 0
      %1917 = vmatmul.mubr.bf16.gmra.mrb[0].mxu0 %v1792
      %v1918 = vpop.f32.mrb[0].mxu0
      %v1919 = vadd.f32 0.0, %v1918
      %v1920 = vpop.f32.mrb[0].mxu0
      %v1921 = vpop.f32.mrb[0].mxu0
      %v1922 = vadd.f32 0.0, %v1921
      %v1923 = vpop.f32.mrb[0].mxu0
      %1924 = vmatprep.mubr.bf16.mxu0 0
      %1925 = vmatmul.mubr.bf16.gmra.mrb[0].mxu0 %v1795
      %v1926 = vpop.f32.mrb[0].mxu0
      %v1927 = vadd.f32 0.0, %v1926
      %v1928 = vpop.f32.mrb[0].mxu0
      %v1929 = vpop.f32.mrb[0].mxu0
      %v1930 = vadd.f32 0.0, %v1929
      %v1931 = vpop.f32.mrb[0].mxu0
      %1932 = vmatprep.mubr.bf16.mxu0 0
      %1933 = vmatmul.mubr.bf16.gmra.mrb[0].mxu0 %v1798
      %v1934 = vpop.f32.mrb[0].mxu0
      %v1935 = vadd.f32 0.0, %v1934
      %v1936 = vpop.f32.mrb[0].mxu0
      %v1937 = vpop.f32.mrb[0].mxu0
      %v1938 = vadd.f32 0.0, %v1937
      %v1939 = vpop.f32.mrb[0].mxu0
      %1940 = vmatprep.mubr.bf16.mxu0 0
      %1941 = vmatmul.mubr.bf16.gmra.mrb[0].mxu0 %v1801
      %v1942 = vpop.f32.mrb[0].mxu0
      %v1943 = vadd.f32 0.0, %v1942
      %v1944 = vpop.f32.mrb[0].mxu0
      %v1945 = vpop.f32.mrb[0].mxu0
      %v1946 = vadd.f32 0.0, %v1945
      %v1947 = vpop.f32.mrb[0].mxu0
      %1948 = vmatprep.mubr.bf16.mxu0 0
      %1949 = vmatmul.mubr.bf16.gmra.mrb[0].mxu0 %v1804
      %v1950 = vpop.f32.mrb[0].mxu0
      %v1951 = vadd.f32 0.0, %v1950
      %v1952 = vpop.f32.mrb[0].mxu0
      %v1953 = vpop.f32.mrb[0].mxu0
      %v1954 = vadd.f32 0.0, %v1953
      %v1955 = vpop.f32.mrb[0].mxu0
      %1956 = vmatprep.mubr.bf16.mxu0 0
      %1957 = vmatmul.mubr.bf16.gmra.mrb[0].mxu0 %v1807
      %v1958 = vpop.f32.mrb[0].mxu0
      %v1959 = vadd.f32 0.0, %v1958
      %v1960 = vpop.f32.mrb[0].mxu0
      %v1961 = vpop.f32.mrb[0].mxu0
      %v1962 = vadd.f32 0.0, %v1961
      %v1963 = vpop.f32.mrb[0].mxu0
      %1964 = vmatprep.mubr.bf16.mxu0 0
      %1965 = vmatmul.mubr.bf16.gmra.mrb[0].mxu0 %v1810
      %v1966 = vpop.f32.mrb[0].mxu0
      %v1967 = vadd.f32 0.0, %v1966
      %v1968 = vpop.f32.mrb[0].mxu0
      %v1969 = vpop.f32.mrb[0].mxu0
      %v1970 = vadd.f32 0.0, %v1969
      %v1971 = vpop.f32.mrb[0].mxu0
      %1972 = vdwg.mxu0
      %v1973 = vadd.f32 %v1675, %v1847
      %v1974 = vadd.f32 %v1676, %v1850
      %v1975 = vadd.f32 %v1677, %v1855
      %v1976 = vadd.f32 %v1678, %v1858
      %v1977 = vadd.f32 %v1679, %v1863
      %v1978 = vadd.f32 %v1680, %v1866
      %v1979 = vadd.f32 %v1681, %v1871
      %v1980 = vadd.f32 %v1682, %v1874
      %v1981 = vadd.f32 %v1683, %v1879
      %v1982 = vadd.f32 %v1684, %v1882
      %v1983 = vadd.f32 %v1685, %v1887
      %v1984 = vadd.f32 %v1686, %v1890
      %v1985 = vadd.f32 %v1687, %v1895
      %v1986 = vadd.f32 %v1688, %v1898
      %v1987 = vadd.f32 %v1689, %v1903
      %v1988 = vadd.f32 %v1690, %v1906
      %v1989 = vadd.f32 %v1691, %v1911
      %v1990 = vadd.f32 %v1692, %v1914
      %v1991 = vadd.f32 %v1693, %v1919
      %v1992 = vadd.f32 %v1694, %v1922
      %v1993 = vadd.f32 %v1695, %v1927
      %v1994 = vadd.f32 %v1696, %v1930
      %v1995 = vadd.f32 %v1697, %v1935
      %v1996 = vadd.f32 %v1698, %v1938
      %v1997 = vadd.f32 %v1699, %v1943
      %v1998 = vadd.f32 %v1700, %v1946
      %v1999 = vadd.f32 %v1701, %v1951
      %v2000 = vadd.f32 %v1702, %v1954
      %v2001 = vadd.f32 %v1703, %v1959
      %v2002 = vadd.f32 %v1704, %v1962
      %v2003 = vadd.f32 %v1705, %v1967
      %v2004 = vadd.f32 %v1706, %v1970
      %s2005 = scalar_lea.vmem %s273, 48
      %v2006 = vld [vmem:[%s2005] sm:$0xff]
      %v2007 = vld [vmem:[%s2005 + $0x8] sm:$0xff]
      %v2008 = vld [vmem:[%s2005 + $0x18] sm:$0xff]
      %v2009 = vld [vmem:[%s2005 + $0x20] sm:$0xff]
      %v2010 = vld [vmem:[%s2005 + $0x30] sm:$0xff]
      %v2011 = vld [vmem:[%s2005 + $0x38] sm:$0xff]
      %v2012 = vld [vmem:[%s2005 + $0x48] sm:$0xff]
      %v2013 = vld [vmem:[%s2005 + $0x50] sm:$0xff]
      %v2014 = vld [vmem:[%s2005 + $0x60] sm:$0xff]
      %v2015 = vld [vmem:[%s2005 + $0x68] sm:$0xff]
      %v2016 = vld [vmem:[%s2005 + $0x78] sm:$0xff]
      %v2017 = vld [vmem:[%s2005 + $0x80] sm:$0xff]
      %v2018 = vld [vmem:[%s2005 + $0x90] sm:$0xff]
      %v2019 = vld [vmem:[%s2005 + $0x98] sm:$0xff]
      %v2020 = vld [vmem:[%s2005 + $0xa8] sm:$0xff]
      %v2021 = vld [vmem:[%s2005 + $0xb0] sm:$0xff]
      %v2022 = vld [vmem:[%s2005 + $0xc0] sm:$0xff]
      %v2023 = vld [vmem:[%s2005 + $0xc8] sm:$0xff]
      %v2024 = vld [vmem:[%s2005 + $0xd8] sm:$0xff]
      %v2025 = vld [vmem:[%s2005 + $0xe0] sm:$0xff]
      %v2026 = vld [vmem:[%s2005 + $0xf0] sm:$0xff]
      %v2027 = vld [vmem:[%s2005 + $0xf8] sm:$0xff]
      %v2028 = vld [vmem:[%s2005 + $0x108] sm:$0xff]
      %v2029 = vld [vmem:[%s2005 + $0x110] sm:$0xff]
      %v2030 = vld [vmem:[%s2005 + $0x120] sm:$0xff]
      %v2031 = vld [vmem:[%s2005 + $0x128] sm:$0xff]
      %v2032 = vld [vmem:[%s2005 + $0x138] sm:$0xff]
      %v2033 = vld [vmem:[%s2005 + $0x140] sm:$0xff]
      %v2034 = vld [vmem:[%s2005 + $0x150] sm:$0xff]
      %v2035 = vld [vmem:[%s2005 + $0x158] sm:$0xff]
      %v2036 = vld [vmem:[%s2005 + $0x168] sm:$0xff]
      %v2037 = vld [vmem:[%s2005 + $0x170] sm:$0xff]
      %v2038 = vpack.c.bf16 %v2007, %v2006
      %v2039 = vpack.c.bf16 %v2009, %v2008
      %v2040 = vpack.c.bf16 %v2011, %v2010
      %v2041 = vpack.c.bf16 %v2013, %v2012
      %v2042 = vpack.c.bf16 %v2015, %v2014
      %v2043 = vpack.c.bf16 %v2017, %v2016
      %v2044 = vpack.c.bf16 %v2019, %v2018
      %v2045 = vpack.c.bf16 %v2021, %v2020
      %v2046 = vpack.c.bf16 %v2023, %v2022
      %v2047 = vpack.c.bf16 %v2025, %v2024
      %v2048 = vpack.c.bf16 %v2027, %v2026
      %v2049 = vpack.c.bf16 %v2029, %v2028
      %v2050 = vpack.c.bf16 %v2031, %v2030
      %v2051 = vpack.c.bf16 %v2033, %v2032
      %v2052 = vpack.c.bf16 %v2035, %v2034
      %v2053 = vpack.c.bf16 %v2037, %v2036
      %s2054 = scalar_lea.vmem %s1, 48
      %v2055 = vld [vmem:[%s2054] sm:$0xf]
      %v2056 = vld [vmem:[%s2054 + $0x4] sm:$0xf]
      %v2059 = vunpack.c.l.b16 %v2055
      %v2060 = vunpack.c.l.b16 %v2056
      %v2061 = vpack.c.b16 %v2060, %v2059
      %v2064 = vsel %vm387, %v2038, 0
      %v2067 = vsel %vm387, %v2039, 0
      %v2070 = vsel %vm387, %v2040, 0
      %v2073 = vsel %vm387, %v2041, 0
      %v2076 = vsel %vm387, %v2042, 0
      %v2079 = vsel %vm387, %v2043, 0
      %v2082 = vsel %vm387, %v2044, 0
      %v2085 = vsel %vm387, %v2045, 0
      %v2088 = vsel %vm387, %v2046, 0
      %v2091 = vsel %vm387, %v2047, 0
      %v2094 = vsel %vm387, %v2048, 0
      %v2097 = vsel %vm387, %v2049, 0
      %v2100 = vsel %vm387, %v2050, 0
      %v2103 = vsel %vm387, %v2051, 0
      %v2106 = vsel %vm387, %v2052, 0
      %v2109 = vsel %vm387, %v2053, 0
      %2111 = vmatprep.subr.bf16.mxu0 0
      %2112 = vmatpush1.bf16.msra.mxu0 %v2061
      %2113 = vmatprep.subr.bf16.mxu0 0
      %2114 = vmatpush1.bf16.msra.mxu0 0
      %2115 = vmatprep.subr.bf16.mxu0 0
      %2116 = vmatpush1.bf16.msra.mxu0 0
      %2117 = vmatprep.subr.bf16.mxu0 0
      %2118 = vmatpush1.bf16.msra.mxu0 0
      %2119 = vmatprep.subr.bf16.mxu0 0
      %2120 = vmatpush1.bf16.msra.mxu0 0
      %2121 = vmatprep.subr.bf16.mxu0 0
      %2122 = vmatpush1.bf16.msra.mxu0 0
      %2123 = vmatprep.subr.bf16.mxu0 0
      %2124 = vmatpush1.bf16.msra.mxu0 0
      %2125 = vmatprep.subr.bf16.mxu0 0
      %2126 = vmatpush1.bf16.msra.mxu0 0
      %2127 = vmatprep.subr.bf16.mxu0 0
      %2128 = vmatpush1.bf16.msra.mxu0 0
      %2129 = vmatprep.subr.bf16.mxu0 0
      %2130 = vmatpush1.bf16.msra.mxu0 0
      %2131 = vmatprep.subr.bf16.mxu0 0
      %2132 = vmatpush1.bf16.msra.mxu0 0
      %2133 = vmatprep.subr.bf16.mxu0 0
      %2134 = vmatpush1.bf16.msra.mxu0 0
      %2135 = vmatprep.subr.bf16.mxu0 0
      %2136 = vmatpush1.bf16.msra.mxu0 0
      %2137 = vmatprep.subr.bf16.mxu0 0
      %2138 = vmatpush1.bf16.msra.mxu0 0
      %2139 = vmatprep.subr.bf16.mxu0 0
      %2140 = vmatpush1.bf16.msra.mxu0 0
      %2141 = vmatprep.subr.bf16.mxu0 0
      %2142 = vmatpush1.bf16.msra.mxu0 0
      %2143 = vmatprep.mubr.bf16.mxu0 0
      %2144 = vmatmul.mubr.bf16.gmra.mrb[0].mxu0 %v2064
      %v2145 = vpop.f32.mrb[0].mxu0
      %v2146 = vadd.f32 0.0, %v2145
      %v2147 = vpop.f32.mrb[0].mxu0
      %v2148 = vpop.f32.mrb[0].mxu0
      %v2149 = vadd.f32 0.0, %v2148
      %v2150 = vpop.f32.mrb[0].mxu0
      %2151 = vmatprep.mubr.bf16.mxu0 0
      %2152 = vmatmul.mubr.bf16.gmra.mrb[0].mxu0 %v2067
      %v2153 = vpop.f32.mrb[0].mxu0
      %v2154 = vadd.f32 0.0, %v2153
      %v2155 = vpop.f32.mrb[0].mxu0
      %v2156 = vpop.f32.mrb[0].mxu0
      %v2157 = vadd.f32 0.0, %v2156
      %v2158 = vpop.f32.mrb[0].mxu0
      %2159 = vmatprep.mubr.bf16.mxu0 0
      %2160 = vmatmul.mubr.bf16.gmra.mrb[0].mxu0 %v2070
      %v2161 = vpop.f32.mrb[0].mxu0
      %v2162 = vadd.f32 0.0, %v2161
      %v2163 = vpop.f32.mrb[0].mxu0
      %v2164 = vpop.f32.mrb[0].mxu0
      %v2165 = vadd.f32 0.0, %v2164
      %v2166 = vpop.f32.mrb[0].mxu0
      %2167 = vmatprep.mubr.bf16.mxu0 0
      %2168 = vmatmul.mubr.bf16.gmra.mrb[0].mxu0 %v2073
      %v2169 = vpop.f32.mrb[0].mxu0
      %v2170 = vadd.f32 0.0, %v2169
      %v2171 = vpop.f32.mrb[0].mxu0
      %v2172 = vpop.f32.mrb[0].mxu0
      %v2173 = vadd.f32 0.0, %v2172
      %v2174 = vpop.f32.mrb[0].mxu0
      %2175 = vmatprep.mubr.bf16.mxu0 0
      %2176 = vmatmul.mubr.bf16.gmra.mrb[0].mxu0 %v2076
      %v2177 = vpop.f32.mrb[0].mxu0
      %v2178 = vadd.f32 0.0, %v2177
      %v2179 = vpop.f32.mrb[0].mxu0
      %v2180 = vpop.f32.mrb[0].mxu0
      %v2181 = vadd.f32 0.0, %v2180
      %v2182 = vpop.f32.mrb[0].mxu0
      %2183 = vmatprep.mubr.bf16.mxu0 0
      %2184 = vmatmul.mubr.bf16.gmra.mrb[0].mxu0 %v2079
      %v2185 = vpop.f32.mrb[0].mxu0
      %v2186 = vadd.f32 0.0, %v2185
      %v2187 = vpop.f32.mrb[0].mxu0
      %v2188 = vpop.f32.mrb[0].mxu0
      %v2189 = vadd.f32 0.0, %v2188
      %v2190 = vpop.f32.mrb[0].mxu0
      %2191 = vmatprep.mubr.bf16.mxu0 0
      %2192 = vmatmul.mubr.bf16.gmra.mrb[0].mxu0 %v2082
      %v2193 = vpop.f32.mrb[0].mxu0
      %v2194 = vadd.f32 0.0, %v2193
      %v2195 = vpop.f32.mrb[0].mxu0
      %v2196 = vpop.f32.mrb[0].mxu0
      %v2197 = vadd.f32 0.0, %v2196
      %v2198 = vpop.f32.mrb[0].mxu0
      %2199 = vmatprep.mubr.bf16.mxu0 0
      %2200 = vmatmul.mubr.bf16.gmra.mrb[0].mxu0 %v2085
      %v2201 = vpop.f32.mrb[0].mxu0
      %v2202 = vadd.f32 0.0, %v2201
      %v2203 = vpop.f32.mrb[0].mxu0
      %v2204 = vpop.f32.mrb[0].mxu0
      %v2205 = vadd.f32 0.0, %v2204
      %v2206 = vpop.f32.mrb[0].mxu0
      %2207 = vmatprep.mubr.bf16.mxu0 0
      %2208 = vmatmul.mubr.bf16.gmra.mrb[0].mxu0 %v2088
      %v2209 = vpop.f32.mrb[0].mxu0
      %v2210 = vadd.f32 0.0, %v2209
      %v2211 = vpop.f32.mrb[0].mxu0
      %v2212 = vpop.f32.mrb[0].mxu0
      %v2213 = vadd.f32 0.0, %v2212
      %v2214 = vpop.f32.mrb[0].mxu0
      %2215 = vmatprep.mubr.bf16.mxu0 0
      %2216 = vmatmul.mubr.bf16.gmra.mrb[0].mxu0 %v2091
      %v2217 = vpop.f32.mrb[0].mxu0
      %v2218 = vadd.f32 0.0, %v2217
      %v2219 = vpop.f32.mrb[0].mxu0
      %v2220 = vpop.f32.mrb[0].mxu0
      %v2221 = vadd.f32 0.0, %v2220
      %v2222 = vpop.f32.mrb[0].mxu0
      %2223 = vmatprep.mubr.bf16.mxu0 0
      %2224 = vmatmul.mubr.bf16.gmra.mrb[0].mxu0 %v2094
      %v2225 = vpop.f32.mrb[0].mxu0
      %v2226 = vadd.f32 0.0, %v2225
      %v2227 = vpop.f32.mrb[0].mxu0
      %v2228 = vpop.f32.mrb[0].mxu0
      %v2229 = vadd.f32 0.0, %v2228
      %v2230 = vpop.f32.mrb[0].mxu0
      %2231 = vmatprep.mubr.bf16.mxu0 0
      %2232 = vmatmul.mubr.bf16.gmra.mrb[0].mxu0 %v2097
      %v2233 = vpop.f32.mrb[0].mxu0
      %v2234 = vadd.f32 0.0, %v2233
      %v2235 = vpop.f32.mrb[0].mxu0
      %v2236 = vpop.f32.mrb[0].mxu0
      %v2237 = vadd.f32 0.0, %v2236
      %v2238 = vpop.f32.mrb[0].mxu0
      %2239 = vmatprep.mubr.bf16.mxu0 0
      %2240 = vmatmul.mubr.bf16.gmra.mrb[0].mxu0 %v2100
      %v2241 = vpop.f32.mrb[0].mxu0
      %v2242 = vadd.f32 0.0, %v2241
      %v2243 = vpop.f32.mrb[0].mxu0
      %v2244 = vpop.f32.mrb[0].mxu0
      %v2245 = vadd.f32 0.0, %v2244
      %v2246 = vpop.f32.mrb[0].mxu0
      %2247 = vmatprep.mubr.bf16.mxu0 0
      %2248 = vmatmul.mubr.bf16.gmra.mrb[0].mxu0 %v2103
      %v2249 = vpop.f32.mrb[0].mxu0
      %v2250 = vadd.f32 0.0, %v2249
      %v2251 = vpop.f32.mrb[0].mxu0
      %v2252 = vpop.f32.mrb[0].mxu0
      %v2253 = vadd.f32 0.0, %v2252
      %v2254 = vpop.f32.mrb[0].mxu0
      %2255 = vmatprep.mubr.bf16.mxu0 0
      %2256 = vmatmul.mubr.bf16.gmra.mrb[0].mxu0 %v2106
      %v2257 = vpop.f32.mrb[0].mxu0
      %v2258 = vadd.f32 0.0, %v2257
      %v2259 = vpop.f32.mrb[0].mxu0
      %v2260 = vpop.f32.mrb[0].mxu0
      %v2261 = vadd.f32 0.0, %v2260
      %v2262 = vpop.f32.mrb[0].mxu0
      %2263 = vmatprep.mubr.bf16.mxu0 0
      %2264 = vmatmul.mubr.bf16.gmra.mrb[0].mxu0 %v2109
      %v2265 = vpop.f32.mrb[0].mxu0
      %v2266 = vadd.f32 0.0, %v2265
      %v2267 = vpop.f32.mrb[0].mxu0
      %v2268 = vpop.f32.mrb[0].mxu0
      %v2269 = vadd.f32 0.0, %v2268
      %v2270 = vpop.f32.mrb[0].mxu0
      %2271 = vdwg.mxu0
      %v2272 = vadd.f32 %v1973, %v2146
      %v2273 = vadd.f32 %v1974, %v2149
      %v2274 = vadd.f32 %v1975, %v2154
      %v2275 = vadd.f32 %v1976, %v2157
      %v2276 = vadd.f32 %v1977, %v2162
      %v2277 = vadd.f32 %v1978, %v2165
      %v2278 = vadd.f32 %v1979, %v2170
      %v2279 = vadd.f32 %v1980, %v2173
      %v2280 = vadd.f32 %v1981, %v2178
      %v2281 = vadd.f32 %v1982, %v2181
      %v2282 = vadd.f32 %v1983, %v2186
      %v2283 = vadd.f32 %v1984, %v2189
      %v2284 = vadd.f32 %v1985, %v2194
      %v2285 = vadd.f32 %v1986, %v2197
      %v2286 = vadd.f32 %v1987, %v2202
      %v2287 = vadd.f32 %v1988, %v2205
      %v2288 = vadd.f32 %v1989, %v2210
      %v2289 = vadd.f32 %v1990, %v2213
      %v2290 = vadd.f32 %v1991, %v2218
      %v2291 = vadd.f32 %v1992, %v2221
      %v2292 = vadd.f32 %v1993, %v2226
      %v2293 = vadd.f32 %v1994, %v2229
      %v2294 = vadd.f32 %v1995, %v2234
      %v2295 = vadd.f32 %v1996, %v2237
      %v2296 = vadd.f32 %v1997, %v2242
      %v2297 = vadd.f32 %v1998, %v2245
      %v2298 = vadd.f32 %v1999, %v2250
      %v2299 = vadd.f32 %v2000, %v2253
      %v2300 = vadd.f32 %v2001, %v2258
      %v2301 = vadd.f32 %v2002, %v2261
      %v2302 = vadd.f32 %v2003, %v2266
      %v2303 = vadd.f32 %v2004, %v2269
      %v2304 = vld [vmem:[%s2005 + $0x1] sm:$0xff]
      %v2305 = vld [vmem:[%s2005 + $0x9] sm:$0xff]
      %v2306 = vld [vmem:[%s2005 + $0x19] sm:$0xff]
      %v2307 = vld [vmem:[%s2005 + $0x21] sm:$0xff]
      %v2308 = vld [vmem:[%s2005 + $0x31] sm:$0xff]
      %v2309 = vld [vmem:[%s2005 + $0x39] sm:$0xff]
      %v2310 = vld [vmem:[%s2005 + $0x49] sm:$0xff]
      %v2311 = vld [vmem:[%s2005 + $0x51] sm:$0xff]
      %v2312 = vld [vmem:[%s2005 + $0x61] sm:$0xff]
      %v2313 = vld [vmem:[%s2005 + $0x69] sm:$0xff]
      %v2314 = vld [vmem:[%s2005 + $0x79] sm:$0xff]
      %v2315 = vld [vmem:[%s2005 + $0x81] sm:$0xff]
      %v2316 = vld [vmem:[%s2005 + $0x91] sm:$0xff]
      %v2317 = vld [vmem:[%s2005 + $0x99] sm:$0xff]
      %v2318 = vld [vmem:[%s2005 + $0xa9] sm:$0xff]
      %v2319 = vld [vmem:[%s2005 + $0xb1] sm:$0xff]
      %v2320 = vld [vmem:[%s2005 + $0xc1] sm:$0xff]
      %v2321 = vld [vmem:[%s2005 + $0xc9] sm:$0xff]
      %v2322 = vld [vmem:[%s2005 + $0xd9] sm:$0xff]
      %v2323 = vld [vmem:[%s2005 + $0xe1] sm:$0xff]
      %v2324 = vld [vmem:[%s2005 + $0xf1] sm:$0xff]
      %v2325 = vld [vmem:[%s2005 + $0xf9] sm:$0xff]
      %v2326 = vld [vmem:[%s2005 + $0x109] sm:$0xff]
      %v2327 = vld [vmem:[%s2005 + $0x111] sm:$0xff]
      %v2328 = vld [vmem:[%s2005 + $0x121] sm:$0xff]
      %v2329 = vld [vmem:[%s2005 + $0x129] sm:$0xff]
      %v2330 = vld [vmem:[%s2005 + $0x139] sm:$0xff]
      %v2331 = vld [vmem:[%s2005 + $0x141] sm:$0xff]
      %v2332 = vld [vmem:[%s2005 + $0x151] sm:$0xff]
      %v2333 = vld [vmem:[%s2005 + $0x159] sm:$0xff]
      %v2334 = vld [vmem:[%s2005 + $0x169] sm:$0xff]
      %v2335 = vld [vmem:[%s2005 + $0x171] sm:$0xff]
      %v2336 = vpack.c.bf16 %v2305, %v2304
      %v2337 = vpack.c.bf16 %v2307, %v2306
      %v2338 = vpack.c.bf16 %v2309, %v2308
      %v2339 = vpack.c.bf16 %v2311, %v2310
      %v2340 = vpack.c.bf16 %v2313, %v2312
      %v2341 = vpack.c.bf16 %v2315, %v2314
      %v2342 = vpack.c.bf16 %v2317, %v2316
      %v2343 = vpack.c.bf16 %v2319, %v2318
      %v2344 = vpack.c.bf16 %v2321, %v2320
      %v2345 = vpack.c.bf16 %v2323, %v2322
      %v2346 = vpack.c.bf16 %v2325, %v2324
      %v2347 = vpack.c.bf16 %v2327, %v2326
      %v2348 = vpack.c.bf16 %v2329, %v2328
      %v2349 = vpack.c.bf16 %v2331, %v2330
      %v2350 = vpack.c.bf16 %v2333, %v2332
      %v2351 = vpack.c.bf16 %v2335, %v2334
      %s2352 = scalar_lea.vmem %s1, 56
      %v2353 = vld [vmem:[%s2352] sm:$0xf]
      %v2354 = vld [vmem:[%s2352 + $0x4] sm:$0xf]
      %v2357 = vunpack.c.l.b16 %v2353
      %v2358 = vunpack.c.l.b16 %v2354
      %v2359 = vpack.c.b16 %v2358, %v2357
      %v2362 = vsel %vm387, %v2336, 0
      %v2365 = vsel %vm387, %v2337, 0
      %v2368 = vsel %vm387, %v2338, 0
      %v2371 = vsel %vm387, %v2339, 0
      %v2374 = vsel %vm387, %v2340, 0
      %v2377 = vsel %vm387, %v2341, 0
      %v2380 = vsel %vm387, %v2342, 0
      %v2383 = vsel %vm387, %v2343, 0
      %v2386 = vsel %vm387, %v2344, 0
      %v2389 = vsel %vm387, %v2345, 0
      %v2392 = vsel %vm387, %v2346, 0
      %v2395 = vsel %vm387, %v2347, 0
      %v2398 = vsel %vm387, %v2348, 0
      %v2401 = vsel %vm387, %v2349, 0
      %v2404 = vsel %vm387, %v2350, 0
      %v2407 = vsel %vm387, %v2351, 0
      %2409 = vmatprep.subr.bf16.mxu0 0
      %2410 = vmatpush1.bf16.msra.mxu0 %v2359
      %2411 = vmatprep.subr.bf16.mxu0 0
      %2412 = vmatpush1.bf16.msra.mxu0 0
      %2413 = vmatprep.subr.bf16.mxu0 0
      %2414 = vmatpush1.bf16.msra.mxu0 0
      %2415 = vmatprep.subr.bf16.mxu0 0
      %2416 = vmatpush1.bf16.msra.mxu0 0
      %2417 = vmatprep.subr.bf16.mxu0 0
      %2418 = vmatpush1.bf16.msra.mxu0 0
      %2419 = vmatprep.subr.bf16.mxu0 0
      %2420 = vmatpush1.bf16.msra.mxu0 0
      %2421 = vmatprep.subr.bf16.mxu0 0
      %2422 = vmatpush1.bf16.msra.mxu0 0
      %2423 = vmatprep.subr.bf16.mxu0 0
      %2424 = vmatpush1.bf16.msra.mxu0 0
      %2425 = vmatprep.subr.bf16.mxu0 0
      %2426 = vmatpush1.bf16.msra.mxu0 0
      %2427 = vmatprep.subr.bf16.mxu0 0
      %2428 = vmatpush1.bf16.msra.mxu0 0
      %2429 = vmatprep.subr.bf16.mxu0 0
      %2430 = vmatpush1.bf16.msra.mxu0 0
      %2431 = vmatprep.subr.bf16.mxu0 0
      %2432 = vmatpush1.bf16.msra.mxu0 0
      %2433 = vmatprep.subr.bf16.mxu0 0
      %2434 = vmatpush1.bf16.msra.mxu0 0
      %2435 = vmatprep.subr.bf16.mxu0 0
      %2436 = vmatpush1.bf16.msra.mxu0 0
      %2437 = vmatprep.subr.bf16.mxu0 0
      %2438 = vmatpush1.bf16.msra.mxu0 0
      %2439 = vmatprep.subr.bf16.mxu0 0
      %2440 = vmatpush1.bf16.msra.mxu0 0
      %2441 = vmatprep.mubr.bf16.mxu0 0
      %2442 = vmatmul.mubr.bf16.gmra.mrb[0].mxu0 %v2362
      %v2443 = vpop.f32.mrb[0].mxu0
      %v2444 = vadd.f32 0.0, %v2443
      %v2445 = vpop.f32.mrb[0].mxu0
      %v2446 = vpop.f32.mrb[0].mxu0
      %v2447 = vadd.f32 0.0, %v2446
      %v2448 = vpop.f32.mrb[0].mxu0
      %2449 = vmatprep.mubr.bf16.mxu0 0
      %2450 = vmatmul.mubr.bf16.gmra.mrb[0].mxu0 %v2365
      %v2451 = vpop.f32.mrb[0].mxu0
      %v2452 = vadd.f32 0.0, %v2451
      %v2453 = vpop.f32.mrb[0].mxu0
      %v2454 = vpop.f32.mrb[0].mxu0
      %v2455 = vadd.f32 0.0, %v2454
      %v2456 = vpop.f32.mrb[0].mxu0
      %2457 = vmatprep.mubr.bf16.mxu0 0
      %2458 = vmatmul.mubr.bf16.gmra.mrb[0].mxu0 %v2368
      %v2459 = vpop.f32.mrb[0].mxu0
      %v2460 = vadd.f32 0.0, %v2459
      %v2461 = vpop.f32.mrb[0].mxu0
      %v2462 = vpop.f32.mrb[0].mxu0
      %v2463 = vadd.f32 0.0, %v2462
      %v2464 = vpop.f32.mrb[0].mxu0
      %2465 = vmatprep.mubr.bf16.mxu0 0
      %2466 = vmatmul.mubr.bf16.gmra.mrb[0].mxu0 %v2371
      %v2467 = vpop.f32.mrb[0].mxu0
      %v2468 = vadd.f32 0.0, %v2467
      %v2469 = vpop.f32.mrb[0].mxu0
      %v2470 = vpop.f32.mrb[0].mxu0
      %v2471 = vadd.f32 0.0, %v2470
      %v2472 = vpop.f32.mrb[0].mxu0
      %2473 = vmatprep.mubr.bf16.mxu0 0
      %2474 = vmatmul.mubr.bf16.gmra.mrb[0].mxu0 %v2374
      %v2475 = vpop.f32.mrb[0].mxu0
      %v2476 = vadd.f32 0.0, %v2475
      %v2477 = vpop.f32.mrb[0].mxu0
      %v2478 = vpop.f32.mrb[0].mxu0
      %v2479 = vadd.f32 0.0, %v2478
      %v2480 = vpop.f32.mrb[0].mxu0
      %2481 = vmatprep.mubr.bf16.mxu0 0
      %2482 = vmatmul.mubr.bf16.gmra.mrb[0].mxu0 %v2377
      %v2483 = vpop.f32.mrb[0].mxu0
      %v2484 = vadd.f32 0.0, %v2483
      %v2485 = vpop.f32.mrb[0].mxu0
      %v2486 = vpop.f32.mrb[0].mxu0
      %v2487 = vadd.f32 0.0, %v2486
      %v2488 = vpop.f32.mrb[0].mxu0
      %2489 = vmatprep.mubr.bf16.mxu0 0
      %2490 = vmatmul.mubr.bf16.gmra.mrb[0].mxu0 %v2380
      %v2491 = vpop.f32.mrb[0].mxu0
      %v2492 = vadd.f32 0.0, %v2491
      %v2493 = vpop.f32.mrb[0].mxu0
      %v2494 = vpop.f32.mrb[0].mxu0
      %v2495 = vadd.f32 0.0, %v2494
      %v2496 = vpop.f32.mrb[0].mxu0
      %2497 = vmatprep.mubr.bf16.mxu0 0
      %2498 = vmatmul.mubr.bf16.gmra.mrb[0].mxu0 %v2383
      %v2499 = vpop.f32.mrb[0].mxu0
      %v2500 = vadd.f32 0.0, %v2499
      %v2501 = vpop.f32.mrb[0].mxu0
      %v2502 = vpop.f32.mrb[0].mxu0
      %v2503 = vadd.f32 0.0, %v2502
      %v2504 = vpop.f32.mrb[0].mxu0
      %2505 = vmatprep.mubr.bf16.mxu0 0
      %2506 = vmatmul.mubr.bf16.gmra.mrb[0].mxu0 %v2386
      %v2507 = vpop.f32.mrb[0].mxu0
      %v2508 = vadd.f32 0.0, %v2507
      %v2509 = vpop.f32.mrb[0].mxu0
      %v2510 = vpop.f32.mrb[0].mxu0
      %v2511 = vadd.f32 0.0, %v2510
      %v2512 = vpop.f32.mrb[0].mxu0
      %2513 = vmatprep.mubr.bf16.mxu0 0
      %2514 = vmatmul.mubr.bf16.gmra.mrb[0].mxu0 %v2389
      %v2515 = vpop.f32.mrb[0].mxu0
      %v2516 = vadd.f32 0.0, %v2515
      %v2517 = vpop.f32.mrb[0].mxu0
      %v2518 = vpop.f32.mrb[0].mxu0
      %v2519 = vadd.f32 0.0, %v2518
      %v2520 = vpop.f32.mrb[0].mxu0
      %2521 = vmatprep.mubr.bf16.mxu0 0
      %2522 = vmatmul.mubr.bf16.gmra.mrb[0].mxu0 %v2392
      %v2523 = vpop.f32.mrb[0].mxu0
      %v2524 = vadd.f32 0.0, %v2523
      %v2525 = vpop.f32.mrb[0].mxu0
      %v2526 = vpop.f32.mrb[0].mxu0
      %v2527 = vadd.f32 0.0, %v2526
      %v2528 = vpop.f32.mrb[0].mxu0
      %2529 = vmatprep.mubr.bf16.mxu0 0
      %2530 = vmatmul.mubr.bf16.gmra.mrb[0].mxu0 %v2395
      %v2531 = vpop.f32.mrb[0].mxu0
      %v2532 = vadd.f32 0.0, %v2531
      %v2533 = vpop.f32.mrb[0].mxu0
      %v2534 = vpop.f32.mrb[0].mxu0
      %v2535 = vadd.f32 0.0, %v2534
      %v2536 = vpop.f32.mrb[0].mxu0
      %2537 = vmatprep.mubr.bf16.mxu0 0
      %2538 = vmatmul.mubr.bf16.gmra.mrb[0].mxu0 %v2398
      %v2539 = vpop.f32.mrb[0].mxu0
      %v2540 = vadd.f32 0.0, %v2539
      %v2541 = vpop.f32.mrb[0].mxu0
      %v2542 = vpop.f32.mrb[0].mxu0
      %v2543 = vadd.f32 0.0, %v2542
      %v2544 = vpop.f32.mrb[0].mxu0
      %2545 = vmatprep.mubr.bf16.mxu0 0
      %2546 = vmatmul.mubr.bf16.gmra.mrb[0].mxu0 %v2401
      %v2547 = vpop.f32.mrb[0].mxu0
      %v2548 = vadd.f32 0.0, %v2547
      %v2549 = vpop.f32.mrb[0].mxu0
      %v2550 = vpop.f32.mrb[0].mxu0
      %v2551 = vadd.f32 0.0, %v2550
      %v2552 = vpop.f32.mrb[0].mxu0
      %2553 = vmatprep.mubr.bf16.mxu0 0
      %2554 = vmatmul.mubr.bf16.gmra.mrb[0].mxu0 %v2404
      %v2555 = vpop.f32.mrb[0].mxu0
      %v2556 = vadd.f32 0.0, %v2555
      %v2557 = vpop.f32.mrb[0].mxu0
      %v2558 = vpop.f32.mrb[0].mxu0
      %v2559 = vadd.f32 0.0, %v2558
      %v2560 = vpop.f32.mrb[0].mxu0
      %2561 = vmatprep.mubr.bf16.mxu0 0
      %2562 = vmatmul.mubr.bf16.gmra.mrb[0].mxu0 %v2407
      %v2563 = vpop.f32.mrb[0].mxu0
      %v2564 = vadd.f32 0.0, %v2563
      %v2565 = vpop.f32.mrb[0].mxu0
      %v2566 = vpop.f32.mrb[0].mxu0
      %v2567 = vadd.f32 0.0, %v2566
      %v2568 = vpop.f32.mrb[0].mxu0
      %2569 = vdwg.mxu0
      %v2570 = vadd.f32 %v2272, %v2444
      %v2571 = vadd.f32 %v2273, %v2447
      %v2572 = vadd.f32 %v2274, %v2452
      %v2573 = vadd.f32 %v2275, %v2455
      %v2574 = vadd.f32 %v2276, %v2460
      %v2575 = vadd.f32 %v2277, %v2463
      %v2576 = vadd.f32 %v2278, %v2468
      %v2577 = vadd.f32 %v2279, %v2471
      %v2578 = vadd.f32 %v2280, %v2476
      %v2579 = vadd.f32 %v2281, %v2479
      %v2580 = vadd.f32 %v2282, %v2484
      %v2581 = vadd.f32 %v2283, %v2487
      %v2582 = vadd.f32 %v2284, %v2492
      %v2583 = vadd.f32 %v2285, %v2495
      %v2584 = vadd.f32 %v2286, %v2500
      %v2585 = vadd.f32 %v2287, %v2503
      %v2586 = vadd.f32 %v2288, %v2508
      %v2587 = vadd.f32 %v2289, %v2511
      %v2588 = vadd.f32 %v2290, %v2516
      %v2589 = vadd.f32 %v2291, %v2519
      %v2590 = vadd.f32 %v2292, %v2524
      %v2591 = vadd.f32 %v2293, %v2527
      %v2592 = vadd.f32 %v2294, %v2532
      %v2593 = vadd.f32 %v2295, %v2535
      %v2594 = vadd.f32 %v2296, %v2540
      %v2595 = vadd.f32 %v2297, %v2543
      %v2596 = vadd.f32 %v2298, %v2548
      %v2597 = vadd.f32 %v2299, %v2551
      %v2598 = vadd.f32 %v2300, %v2556
      %v2599 = vadd.f32 %v2301, %v2559
      %v2600 = vadd.f32 %v2302, %v2564
      %v2601 = vadd.f32 %v2303, %v2567
      %v2602 = vld [vmem:[%s2005 + $0x2] sm:$0xff]
      %v2603 = vld [vmem:[%s2005 + $0xa] sm:$0xff]
      %v2604 = vld [vmem:[%s2005 + $0x1a] sm:$0xff]
      %v2605 = vld [vmem:[%s2005 + $0x22] sm:$0xff]
      %v2606 = vld [vmem:[%s2005 + $0x32] sm:$0xff]
      %v2607 = vld [vmem:[%s2005 + $0x3a] sm:$0xff]
      %v2608 = vld [vmem:[%s2005 + $0x4a] sm:$0xff]
      %v2609 = vld [vmem:[%s2005 + $0x52] sm:$0xff]
      %v2610 = vld [vmem:[%s2005 + $0x62] sm:$0xff]
      %v2611 = vld [vmem:[%s2005 + $0x6a] sm:$0xff]
      %v2612 = vld [vmem:[%s2005 + $0x7a] sm:$0xff]
      %v2613 = vld [vmem:[%s2005 + $0x82] sm:$0xff]
      %v2614 = vld [vmem:[%s2005 + $0x92] sm:$0xff]
      %v2615 = vld [vmem:[%s2005 + $0x9a] sm:$0xff]
      %v2616 = vld [vmem:[%s2005 + $0xaa] sm:$0xff]
      %v2617 = vld [vmem:[%s2005 + $0xb2] sm:$0xff]
      %v2618 = vld [vmem:[%s2005 + $0xc2] sm:$0xff]
      %v2619 = vld [vmem:[%s2005 + $0xca] sm:$0xff]
      %v2620 = vld [vmem:[%s2005 + $0xda] sm:$0xff]
      %v2621 = vld [vmem:[%s2005 + $0xe2] sm:$0xff]
      %v2622 = vld [vmem:[%s2005 + $0xf2] sm:$0xff]
      %v2623 = vld [vmem:[%s2005 + $0xfa] sm:$0xff]
      %v2624 = vld [vmem:[%s2005 + $0x10a] sm:$0xff]
      %v2625 = vld [vmem:[%s2005 + $0x112] sm:$0xff]
      %v2626 = vld [vmem:[%s2005 + $0x122] sm:$0xff]
      %v2627 = vld [vmem:[%s2005 + $0x12a] sm:$0xff]
      %v2628 = vld [vmem:[%s2005 + $0x13a] sm:$0xff]
      %v2629 = vld [vmem:[%s2005 + $0x142] sm:$0xff]
      %v2630 = vld [vmem:[%s2005 + $0x152] sm:$0xff]
      %v2631 = vld [vmem:[%s2005 + $0x15a] sm:$0xff]
      %v2632 = vld [vmem:[%s2005 + $0x16a] sm:$0xff]
      %v2633 = vld [vmem:[%s2005 + $0x172] sm:$0xff]
      %v2634 = vpack.c.bf16 %v2603, %v2602
      %v2635 = vpack.c.bf16 %v2605, %v2604
      %v2636 = vpack.c.bf16 %v2607, %v2606
      %v2637 = vpack.c.bf16 %v2609, %v2608
      %v2638 = vpack.c.bf16 %v2611, %v2610
      %v2639 = vpack.c.bf16 %v2613, %v2612
      %v2640 = vpack.c.bf16 %v2615, %v2614
      %v2641 = vpack.c.bf16 %v2617, %v2616
      %v2642 = vpack.c.bf16 %v2619, %v2618
      %v2643 = vpack.c.bf16 %v2621, %v2620
      %v2644 = vpack.c.bf16 %v2623, %v2622
      %v2645 = vpack.c.bf16 %v2625, %v2624
      %v2646 = vpack.c.bf16 %v2627, %v2626
      %v2647 = vpack.c.bf16 %v2629, %v2628
      %v2648 = vpack.c.bf16 %v2631, %v2630
      %v2649 = vpack.c.bf16 %v2633, %v2632
      %s2650 = scalar_lea.vmem %s1, 64
      %v2651 = vld [vmem:[%s2650] sm:$0xf]
      %v2652 = vld [vmem:[%s2650 + $0x4] sm:$0xf]
      %v2655 = vunpack.c.l.b16 %v2651
      %v2656 = vunpack.c.l.b16 %v2652
      %v2657 = vpack.c.b16 %v2656, %v2655
      %v2660 = vsel %vm387, %v2634, 0
      %v2663 = vsel %vm387, %v2635, 0
      %v2666 = vsel %vm387, %v2636, 0
      %v2669 = vsel %vm387, %v2637, 0
      %v2672 = vsel %vm387, %v2638, 0
      %v2675 = vsel %vm387, %v2639, 0
      %v2678 = vsel %vm387, %v2640, 0
      %v2681 = vsel %vm387, %v2641, 0
      %v2684 = vsel %vm387, %v2642, 0
      %v2687 = vsel %vm387, %v2643, 0
      %v2690 = vsel %vm387, %v2644, 0
      %v2693 = vsel %vm387, %v2645, 0
      %v2696 = vsel %vm387, %v2646, 0
      %v2699 = vsel %vm387, %v2647, 0
      %v2702 = vsel %vm387, %v2648, 0
      %v2705 = vsel %vm387, %v2649, 0
      %2707 = vmatprep.subr.bf16.mxu0 0
      %2708 = vmatpush1.bf16.msra.mxu0 %v2657
      %2709 = vmatprep.subr.bf16.mxu0 0
      %2710 = vmatpush1.bf16.msra.mxu0 0
      %2711 = vmatprep.subr.bf16.mxu0 0
      %2712 = vmatpush1.bf16.msra.mxu0 0
      %2713 = vmatprep.subr.bf16.mxu0 0
      %2714 = vmatpush1.bf16.msra.mxu0 0
      %2715 = vmatprep.subr.bf16.mxu0 0
      %2716 = vmatpush1.bf16.msra.mxu0 0
      %2717 = vmatprep.subr.bf16.mxu0 0
      %2718 = vmatpush1.bf16.msra.mxu0 0
      %2719 = vmatprep.subr.bf16.mxu0 0
      %2720 = vmatpush1.bf16.msra.mxu0 0
      %2721 = vmatprep.subr.bf16.mxu0 0
      %2722 = vmatpush1.bf16.msra.mxu0 0
      %2723 = vmatprep.subr.bf16.mxu0 0
      %2724 = vmatpush1.bf16.msra.mxu0 0
      %2725 = vmatprep.subr.bf16.mxu0 0
      %2726 = vmatpush1.bf16.msra.mxu0 0
      %2727 = vmatprep.subr.bf16.mxu0 0
      %2728 = vmatpush1.bf16.msra.mxu0 0
      %2729 = vmatprep.subr.bf16.mxu0 0
      %2730 = vmatpush1.bf16.msra.mxu0 0
      %2731 = vmatprep.subr.bf16.mxu0 0
      %2732 = vmatpush1.bf16.msra.mxu0 0
      %2733 = vmatprep.subr.bf16.mxu0 0
      %2734 = vmatpush1.bf16.msra.mxu0 0
      %2735 = vmatprep.subr.bf16.mxu0 0
      %2736 = vmatpush1.bf16.msra.mxu0 0
      %2737 = vmatprep.subr.bf16.mxu0 0
      %2738 = vmatpush1.bf16.msra.mxu0 0
      %2739 = vmatprep.mubr.bf16.mxu0 0
      %2740 = vmatmul.mubr.bf16.gmra.mrb[0].mxu0 %v2660
      %v2741 = vpop.f32.mrb[0].mxu0
      %v2742 = vadd.f32 0.0, %v2741
      %v2743 = vpop.f32.mrb[0].mxu0
      %v2744 = vpop.f32.mrb[0].mxu0
      %v2745 = vadd.f32 0.0, %v2744
      %v2746 = vpop.f32.mrb[0].mxu0
      %2747 = vmatprep.mubr.bf16.mxu0 0
      %2748 = vmatmul.mubr.bf16.gmra.mrb[0].mxu0 %v2663
      %v2749 = vpop.f32.mrb[0].mxu0
      %v2750 = vadd.f32 0.0, %v2749
      %v2751 = vpop.f32.mrb[0].mxu0
      %v2752 = vpop.f32.mrb[0].mxu0
      %v2753 = vadd.f32 0.0, %v2752
      %v2754 = vpop.f32.mrb[0].mxu0
      %2755 = vmatprep.mubr.bf16.mxu0 0
      %2756 = vmatmul.mubr.bf16.gmra.mrb[0].mxu0 %v2666
      %v2757 = vpop.f32.mrb[0].mxu0
      %v2758 = vadd.f32 0.0, %v2757
      %v2759 = vpop.f32.mrb[0].mxu0
      %v2760 = vpop.f32.mrb[0].mxu0
      %v2761 = vadd.f32 0.0, %v2760
      %v2762 = vpop.f32.mrb[0].mxu0
      %2763 = vmatprep.mubr.bf16.mxu0 0
      %2764 = vmatmul.mubr.bf16.gmra.mrb[0].mxu0 %v2669
      %v2765 = vpop.f32.mrb[0].mxu0
      %v2766 = vadd.f32 0.0, %v2765
      %v2767 = vpop.f32.mrb[0].mxu0
      %v2768 = vpop.f32.mrb[0].mxu0
      %v2769 = vadd.f32 0.0, %v2768
      %v2770 = vpop.f32.mrb[0].mxu0
      %2771 = vmatprep.mubr.bf16.mxu0 0
      %2772 = vmatmul.mubr.bf16.gmra.mrb[0].mxu0 %v2672
      %v2773 = vpop.f32.mrb[0].mxu0
      %v2774 = vadd.f32 0.0, %v2773
      %v2775 = vpop.f32.mrb[0].mxu0
      %v2776 = vpop.f32.mrb[0].mxu0
      %v2777 = vadd.f32 0.0, %v2776
      %v2778 = vpop.f32.mrb[0].mxu0
      %2779 = vmatprep.mubr.bf16.mxu0 0
      %2780 = vmatmul.mubr.bf16.gmra.mrb[0].mxu0 %v2675
      %v2781 = vpop.f32.mrb[0].mxu0
      %v2782 = vadd.f32 0.0, %v2781
      %v2783 = vpop.f32.mrb[0].mxu0
      %v2784 = vpop.f32.mrb[0].mxu0
      %v2785 = vadd.f32 0.0, %v2784
      %v2786 = vpop.f32.mrb[0].mxu0
      %2787 = vmatprep.mubr.bf16.mxu0 0
      %2788 = vmatmul.mubr.bf16.gmra.mrb[0].mxu0 %v2678
      %v2789 = vpop.f32.mrb[0].mxu0
      %v2790 = vadd.f32 0.0, %v2789
      %v2791 = vpop.f32.mrb[0].mxu0
      %v2792 = vpop.f32.mrb[0].mxu0
      %v2793 = vadd.f32 0.0, %v2792
      %v2794 = vpop.f32.mrb[0].mxu0
      %2795 = vmatprep.mubr.bf16.mxu0 0
      %2796 = vmatmul.mubr.bf16.gmra.mrb[0].mxu0 %v2681
      %v2797 = vpop.f32.mrb[0].mxu0
      %v2798 = vadd.f32 0.0, %v2797
      %v2799 = vpop.f32.mrb[0].mxu0
      %v2800 = vpop.f32.mrb[0].mxu0
      %v2801 = vadd.f32 0.0, %v2800
      %v2802 = vpop.f32.mrb[0].mxu0
      %2803 = vmatprep.mubr.bf16.mxu0 0
      %2804 = vmatmul.mubr.bf16.gmra.mrb[0].mxu0 %v2684
      %v2805 = vpop.f32.mrb[0].mxu0
      %v2806 = vadd.f32 0.0, %v2805
      %v2807 = vpop.f32.mrb[0].mxu0
      %v2808 = vpop.f32.mrb[0].mxu0
      %v2809 = vadd.f32 0.0, %v2808
      %v2810 = vpop.f32.mrb[0].mxu0
      %2811 = vmatprep.mubr.bf16.mxu0 0
      %2812 = vmatmul.mubr.bf16.gmra.mrb[0].mxu0 %v2687
      %v2813 = vpop.f32.mrb[0].mxu0
      %v2814 = vadd.f32 0.0, %v2813
      %v2815 = vpop.f32.mrb[0].mxu0
      %v2816 = vpop.f32.mrb[0].mxu0
      %v2817 = vadd.f32 0.0, %v2816
      %v2818 = vpop.f32.mrb[0].mxu0
      %2819 = vmatprep.mubr.bf16.mxu0 0
      %2820 = vmatmul.mubr.bf16.gmra.mrb[0].mxu0 %v2690
      %v2821 = vpop.f32.mrb[0].mxu0
      %v2822 = vadd.f32 0.0, %v2821
      %v2823 = vpop.f32.mrb[0].mxu0
      %v2824 = vpop.f32.mrb[0].mxu0
      %v2825 = vadd.f32 0.0, %v2824
      %v2826 = vpop.f32.mrb[0].mxu0
      %2827 = vmatprep.mubr.bf16.mxu0 0
      %2828 = vmatmul.mubr.bf16.gmra.mrb[0].mxu0 %v2693
      %v2829 = vpop.f32.mrb[0].mxu0
      %v2830 = vadd.f32 0.0, %v2829
      %v2831 = vpop.f32.mrb[0].mxu0
      %v2832 = vpop.f32.mrb[0].mxu0
      %v2833 = vadd.f32 0.0, %v2832
      %v2834 = vpop.f32.mrb[0].mxu0
      %2835 = vmatprep.mubr.bf16.mxu0 0
      %2836 = vmatmul.mubr.bf16.gmra.mrb[0].mxu0 %v2696
      %v2837 = vpop.f32.mrb[0].mxu0
      %v2838 = vadd.f32 0.0, %v2837
      %v2839 = vpop.f32.mrb[0].mxu0
      %v2840 = vpop.f32.mrb[0].mxu0
      %v2841 = vadd.f32 0.0, %v2840
      %v2842 = vpop.f32.mrb[0].mxu0
      %2843 = vmatprep.mubr.bf16.mxu0 0
      %2844 = vmatmul.mubr.bf16.gmra.mrb[0].mxu0 %v2699
      %v2845 = vpop.f32.mrb[0].mxu0
      %v2846 = vadd.f32 0.0, %v2845
      %v2847 = vpop.f32.mrb[0].mxu0
      %v2848 = vpop.f32.mrb[0].mxu0
      %v2849 = vadd.f32 0.0, %v2848
      %v2850 = vpop.f32.mrb[0].mxu0
      %2851 = vmatprep.mubr.bf16.mxu0 0
      %2852 = vmatmul.mubr.bf16.gmra.mrb[0].mxu0 %v2702
      %v2853 = vpop.f32.mrb[0].mxu0
      %v2854 = vadd.f32 0.0, %v2853
      %v2855 = vpop.f32.mrb[0].mxu0
      %v2856 = vpop.f32.mrb[0].mxu0
      %v2857 = vadd.f32 0.0, %v2856
      %v2858 = vpop.f32.mrb[0].mxu0
      %2859 = vmatprep.mubr.bf16.mxu0 0
      %2860 = vmatmul.mubr.bf16.gmra.mrb[0].mxu0 %v2705
      %v2861 = vpop.f32.mrb[0].mxu0
      %v2862 = vadd.f32 0.0, %v2861
      %v2863 = vpop.f32.mrb[0].mxu0
      %v2864 = vpop.f32.mrb[0].mxu0
      %v2865 = vadd.f32 0.0, %v2864
      %v2866 = vpop.f32.mrb[0].mxu0
      %2867 = vdwg.mxu0
      %v2868 = vadd.f32 %v2570, %v2742
      %v2869 = vadd.f32 %v2571, %v2745
      %v2870 = vadd.f32 %v2572, %v2750
      %v2871 = vadd.f32 %v2573, %v2753
      %v2872 = vadd.f32 %v2574, %v2758
      %v2873 = vadd.f32 %v2575, %v2761
      %v2874 = vadd.f32 %v2576, %v2766
      %v2875 = vadd.f32 %v2577, %v2769
      %v2876 = vadd.f32 %v2578, %v2774
      %v2877 = vadd.f32 %v2579, %v2777
      %v2878 = vadd.f32 %v2580, %v2782
      %v2879 = vadd.f32 %v2581, %v2785
      %v2880 = vadd.f32 %v2582, %v2790
      %v2881 = vadd.f32 %v2583, %v2793
      %v2882 = vadd.f32 %v2584, %v2798
      %v2883 = vadd.f32 %v2585, %v2801
      %v2884 = vadd.f32 %v2586, %v2806
      %v2885 = vadd.f32 %v2587, %v2809
      %v2886 = vadd.f32 %v2588, %v2814
      %v2887 = vadd.f32 %v2589, %v2817
      %v2888 = vadd.f32 %v2590, %v2822
      %v2889 = vadd.f32 %v2591, %v2825
      %v2890 = vadd.f32 %v2592, %v2830
      %v2891 = vadd.f32 %v2593, %v2833
      %v2892 = vadd.f32 %v2594, %v2838
      %v2893 = vadd.f32 %v2595, %v2841
      %v2894 = vadd.f32 %v2596, %v2846
      %v2895 = vadd.f32 %v2597, %v2849
      %v2896 = vadd.f32 %v2598, %v2854
      %v2897 = vadd.f32 %v2599, %v2857
      %v2898 = vadd.f32 %v2600, %v2862
      %v2899 = vadd.f32 %v2601, %v2865
      %v2900 = vld [vmem:[%s2] sm:$0x1]
      %v2902 = vlaneseq
      %v2903 = vshrl.u32 %v2902, 7
      %v2904 = vsub.s32 0, %v2903
      %v2905 = vrot.slane %v2900, %v2904
      %v2907 = vmul.f32 %v2868, %v2905
      %v2908 = vmul.f32 %v2869, %v2905
      %v2909 = vmul.f32 %v2870, %v2905
      %v2910 = vmul.f32 %v2871, %v2905
      %v2911 = vmul.f32 %v2872, %v2905
      %v2912 = vmul.f32 %v2873, %v2905
      %v2913 = vmul.f32 %v2874, %v2905
      %v2914 = vmul.f32 %v2875, %v2905
      %v2915 = vmul.f32 %v2876, %v2905
      %v2916 = vmul.f32 %v2877, %v2905
      %v2917 = vmul.f32 %v2878, %v2905
      %v2918 = vmul.f32 %v2879, %v2905
      %v2919 = vmul.f32 %v2880, %v2905
      %v2920 = vmul.f32 %v2881, %v2905
      %v2921 = vmul.f32 %v2882, %v2905
      %v2922 = vmul.f32 %v2883, %v2905
      %v2923 = vmul.f32 %v2884, %v2905
      %v2924 = vmul.f32 %v2885, %v2905
      %v2925 = vmul.f32 %v2886, %v2905
      %v2926 = vmul.f32 %v2887, %v2905
      %v2927 = vmul.f32 %v2888, %v2905
      %v2928 = vmul.f32 %v2889, %v2905
      %v2929 = vmul.f32 %v2890, %v2905
      %v2930 = vmul.f32 %v2891, %v2905
      %v2931 = vmul.f32 %v2892, %v2905
      %v2932 = vmul.f32 %v2893, %v2905
      %v2933 = vmul.f32 %v2894, %v2905
      %v2934 = vmul.f32 %v2895, %v2905
      %v2935 = vmul.f32 %v2896, %v2905
      %v2936 = vmul.f32 %v2897, %v2905
      %v2937 = vmul.f32 %v2898, %v2905
      %v2938 = vmul.f32 %v2899, %v2905
      %v2939 = vld [vmem:[%s3] sm:$0x1]
      %v2941 = vlaneseq
      %v2942 = vshrl.u32 %v2941, 7
      %v2943 = vsub.s32 0, %v2942
      %v2944 = vrot.slane %v2939, %v2943
      %v2946 = vadd.f32 %v2907, %v2944
      %v2947 = vadd.f32 %v2908, %v2944
      %v2948 = vadd.f32 %v2909, %v2944
      %v2949 = vadd.f32 %v2910, %v2944
      %v2950 = vadd.f32 %v2911, %v2944
      %v2951 = vadd.f32 %v2912, %v2944
      %v2952 = vadd.f32 %v2913, %v2944
      %v2953 = vadd.f32 %v2914, %v2944
      %v2954 = vadd.f32 %v2915, %v2944
      %v2955 = vadd.f32 %v2916, %v2944
      %v2956 = vadd.f32 %v2917, %v2944
      %v2957 = vadd.f32 %v2918, %v2944
      %v2958 = vadd.f32 %v2919, %v2944
      %v2959 = vadd.f32 %v2920, %v2944
      %v2960 = vadd.f32 %v2921, %v2944
      %v2961 = vadd.f32 %v2922, %v2944
      %v2962 = vadd.f32 %v2923, %v2944
      %v2963 = vadd.f32 %v2924, %v2944
      %v2964 = vadd.f32 %v2925, %v2944
      %v2965 = vadd.f32 %v2926, %v2944
      %v2966 = vadd.f32 %v2927, %v2944
      %v2967 = vadd.f32 %v2928, %v2944
      %v2968 = vadd.f32 %v2929, %v2944
      %v2969 = vadd.f32 %v2930, %v2944
      %v2970 = vadd.f32 %v2931, %v2944
      %v2971 = vadd.f32 %v2932, %v2944
      %v2972 = vadd.f32 %v2933, %v2944
      %v2973 = vadd.f32 %v2934, %v2944
      %v2974 = vadd.f32 %v2935, %v2944
      %v2975 = vadd.f32 %v2936, %v2944
      %v2976 = vadd.f32 %v2937, %v2944
      %v2977 = vadd.f32 %v2938, %v2944
      %v2978 = vmax.f32 %v2946, 0.0
      %v2979 = vmax.f32 %v2947, 0.0
      %v2980 = vmax.f32 %v2948, 0.0
      %v2981 = vmax.f32 %v2949, 0.0
      %v2982 = vmax.f32 %v2950, 0.0
      %v2983 = vmax.f32 %v2951, 0.0
      %v2984 = vmax.f32 %v2952, 0.0
      %v2985 = vmax.f32 %v2953, 0.0
      %v2986 = vmax.f32 %v2954, 0.0
      %v2987 = vmax.f32 %v2955, 0.0
      %v2988 = vmax.f32 %v2956, 0.0
      %v2989 = vmax.f32 %v2957, 0.0
      %v2990 = vmax.f32 %v2958, 0.0
      %v2991 = vmax.f32 %v2959, 0.0
      %v2992 = vmax.f32 %v2960, 0.0
      %v2993 = vmax.f32 %v2961, 0.0
      %v2994 = vmax.f32 %v2962, 0.0
      %v2995 = vmax.f32 %v2963, 0.0
      %v2996 = vmax.f32 %v2964, 0.0
      %v2997 = vmax.f32 %v2965, 0.0
      %v2998 = vmax.f32 %v2966, 0.0
      %v2999 = vmax.f32 %v2967, 0.0
      %v3000 = vmax.f32 %v2968, 0.0
      %v3001 = vmax.f32 %v2969, 0.0
      %v3002 = vmax.f32 %v2970, 0.0
      %v3003 = vmax.f32 %v2971, 0.0
      %v3004 = vmax.f32 %v2972, 0.0
      %v3005 = vmax.f32 %v2973, 0.0
      %v3006 = vmax.f32 %v2974, 0.0
      %v3007 = vmax.f32 %v2975, 0.0
      %v3008 = vmax.f32 %v2976, 0.0
      %v3009 = vmax.f32 %v2977, 0.0
      %3010 = vst.msk [vmem:[#allocation2] sm:$0xff] %vm387, 0.0
      %3011 = vst.msk [vmem:[#allocation2 + $0x8] sm:$0xff] %vm387, 0.0
      %vm3012 = vcmask 123904
      %3013 = vst.msk [vmem:[#allocation2 + $0x10] sm:$0x3] %vm3012, 0.0
      %3014 = vst.msk [vmem:[#allocation2 + $0x18] sm:$0xff] %vm387, 0.0
      %3015 = vst.msk [vmem:[#allocation2 + $0x20] sm:$0xff] %vm387, 0.0
      %3016 = vst.msk [vmem:[#allocation2 + $0x28] sm:$0x3] %vm3012, 0.0
      %3017 = vst.msk [vmem:[#allocation2 + $0x30] sm:$0xff] %vm387, 0.0
      %3018 = vst.msk [vmem:[#allocation2 + $0x38] sm:$0xff] %vm387, 0.0
      %3019 = vst.msk [vmem:[#allocation2 + $0x40] sm:$0x3] %vm3012, 0.0
      %3020 = vst.msk [vmem:[#allocation2 + $0x48] sm:$0xff] %vm387, 0.0
      %3021 = vst.msk [vmem:[#allocation2 + $0x50] sm:$0xff] %vm387, 0.0
      %3022 = vst.msk [vmem:[#allocation2 + $0x58] sm:$0x3] %vm3012, 0.0
      %3023 = vst.msk [vmem:[#allocation2 + $0x60] sm:$0xff] %vm387, 0.0
      %3024 = vst.msk [vmem:[#allocation2 + $0x68] sm:$0xff] %vm387, 0.0
      %3025 = vst.msk [vmem:[#allocation2 + $0x70] sm:$0x3] %vm3012, 0.0
      %3026 = vst.msk [vmem:[#allocation2 + $0x78] sm:$0xff] %vm387, 0.0
      %3027 = vst.msk [vmem:[#allocation2 + $0x80] sm:$0xff] %vm387, 0.0
      %3028 = vst.msk [vmem:[#allocation2 + $0x88] sm:$0x3] %vm3012, 0.0
      %3029 = vst.msk [vmem:[#allocation2 + $0x90] sm:$0xff] %vm387, 0.0
      %3030 = vst.msk [vmem:[#allocation2 + $0x98] sm:$0xff] %vm387, 0.0
      %3031 = vst.msk [vmem:[#allocation2 + $0xa0] sm:$0x3] %vm3012, 0.0
      %3032 = vst.msk [vmem:[#allocation2 + $0xa8] sm:$0xff] %vm387, 0.0
      %3033 = vst.msk [vmem:[#allocation2 + $0xb0] sm:$0xff] %vm387, 0.0
      %3034 = vst.msk [vmem:[#allocation2 + $0xb8] sm:$0x3] %vm3012, 0.0
      %3035 = vst.msk [vmem:[#allocation2 + $0xc0] sm:$0xff] %vm387, 0.0
      %3036 = vst.msk [vmem:[#allocation2 + $0xc8] sm:$0xff] %vm387, 0.0
      %3037 = vst.msk [vmem:[#allocation2 + $0xd0] sm:$0x3] %vm3012, 0.0
      %3038 = vst.msk [vmem:[#allocation2 + $0xd8] sm:$0xff] %vm387, 0.0
      %3039 = vst.msk [vmem:[#allocation2 + $0xe0] sm:$0xff] %vm387, 0.0
      %3040 = vst.msk [vmem:[#allocation2 + $0xe8] sm:$0x3] %vm3012, 0.0
      %3041 = vst.msk [vmem:[#allocation2 + $0xf0] sm:$0xff] %vm387, 0.0
      %3042 = vst.msk [vmem:[#allocation2 + $0xf8] sm:$0xff] %vm387, 0.0
      %3043 = vst.msk [vmem:[#allocation2 + $0x100] sm:$0x3] %vm3012, 0.0
      %3044 = vst.msk [vmem:[#allocation2 + $0x108] sm:$0xff] %vm387, 0.0
      %3045 = vst.msk [vmem:[#allocation2 + $0x110] sm:$0xff] %vm387, 0.0
      %3046 = vst.msk [vmem:[#allocation2 + $0x118] sm:$0x3] %vm3012, 0.0
      %3047 = vst.msk [vmem:[#allocation2 + $0x120] sm:$0xff] %vm387, 0.0
      %3048 = vst.msk [vmem:[#allocation2 + $0x128] sm:$0xff] %vm387, 0.0
      %3049 = vst.msk [vmem:[#allocation2 + $0x130] sm:$0x3] %vm3012, 0.0
      %3050 = vst.msk [vmem:[#allocation2 + $0x138] sm:$0xff] %vm387, 0.0
      %3051 = vst.msk [vmem:[#allocation2 + $0x140] sm:$0xff] %vm387, 0.0
      %3052 = vst.msk [vmem:[#allocation2 + $0x148] sm:$0x3] %vm3012, 0.0
      %3053 = vst.msk [vmem:[#allocation2 + $0x150] sm:$0xff] %vm387, 0.0
      %3054 = vst.msk [vmem:[#allocation2 + $0x158] sm:$0xff] %vm387, 0.0
      %3055 = vst.msk [vmem:[#allocation2 + $0x160] sm:$0x3] %vm3012, 0.0
      %3056 = vst.msk [vmem:[#allocation2 + $0x168] sm:$0xff] %vm387, 0.0
      %3057 = vst.msk [vmem:[#allocation2 + $0x170] sm:$0xff] %vm387, 0.0
      %3058 = vst.msk [vmem:[#allocation2 + $0x178] sm:$0x3] %vm3012, 0.0
      %3059 = vst.msk [vmem:[#allocation2 + $0x180] sm:$0xff] %vm387, 0.0
      %3060 = vst.msk [vmem:[#allocation2 + $0x188] sm:$0xff] %vm387, 0.0
      %3061 = vst.msk [vmem:[#allocation2 + $0x190] sm:$0x3] %vm3012, 0.0
      %3062 = vst.msk [vmem:[#allocation2 + $0x198] sm:$0xff] %vm387, 0.0
      %3063 = vst.msk [vmem:[#allocation2 + $0x1a0] sm:$0xff] %vm387, 0.0
      %3064 = vst.msk [vmem:[#allocation2 + $0x1a8] sm:$0x3] %vm3012, 0.0
      %s3065 = scalar_lea.vmem [#allocation2], 24
      %3066 = vst.msk [vmem:[%s3065 + $0x1] sm:$0xff] %vm387, %v2978
      %3067 = vst.msk [vmem:[%s3065 + $0x9] sm:$0xff] %vm387, %v2979
      %3068 = vst.msk [vmem:[%s3065 + $0x19] sm:$0xff] %vm387, %v2980
      %3069 = vst.msk [vmem:[%s3065 + $0x21] sm:$0xff] %vm387, %v2981
      %3070 = vst.msk [vmem:[%s3065 + $0x31] sm:$0xff] %vm387, %v2982
      %3071 = vst.msk [vmem:[%s3065 + $0x39] sm:$0xff] %vm387, %v2983
      %3072 = vst.msk [vmem:[%s3065 + $0x49] sm:$0xff] %vm387, %v2984
      %3073 = vst.msk [vmem:[%s3065 + $0x51] sm:$0xff] %vm387, %v2985
      %3074 = vst.msk [vmem:[%s3065 + $0x61] sm:$0xff] %vm387, %v2986
      %3075 = vst.msk [vmem:[%s3065 + $0x69] sm:$0xff] %vm387, %v2987
      %3076 = vst.msk [vmem:[%s3065 + $0x79] sm:$0xff] %vm387, %v2988
      %3077 = vst.msk [vmem:[%s3065 + $0x81] sm:$0xff] %vm387, %v2989
      %3078 = vst.msk [vmem:[%s3065 + $0x91] sm:$0xff] %vm387, %v2990
      %3079 = vst.msk [vmem:[%s3065 + $0x99] sm:$0xff] %vm387, %v2991
      %3080 = vst.msk [vmem:[%s3065 + $0xa9] sm:$0xff] %vm387, %v2992
      %3081 = vst.msk [vmem:[%s3065 + $0xb1] sm:$0xff] %vm387, %v2993
      %3082 = vst.msk [vmem:[%s3065 + $0xc1] sm:$0xff] %vm387, %v2994
      %3083 = vst.msk [vmem:[%s3065 + $0xc9] sm:$0xff] %vm387, %v2995
      %3084 = vst.msk [vmem:[%s3065 + $0xd9] sm:$0xff] %vm387, %v2996
      %3085 = vst.msk [vmem:[%s3065 + $0xe1] sm:$0xff] %vm387, %v2997
      %3086 = vst.msk [vmem:[%s3065 + $0xf1] sm:$0xff] %vm387, %v2998
      %3087 = vst.msk [vmem:[%s3065 + $0xf9] sm:$0xff] %vm387, %v2999
      %3088 = vst.msk [vmem:[%s3065 + $0x109] sm:$0xff] %vm387, %v3000
      %3089 = vst.msk [vmem:[%s3065 + $0x111] sm:$0xff] %vm387, %v3001
      %3090 = vst.msk [vmem:[%s3065 + $0x121] sm:$0xff] %vm387, %v3002
      %3091 = vst.msk [vmem:[%s3065 + $0x129] sm:$0xff] %vm387, %v3003
      %3092 = vst.msk [vmem:[%s3065 + $0x139] sm:$0xff] %vm387, %v3004
      %3093 = vst.msk [vmem:[%s3065 + $0x141] sm:$0xff] %vm387, %v3005
      %3094 = vst.msk [vmem:[%s3065 + $0x151] sm:$0xff] %vm387, %v3006
      %3095 = vst.msk [vmem:[%s3065 + $0x159] sm:$0xff] %vm387, %v3007
      %3096 = vst.msk [vmem:[%s3065 + $0x169] sm:$0xff] %vm387, %v3008
      %3097 = vst.msk [vmem:[%s3065 + $0x171] sm:$0xff] %vm387, %v3009
      %v3098 = vld [vmem:[#allocation2] sm:$0xff]
      %v3099 = vld [vmem:[#allocation2 + $0x8] sm:$0xff]
      %v3100 = vld [vmem:[#allocation2 + $0x18] sm:$0xff]
      %v3101 = vld [vmem:[#allocation2 + $0x20] sm:$0xff]
      %v3102 = vld [vmem:[#allocation2 + $0x30] sm:$0xff]
      %v3103 = vld [vmem:[#allocation2 + $0x38] sm:$0xff]
      %v3104 = vld [vmem:[#allocation2 + $0x48] sm:$0xff]
      %v3105 = vld [vmem:[#allocation2 + $0x50] sm:$0xff]
      %v3106 = vld [vmem:[#allocation2 + $0x60] sm:$0xff]
      %v3107 = vld [vmem:[#allocation2 + $0x68] sm:$0xff]
      %v3108 = vld [vmem:[#allocation2 + $0x78] sm:$0xff]
      %v3109 = vld [vmem:[#allocation2 + $0x80] sm:$0xff]
      %v3110 = vld [vmem:[#allocation2 + $0x90] sm:$0xff]
      %v3111 = vld [vmem:[#allocation2 + $0x98] sm:$0xff]
      %v3112 = vld [vmem:[#allocation2 + $0xa8] sm:$0xff]
      %v3113 = vld [vmem:[#allocation2 + $0xb0] sm:$0xff]
      %v3114 = vld [vmem:[#allocation2 + $0xc0] sm:$0xff]
      %v3115 = vld [vmem:[#allocation2 + $0xc8] sm:$0xff]
      %v3116 = vld [vmem:[#allocation2 + $0xd8] sm:$0xff]
      %v3117 = vld [vmem:[#allocation2 + $0xe0] sm:$0xff]
      %v3118 = vld [vmem:[#allocation2 + $0xf0] sm:$0xff]
      %v3119 = vld [vmem:[#allocation2 + $0xf8] sm:$0xff]
      %v3120 = vld [vmem:[#allocation2 + $0x108] sm:$0xff]
      %v3121 = vld [vmem:[#allocation2 + $0x110] sm:$0xff]
      %v3122 = vld [vmem:[#allocation2 + $0x120] sm:$0xff]
      %v3123 = vld [vmem:[#allocation2 + $0x128] sm:$0xff]
      %v3124 = vld [vmem:[#allocation2 + $0x138] sm:$0xff]
      %v3125 = vld [vmem:[#allocation2 + $0x140] sm:$0xff]
      %v3126 = vld [vmem:[#allocation2 + $0x150] sm:$0xff]
      %v3127 = vld [vmem:[#allocation2 + $0x158] sm:$0xff]
      %v3128 = vld [vmem:[#allocation2 + $0x168] sm:$0xff]
      %v3129 = vld [vmem:[#allocation2 + $0x170] sm:$0xff]
      %v3130 = vpack.c.bf16 %v3099, %v3098
      %v3131 = vpack.c.bf16 %v3101, %v3100
      %v3132 = vpack.c.bf16 %v3103, %v3102
      %v3133 = vpack.c.bf16 %v3105, %v3104
      %v3134 = vpack.c.bf16 %v3107, %v3106
      %v3135 = vpack.c.bf16 %v3109, %v3108
      %v3136 = vpack.c.bf16 %v3111, %v3110
      %v3137 = vpack.c.bf16 %v3113, %v3112
      %v3138 = vpack.c.bf16 %v3115, %v3114
      %v3139 = vpack.c.bf16 %v3117, %v3116
      %v3140 = vpack.c.bf16 %v3119, %v3118
      %v3141 = vpack.c.bf16 %v3121, %v3120
      %v3142 = vpack.c.bf16 %v3123, %v3122
      %v3143 = vpack.c.bf16 %v3125, %v3124
      %v3144 = vpack.c.bf16 %v3127, %v3126
      %v3145 = vpack.c.bf16 %v3129, %v3128
      %v3146 = vld [vmem:[%s4] sm:$0xf]
      %v3147 = vld [vmem:[%s4 + $0x4] sm:$0xf]
      %v3148 = vld [vmem:[#allocation2 + $0x1] sm:$0xff]
      %v3149 = vld [vmem:[#allocation2 + $0x9] sm:$0xff]
      %v3150 = vld [vmem:[#allocation2 + $0x19] sm:$0xff]
      %v3151 = vld [vmem:[#allocation2 + $0x21] sm:$0xff]
      %v3152 = vld [vmem:[#allocation2 + $0x31] sm:$0xff]
      %v3153 = vld [vmem:[#allocation2 + $0x39] sm:$0xff]
      %v3154 = vld [vmem:[#allocation2 + $0x49] sm:$0xff]
      %v3155 = vld [vmem:[#allocation2 + $0x51] sm:$0xff]
      %v3156 = vld [vmem:[#allocation2 + $0x61] sm:$0xff]
      %v3157 = vld [vmem:[#allocation2 + $0x69] sm:$0xff]
      %v3158 = vld [vmem:[#allocation2 + $0x79] sm:$0xff]
      %v3159 = vld [vmem:[#allocation2 + $0x81] sm:$0xff]
      %v3160 = vld [vmem:[#allocation2 + $0x91] sm:$0xff]
      %v3161 = vld [vmem:[#allocation2 + $0x99] sm:$0xff]
      %v3162 = vld [vmem:[#allocation2 + $0xa9] sm:$0xff]
      %v3163 = vld [vmem:[#allocation2 + $0xb1] sm:$0xff]
      %v3164 = vld [vmem:[#allocation2 + $0xc1] sm:$0xff]
      %v3165 = vld [vmem:[#allocation2 + $0xc9] sm:$0xff]
      %v3166 = vld [vmem:[#allocation2 + $0xd9] sm:$0xff]
      %v3167 = vld [vmem:[#allocation2 + $0xe1] sm:$0xff]
      %v3168 = vld [vmem:[#allocation2 + $0xf1] sm:$0xff]
      %v3169 = vld [vmem:[#allocation2 + $0xf9] sm:$0xff]
      %v3170 = vld [vmem:[#allocation2 + $0x109] sm:$0xff]
      %v3171 = vld [vmem:[#allocation2 + $0x111] sm:$0xff]
      %v3172 = vld [vmem:[#allocation2 + $0x121] sm:$0xff]
      %v3173 = vld [vmem:[#allocation2 + $0x129] sm:$0xff]
      %v3174 = vld [vmem:[#allocation2 + $0x139] sm:$0xff]
      %v3175 = vld [vmem:[#allocation2 + $0x141] sm:$0xff]
      %v3176 = vld [vmem:[#allocation2 + $0x151] sm:$0xff]
      %v3177 = vld [vmem:[#allocation2 + $0x159] sm:$0xff]
      %v3178 = vld [vmem:[#allocation2 + $0x169] sm:$0xff]
      %v3179 = vld [vmem:[#allocation2 + $0x171] sm:$0xff]
      %v3180 = vpack.c.bf16 %v3149, %v3148
      %v3181 = vpack.c.bf16 %v3151, %v3150
      %v3182 = vpack.c.bf16 %v3153, %v3152
      %v3183 = vpack.c.bf16 %v3155, %v3154
      %v3184 = vpack.c.bf16 %v3157, %v3156
      %v3185 = vpack.c.bf16 %v3159, %v3158
      %v3186 = vpack.c.bf16 %v3161, %v3160
      %v3187 = vpack.c.bf16 %v3163, %v3162
      %v3188 = vpack.c.bf16 %v3165, %v3164
      %v3189 = vpack.c.bf16 %v3167, %v3166
      %v3190 = vpack.c.bf16 %v3169, %v3168
      %v3191 = vpack.c.bf16 %v3171, %v3170
      %v3192 = vpack.c.bf16 %v3173, %v3172
      %v3193 = vpack.c.bf16 %v3175, %v3174
      %v3194 = vpack.c.bf16 %v3177, %v3176
      %v3195 = vpack.c.bf16 %v3179, %v3178
      %s3196 = scalar_lea.vmem %s4, 8
      %v3197 = vld [vmem:[%s3196] sm:$0xf]
      %v3198 = vld [vmem:[%s3196 + $0x4] sm:$0xf]
      %v3201 = vunpack.c.l.b16 %v3197
      %v3202 = vunpack.c.l.b16 %v3198
      %v3203 = vpack.c.b16 %v3202, %v3201
      %v3206 = vsel %vm387, %v3180, 0
      %v3209 = vsel %vm387, %v3181, 0
      %v3212 = vsel %vm387, %v3182, 0
      %v3215 = vsel %vm387, %v3183, 0
      %v3218 = vsel %vm387, %v3184, 0
      %v3221 = vsel %vm387, %v3185, 0
      %v3224 = vsel %vm387, %v3186, 0
      %v3227 = vsel %vm387, %v3187, 0
      %v3230 = vsel %vm387, %v3188, 0
      %v3233 = vsel %vm387, %v3189, 0
      %v3236 = vsel %vm387, %v3190, 0
      %v3239 = vsel %vm387, %v3191, 0
      %v3242 = vsel %vm387, %v3192, 0
      %v3245 = vsel %vm387, %v3193, 0
      %v3248 = vsel %vm387, %v3194, 0
      %v3251 = vsel %vm387, %v3195, 0
      %3253 = vmatprep.subr.bf16.mxu0 0
      %3254 = vmatpush1.bf16.msra.mxu0 %v3203
      %3255 = vmatprep.subr.bf16.mxu0 0
      %3256 = vmatpush1.bf16.msra.mxu0 0
      %3257 = vmatprep.subr.bf16.mxu0 0
      %3258 = vmatpush1.bf16.msra.mxu0 0
      %3259 = vmatprep.subr.bf16.mxu0 0
      %3260 = vmatpush1.bf16.msra.mxu0 0
      %3261 = vmatprep.subr.bf16.mxu0 0
      %3262 = vmatpush1.bf16.msra.mxu0 0
      %3263 = vmatprep.subr.bf16.mxu0 0
      %3264 = vmatpush1.bf16.msra.mxu0 0
      %3265 = vmatprep.subr.bf16.mxu0 0
      %3266 = vmatpush1.bf16.msra.mxu0 0
      %3267 = vmatprep.subr.bf16.mxu0 0
      %3268 = vmatpush1.bf16.msra.mxu0 0
      %3269 = vmatprep.subr.bf16.mxu0 0
      %3270 = vmatpush1.bf16.msra.mxu0 0
      %3271 = vmatprep.subr.bf16.mxu0 0
      %3272 = vmatpush1.bf16.msra.mxu0 0
      %3273 = vmatprep.subr.bf16.mxu0 0
      %3274 = vmatpush1.bf16.msra.mxu0 0
      %3275 = vmatprep.subr.bf16.mxu0 0
      %3276 = vmatpush1.bf16.msra.mxu0 0
      %3277 = vmatprep.subr.bf16.mxu0 0
      %3278 = vmatpush1.bf16.msra.mxu0 0
      %3279 = vmatprep.subr.bf16.mxu0 0
      %3280 = vmatpush1.bf16.msra.mxu0 0
      %3281 = vmatprep.subr.bf16.mxu0 0
      %3282 = vmatpush1.bf16.msra.mxu0 0
      %3283 = vmatprep.subr.bf16.mxu0 0
      %3284 = vmatpush1.bf16.msra.mxu0 0
      %3285 = vmatprep.mubr.bf16.mxu0 0
      %3286 = vmatmul.mubr.bf16.gmra.mrb[0].mxu0 %v3206
      %v3287 = vpop.f32.mrb[0].mxu0
      %v3288 = vadd.f32 0.0, %v3287
      %v3289 = vpop.f32.mrb[0].mxu0
      %v3290 = vpop.f32.mrb[0].mxu0
      %v3291 = vadd.f32 0.0, %v3290
      %v3292 = vpop.f32.mrb[0].mxu0
      %3293 = vmatprep.mubr.bf16.mxu0 0
      %3294 = vmatmul.mubr.bf16.gmra.mrb[0].mxu0 %v3209
      %v3295 = vpop.f32.mrb[0].mxu0
      %v3296 = vadd.f32 0.0, %v3295
      %v3297 = vpop.f32.mrb[0].mxu0
      %v3298 = vpop.f32.mrb[0].mxu0
      %v3299 = vadd.f32 0.0, %v3298
      %v3300 = vpop.f32.mrb[0].mxu0
      %3301 = vmatprep.mubr.bf16.mxu0 0
      %3302 = vmatmul.mubr.bf16.gmra.mrb[0].mxu0 %v3212
      %v3303 = vpop.f32.mrb[0].mxu0
      %v3304 = vadd.f32 0.0, %v3303
      %v3305 = vpop.f32.mrb[0].mxu0
      %v3306 = vpop.f32.mrb[0].mxu0
      %v3307 = vadd.f32 0.0, %v3306
      %v3308 = vpop.f32.mrb[0].mxu0
      %3309 = vmatprep.mubr.bf16.mxu0 0
      %3310 = vmatmul.mubr.bf16.gmra.mrb[0].mxu0 %v3215
      %v3311 = vpop.f32.mrb[0].mxu0
      %v3312 = vadd.f32 0.0, %v3311
      %v3313 = vpop.f32.mrb[0].mxu0
      %v3314 = vpop.f32.mrb[0].mxu0
      %v3315 = vadd.f32 0.0, %v3314
      %v3316 = vpop.f32.mrb[0].mxu0
      %3317 = vmatprep.mubr.bf16.mxu0 0
      %3318 = vmatmul.mubr.bf16.gmra.mrb[0].mxu0 %v3218
      %v3319 = vpop.f32.mrb[0].mxu0
      %v3320 = vadd.f32 0.0, %v3319
      %v3321 = vpop.f32.mrb[0].mxu0
      %v3322 = vpop.f32.mrb[0].mxu0
      %v3323 = vadd.f32 0.0, %v3322
      %v3324 = vpop.f32.mrb[0].mxu0
      %3325 = vmatprep.mubr.bf16.mxu0 0
      %3326 = vmatmul.mubr.bf16.gmra.mrb[0].mxu0 %v3221
      %v3327 = vpop.f32.mrb[0].mxu0
      %v3328 = vadd.f32 0.0, %v3327
      %v3329 = vpop.f32.mrb[0].mxu0
      %v3330 = vpop.f32.mrb[0].mxu0
      %v3331 = vadd.f32 0.0, %v3330
      %v3332 = vpop.f32.mrb[0].mxu0
      %3333 = vmatprep.mubr.bf16.mxu0 0
      %3334 = vmatmul.mubr.bf16.gmra.mrb[0].mxu0 %v3224
      %v3335 = vpop.f32.mrb[0].mxu0
      %v3336 = vadd.f32 0.0, %v3335
      %v3337 = vpop.f32.mrb[0].mxu0
      %v3338 = vpop.f32.mrb[0].mxu0
      %v3339 = vadd.f32 0.0, %v3338
      %v3340 = vpop.f32.mrb[0].mxu0
      %3341 = vmatprep.mubr.bf16.mxu0 0
      %3342 = vmatmul.mubr.bf16.gmra.mrb[0].mxu0 %v3227
      %v3343 = vpop.f32.mrb[0].mxu0
      %v3344 = vadd.f32 0.0, %v3343
      %v3345 = vpop.f32.mrb[0].mxu0
      %v3346 = vpop.f32.mrb[0].mxu0
      %v3347 = vadd.f32 0.0, %v3346
      %v3348 = vpop.f32.mrb[0].mxu0
      %3349 = vmatprep.mubr.bf16.mxu0 0
      %3350 = vmatmul.mubr.bf16.gmra.mrb[0].mxu0 %v3230
      %v3351 = vpop.f32.mrb[0].mxu0
      %v3352 = vadd.f32 0.0, %v3351
      %v3353 = vpop.f32.mrb[0].mxu0
      %v3354 = vpop.f32.mrb[0].mxu0
      %v3355 = vadd.f32 0.0, %v3354
      %v3356 = vpop.f32.mrb[0].mxu0
      %3357 = vmatprep.mubr.bf16.mxu0 0
      %3358 = vmatmul.mubr.bf16.gmra.mrb[0].mxu0 %v3233
      %v3359 = vpop.f32.mrb[0].mxu0
      %v3360 = vadd.f32 0.0, %v3359
      %v3361 = vpop.f32.mrb[0].mxu0
      %v3362 = vpop.f32.mrb[0].mxu0
      %v3363 = vadd.f32 0.0, %v3362
      %v3364 = vpop.f32.mrb[0].mxu0
      %3365 = vmatprep.mubr.bf16.mxu0 0
      %3366 = vmatmul.mubr.bf16.gmra.mrb[0].mxu0 %v3236
      %v3367 = vpop.f32.mrb[0].mxu0
      %v3368 = vadd.f32 0.0, %v3367
      %v3369 = vpop.f32.mrb[0].mxu0
      %v3370 = vpop.f32.mrb[0].mxu0
      %v3371 = vadd.f32 0.0, %v3370
      %v3372 = vpop.f32.mrb[0].mxu0
      %3373 = vmatprep.mubr.bf16.mxu0 0
      %3374 = vmatmul.mubr.bf16.gmra.mrb[0].mxu0 %v3239
      %v3375 = vpop.f32.mrb[0].mxu0
      %v3376 = vadd.f32 0.0, %v3375
      %v3377 = vpop.f32.mrb[0].mxu0
      %v3378 = vpop.f32.mrb[0].mxu0
      %v3379 = vadd.f32 0.0, %v3378
      %v3380 = vpop.f32.mrb[0].mxu0
      %3381 = vmatprep.mubr.bf16.mxu0 0
      %3382 = vmatmul.mubr.bf16.gmra.mrb[0].mxu0 %v3242
      %v3383 = vpop.f32.mrb[0].mxu0
      %v3384 = vadd.f32 0.0, %v3383
      %v3385 = vpop.f32.mrb[0].mxu0
      %v3386 = vpop.f32.mrb[0].mxu0
      %v3387 = vadd.f32 0.0, %v3386
      %v3388 = vpop.f32.mrb[0].mxu0
      %3389 = vmatprep.mubr.bf16.mxu0 0
      %3390 = vmatmul.mubr.bf16.gmra.mrb[0].mxu0 %v3245
      %v3391 = vpop.f32.mrb[0].mxu0
      %v3392 = vadd.f32 0.0, %v3391
      %v3393 = vpop.f32.mrb[0].mxu0
      %v3394 = vpop.f32.mrb[0].mxu0
      %v3395 = vadd.f32 0.0, %v3394
      %v3396 = vpop.f32.mrb[0].mxu0
      %3397 = vmatprep.mubr.bf16.mxu0 0
      %3398 = vmatmul.mubr.bf16.gmra.mrb[0].mxu0 %v3248
      %v3399 = vpop.f32.mrb[0].mxu0
      %v3400 = vadd.f32 0.0, %v3399
      %v3401 = vpop.f32.mrb[0].mxu0
      %v3402 = vpop.f32.mrb[0].mxu0
      %v3403 = vadd.f32 0.0, %v3402
      %v3404 = vpop.f32.mrb[0].mxu0
      %3405 = vmatprep.mubr.bf16.mxu0 0
      %3406 = vmatmul.mubr.bf16.gmra.mrb[0].mxu0 %v3251
      %v3407 = vpop.f32.mrb[0].mxu0
      %v3408 = vadd.f32 0.0, %v3407
      %v3409 = vpop.f32.mrb[0].mxu0
      %v3410 = vpop.f32.mrb[0].mxu0
      %v3411 = vadd.f32 0.0, %v3410
      %v3412 = vpop.f32.mrb[0].mxu0
      %3413 = vdwg.mxu0
      %v3416 = vunpack.c.l.b16 %v3146
      %v3417 = vunpack.c.l.b16 %v3147
      %v3418 = vpack.c.b16 %v3417, %v3416
      %v3421 = vsel %vm387, %v3130, 0
      %v3424 = vsel %vm387, %v3131, 0
      %v3427 = vsel %vm387, %v3132, 0
      %v3430 = vsel %vm387, %v3133, 0
      %v3433 = vsel %vm387, %v3134, 0
      %v3436 = vsel %vm387, %v3135, 0
      %v3439 = vsel %vm387, %v3136, 0
      %v3442 = vsel %vm387, %v3137, 0
      %v3445 = vsel %vm387, %v3138, 0
      %v3448 = vsel %vm387, %v3139, 0
      %v3451 = vsel %vm387, %v3140, 0
      %v3454 = vsel %vm387, %v3141, 0
      %v3457 = vsel %vm387, %v3142, 0
      %v3460 = vsel %vm387, %v3143, 0
      %v3463 = vsel %vm387, %v3144, 0
      %v3466 = vsel %vm387, %v3145, 0
      %3468 = vmatprep.subr.bf16.mxu0 0
      %3469 = vmatpush1.bf16.msra.mxu0 %v3418
      %3470 = vmatprep.subr.bf16.mxu0 0
      %3471 = vmatpush1.bf16.msra.mxu0 0
      %3472 = vmatprep.subr.bf16.mxu0 0
      %3473 = vmatpush1.bf16.msra.mxu0 0
      %3474 = vmatprep.subr.bf16.mxu0 0
      %3475 = vmatpush1.bf16.msra.mxu0 0
      %3476 = vmatprep.subr.bf16.mxu0 0
      %3477 = vmatpush1.bf16.msra.mxu0 0
      %3478 = vmatprep.subr.bf16.mxu0 0
      %3479 = vmatpush1.bf16.msra.mxu0 0
      %3480 = vmatprep.subr.bf16.mxu0 0
      %3481 = vmatpush1.bf16.msra.mxu0 0
      %3482 = vmatprep.subr.bf16.mxu0 0
      %3483 = vmatpush1.bf16.msra.mxu0 0
      %3484 = vmatprep.subr.bf16.mxu0 0
      %3485 = vmatpush1.bf16.msra.mxu0 0
      %3486 = vmatprep.subr.bf16.mxu0 0
      %3487 = vmatpush1.bf16.msra.mxu0 0
      %3488 = vmatprep.subr.bf16.mxu0 0
      %3489 = vmatpush1.bf16.msra.mxu0 0
      %3490 = vmatprep.subr.bf16.mxu0 0
      %3491 = vmatpush1.bf16.msra.mxu0 0
      %3492 = vmatprep.subr.bf16.mxu0 0
      %3493 = vmatpush1.bf16.msra.mxu0 0
      %3494 = vmatprep.subr.bf16.mxu0 0
      %3495 = vmatpush1.bf16.msra.mxu0 0
      %3496 = vmatprep.subr.bf16.mxu0 0
      %3497 = vmatpush1.bf16.msra.mxu0 0
      %3498 = vmatprep.subr.bf16.mxu0 0
      %3499 = vmatpush1.bf16.msra.mxu0 0
      %3500 = vmatprep.mubr.bf16.mxu0 0
      %3501 = vmatmul.mubr.bf16.gmra.mrb[0].mxu0 %v3421
      %v3502 = vpop.f32.mrb[0].mxu0
      %v3503 = vadd.f32 %v3288, %v3502
      %v3504 = vpop.f32.mrb[0].mxu0
      %v3505 = vpop.f32.mrb[0].mxu0
      %v3506 = vadd.f32 %v3291, %v3505
      %v3507 = vpop.f32.mrb[0].mxu0
      %3508 = vmatprep.mubr.bf16.mxu0 0
      %3509 = vmatmul.mubr.bf16.gmra.mrb[0].mxu0 %v3424
      %v3510 = vpop.f32.mrb[0].mxu0
      %v3511 = vadd.f32 %v3296, %v3510
      %v3512 = vpop.f32.mrb[0].mxu0
      %v3513 = vpop.f32.mrb[0].mxu0
      %v3514 = vadd.f32 %v3299, %v3513
      %v3515 = vpop.f32.mrb[0].mxu0
      %3516 = vmatprep.mubr.bf16.mxu0 0
      %3517 = vmatmul.mubr.bf16.gmra.mrb[0].mxu0 %v3427
      %v3518 = vpop.f32.mrb[0].mxu0
      %v3519 = vadd.f32 %v3304, %v3518
      %v3520 = vpop.f32.mrb[0].mxu0
      %v3521 = vpop.f32.mrb[0].mxu0
      %v3522 = vadd.f32 %v3307, %v3521
      %v3523 = vpop.f32.mrb[0].mxu0
      %3524 = vmatprep.mubr.bf16.mxu0 0
      %3525 = vmatmul.mubr.bf16.gmra.mrb[0].mxu0 %v3430
      %v3526 = vpop.f32.mrb[0].mxu0
      %v3527 = vadd.f32 %v3312, %v3526
      %v3528 = vpop.f32.mrb[0].mxu0
      %v3529 = vpop.f32.mrb[0].mxu0
      %v3530 = vadd.f32 %v3315, %v3529
      %v3531 = vpop.f32.mrb[0].mxu0
      %3532 = vmatprep.mubr.bf16.mxu0 0
      %3533 = vmatmul.mubr.bf16.gmra.mrb[0].mxu0 %v3433
      %v3534 = vpop.f32.mrb[0].mxu0
      %v3535 = vadd.f32 %v3320, %v3534
      %v3536 = vpop.f32.mrb[0].mxu0
      %v3537 = vpop.f32.mrb[0].mxu0
      %v3538 = vadd.f32 %v3323, %v3537
      %v3539 = vpop.f32.mrb[0].mxu0
      %3540 = vmatprep.mubr.bf16.mxu0 0
      %3541 = vmatmul.mubr.bf16.gmra.mrb[0].mxu0 %v3436
      %v3542 = vpop.f32.mrb[0].mxu0
      %v3543 = vadd.f32 %v3328, %v3542
      %v3544 = vpop.f32.mrb[0].mxu0
      %v3545 = vpop.f32.mrb[0].mxu0
      %v3546 = vadd.f32 %v3331, %v3545
      %v3547 = vpop.f32.mrb[0].mxu0
      %3548 = vmatprep.mubr.bf16.mxu0 0
      %3549 = vmatmul.mubr.bf16.gmra.mrb[0].mxu0 %v3439
      %v3550 = vpop.f32.mrb[0].mxu0
      %v3551 = vadd.f32 %v3336, %v3550
      %v3552 = vpop.f32.mrb[0].mxu0
      %v3553 = vpop.f32.mrb[0].mxu0
      %v3554 = vadd.f32 %v3339, %v3553
      %v3555 = vpop.f32.mrb[0].mxu0
      %3556 = vmatprep.mubr.bf16.mxu0 0
      %3557 = vmatmul.mubr.bf16.gmra.mrb[0].mxu0 %v3442
      %v3558 = vpop.f32.mrb[0].mxu0
      %v3559 = vadd.f32 %v3344, %v3558
      %v3560 = vpop.f32.mrb[0].mxu0
      %v3561 = vpop.f32.mrb[0].mxu0
      %v3562 = vadd.f32 %v3347, %v3561
      %v3563 = vpop.f32.mrb[0].mxu0
      %3564 = vmatprep.mubr.bf16.mxu0 0
      %3565 = vmatmul.mubr.bf16.gmra.mrb[0].mxu0 %v3445
      %v3566 = vpop.f32.mrb[0].mxu0
      %v3567 = vadd.f32 %v3352, %v3566
      %v3568 = vpop.f32.mrb[0].mxu0
      %v3569 = vpop.f32.mrb[0].mxu0
      %v3570 = vadd.f32 %v3355, %v3569
      %v3571 = vpop.f32.mrb[0].mxu0
      %3572 = vmatprep.mubr.bf16.mxu0 0
      %3573 = vmatmul.mubr.bf16.gmra.mrb[0].mxu0 %v3448
      %v3574 = vpop.f32.mrb[0].mxu0
      %v3575 = vadd.f32 %v3360, %v3574
      %v3576 = vpop.f32.mrb[0].mxu0
      %v3577 = vpop.f32.mrb[0].mxu0
      %v3578 = vadd.f32 %v3363, %v3577
      %v3579 = vpop.f32.mrb[0].mxu0
      %3580 = vmatprep.mubr.bf16.mxu0 0
      %3581 = vmatmul.mubr.bf16.gmra.mrb[0].mxu0 %v3451
      %v3582 = vpop.f32.mrb[0].mxu0
      %v3583 = vadd.f32 %v3368, %v3582
      %v3584 = vpop.f32.mrb[0].mxu0
      %v3585 = vpop.f32.mrb[0].mxu0
      %v3586 = vadd.f32 %v3371, %v3585
      %v3587 = vpop.f32.mrb[0].mxu0
      %3588 = vmatprep.mubr.bf16.mxu0 0
      %3589 = vmatmul.mubr.bf16.gmra.mrb[0].mxu0 %v3454
      %v3590 = vpop.f32.mrb[0].mxu0
      %v3591 = vadd.f32 %v3376, %v3590
      %v3592 = vpop.f32.mrb[0].mxu0
      %v3593 = vpop.f32.mrb[0].mxu0
      %v3594 = vadd.f32 %v3379, %v3593
      %v3595 = vpop.f32.mrb[0].mxu0
      %3596 = vmatprep.mubr.bf16.mxu0 0
      %3597 = vmatmul.mubr.bf16.gmra.mrb[0].mxu0 %v3457
      %v3598 = vpop.f32.mrb[0].mxu0
      %v3599 = vadd.f32 %v3384, %v3598
      %v3600 = vpop.f32.mrb[0].mxu0
      %v3601 = vpop.f32.mrb[0].mxu0
      %v3602 = vadd.f32 %v3387, %v3601
      %v3603 = vpop.f32.mrb[0].mxu0
      %3604 = vmatprep.mubr.bf16.mxu0 0
      %3605 = vmatmul.mubr.bf16.gmra.mrb[0].mxu0 %v3460
      %v3606 = vpop.f32.mrb[0].mxu0
      %v3607 = vadd.f32 %v3392, %v3606
      %v3608 = vpop.f32.mrb[0].mxu0
      %v3609 = vpop.f32.mrb[0].mxu0
      %v3610 = vadd.f32 %v3395, %v3609
      %v3611 = vpop.f32.mrb[0].mxu0
      %3612 = vmatprep.mubr.bf16.mxu0 0
      %3613 = vmatmul.mubr.bf16.gmra.mrb[0].mxu0 %v3463
      %v3614 = vpop.f32.mrb[0].mxu0
      %v3615 = vadd.f32 %v3400, %v3614
      %v3616 = vpop.f32.mrb[0].mxu0
      %v3617 = vpop.f32.mrb[0].mxu0
      %v3618 = vadd.f32 %v3403, %v3617
      %v3619 = vpop.f32.mrb[0].mxu0
      %3620 = vmatprep.mubr.bf16.mxu0 0
      %3621 = vmatmul.mubr.bf16.gmra.mrb[0].mxu0 %v3466
      %v3622 = vpop.f32.mrb[0].mxu0
      %v3623 = vadd.f32 %v3408, %v3622
      %v3624 = vpop.f32.mrb[0].mxu0
      %v3625 = vpop.f32.mrb[0].mxu0
      %v3626 = vadd.f32 %v3411, %v3625
      %v3627 = vpop.f32.mrb[0].mxu0
      %3628 = vdwg.mxu0
      %v3629 = vld [vmem:[#allocation2 + $0x2] sm:$0xff]
      %v3630 = vld [vmem:[#allocation2 + $0xa] sm:$0xff]
      %v3631 = vld [vmem:[#allocation2 + $0x1a] sm:$0xff]
      %v3632 = vld [vmem:[#allocation2 + $0x22] sm:$0xff]
      %v3633 = vld [vmem:[#allocation2 + $0x32] sm:$0xff]
      %v3634 = vld [vmem:[#allocation2 + $0x3a] sm:$0xff]
      %v3635 = vld [vmem:[#allocation2 + $0x4a] sm:$0xff]
      %v3636 = vld [vmem:[#allocation2 + $0x52] sm:$0xff]
      %v3637 = vld [vmem:[#allocation2 + $0x62] sm:$0xff]
      %v3638 = vld [vmem:[#allocation2 + $0x6a] sm:$0xff]
      %v3639 = vld [vmem:[#allocation2 + $0x7a] sm:$0xff]
      %v3640 = vld [vmem:[#allocation2 + $0x82] sm:$0xff]
      %v3641 = vld [vmem:[#allocation2 + $0x92] sm:$0xff]
      %v3642 = vld [vmem:[#allocation2 + $0x9a] sm:$0xff]
      %v3643 = vld [vmem:[#allocation2 + $0xaa] sm:$0xff]
      %v3644 = vld [vmem:[#allocation2 + $0xb2] sm:$0xff]
      %v3645 = vld [vmem:[#allocation2 + $0xc2] sm:$0xff]
      %v3646 = vld [vmem:[#allocation2 + $0xca] sm:$0xff]
      %v3647 = vld [vmem:[#allocation2 + $0xda] sm:$0xff]
      %v3648 = vld [vmem:[#allocation2 + $0xe2] sm:$0xff]
      %v3649 = vld [vmem:[#allocation2 + $0xf2] sm:$0xff]
      %v3650 = vld [vmem:[#allocation2 + $0xfa] sm:$0xff]
      %v3651 = vld [vmem:[#allocation2 + $0x10a] sm:$0xff]
      %v3652 = vld [vmem:[#allocation2 + $0x112] sm:$0xff]
      %v3653 = vld [vmem:[#allocation2 + $0x122] sm:$0xff]
      %v3654 = vld [vmem:[#allocation2 + $0x12a] sm:$0xff]
      %v3655 = vld [vmem:[#allocation2 + $0x13a] sm:$0xff]
      %v3656 = vld [vmem:[#allocation2 + $0x142] sm:$0xff]
      %v3657 = vld [vmem:[#allocation2 + $0x152] sm:$0xff]
      %v3658 = vld [vmem:[#allocation2 + $0x15a] sm:$0xff]
      %v3659 = vld [vmem:[#allocation2 + $0x16a] sm:$0xff]
      %v3660 = vld [vmem:[#allocation2 + $0x172] sm:$0xff]
      %v3661 = vpack.c.bf16 %v3630, %v3629
      %v3662 = vpack.c.bf16 %v3632, %v3631
      %v3663 = vpack.c.bf16 %v3634, %v3633
      %v3664 = vpack.c.bf16 %v3636, %v3635
      %v3665 = vpack.c.bf16 %v3638, %v3637
      %v3666 = vpack.c.bf16 %v3640, %v3639
      %v3667 = vpack.c.bf16 %v3642, %v3641
      %v3668 = vpack.c.bf16 %v3644, %v3643
      %v3669 = vpack.c.bf16 %v3646, %v3645
      %v3670 = vpack.c.bf16 %v3648, %v3647
      %v3671 = vpack.c.bf16 %v3650, %v3649
      %v3672 = vpack.c.bf16 %v3652, %v3651
      %v3673 = vpack.c.bf16 %v3654, %v3653
      %v3674 = vpack.c.bf16 %v3656, %v3655
      %v3675 = vpack.c.bf16 %v3658, %v3657
      %v3676 = vpack.c.bf16 %v3660, %v3659
      %s3677 = scalar_lea.vmem %s4, 16
      %v3678 = vld [vmem:[%s3677] sm:$0xf]
      %v3679 = vld [vmem:[%s3677 + $0x4] sm:$0xf]
      %v3682 = vunpack.c.l.b16 %v3678
      %v3683 = vunpack.c.l.b16 %v3679
      %v3684 = vpack.c.b16 %v3683, %v3682
      %v3687 = vsel %vm387, %v3661, 0
      %v3690 = vsel %vm387, %v3662, 0
      %v3693 = vsel %vm387, %v3663, 0
      %v3696 = vsel %vm387, %v3664, 0
      %v3699 = vsel %vm387, %v3665, 0
      %v3702 = vsel %vm387, %v3666, 0
      %v3705 = vsel %vm387, %v3667, 0
      %v3708 = vsel %vm387, %v3668, 0
      %v3711 = vsel %vm387, %v3669, 0
      %v3714 = vsel %vm387, %v3670, 0
      %v3717 = vsel %vm387, %v3671, 0
      %v3720 = vsel %vm387, %v3672, 0
      %v3723 = vsel %vm387, %v3673, 0
      %v3726 = vsel %vm387, %v3674, 0
      %v3729 = vsel %vm387, %v3675, 0
      %v3732 = vsel %vm387, %v3676, 0
      %3734 = vmatprep.subr.bf16.mxu0 0
      %3735 = vmatpush1.bf16.msra.mxu0 %v3684
      %3736 = vmatprep.subr.bf16.mxu0 0
      %3737 = vmatpush1.bf16.msra.mxu0 0
      %3738 = vmatprep.subr.bf16.mxu0 0
      %3739 = vmatpush1.bf16.msra.mxu0 0
      %3740 = vmatprep.subr.bf16.mxu0 0
      %3741 = vmatpush1.bf16.msra.mxu0 0
      %3742 = vmatprep.subr.bf16.mxu0 0
      %3743 = vmatpush1.bf16.msra.mxu0 0
      %3744 = vmatprep.subr.bf16.mxu0 0
      %3745 = vmatpush1.bf16.msra.mxu0 0
      %3746 = vmatprep.subr.bf16.mxu0 0
      %3747 = vmatpush1.bf16.msra.mxu0 0
      %3748 = vmatprep.subr.bf16.mxu0 0
      %3749 = vmatpush1.bf16.msra.mxu0 0
      %3750 = vmatprep.subr.bf16.mxu0 0
      %3751 = vmatpush1.bf16.msra.mxu0 0
      %3752 = vmatprep.subr.bf16.mxu0 0
      %3753 = vmatpush1.bf16.msra.mxu0 0
      %3754 = vmatprep.subr.bf16.mxu0 0
      %3755 = vmatpush1.bf16.msra.mxu0 0
      %3756 = vmatprep.subr.bf16.mxu0 0
      %3757 = vmatpush1.bf16.msra.mxu0 0
      %3758 = vmatprep.subr.bf16.mxu0 0
      %3759 = vmatpush1.bf16.msra.mxu0 0
      %3760 = vmatprep.subr.bf16.mxu0 0
      %3761 = vmatpush1.bf16.msra.mxu0 0
      %3762 = vmatprep.subr.bf16.mxu0 0
      %3763 = vmatpush1.bf16.msra.mxu0 0
      %3764 = vmatprep.subr.bf16.mxu0 0
      %3765 = vmatpush1.bf16.msra.mxu0 0
      %3766 = vmatprep.mubr.bf16.mxu0 0
      %3767 = vmatmul.mubr.bf16.gmra.mrb[0].mxu0 %v3687
      %v3768 = vpop.f32.mrb[0].mxu0
      %v3769 = vadd.f32 0.0, %v3768
      %v3770 = vpop.f32.mrb[0].mxu0
      %v3771 = vpop.f32.mrb[0].mxu0
      %v3772 = vadd.f32 0.0, %v3771
      %v3773 = vpop.f32.mrb[0].mxu0
      %3774 = vmatprep.mubr.bf16.mxu0 0
      %3775 = vmatmul.mubr.bf16.gmra.mrb[0].mxu0 %v3690
      %v3776 = vpop.f32.mrb[0].mxu0
      %v3777 = vadd.f32 0.0, %v3776
      %v3778 = vpop.f32.mrb[0].mxu0
      %v3779 = vpop.f32.mrb[0].mxu0
      %v3780 = vadd.f32 0.0, %v3779
      %v3781 = vpop.f32.mrb[0].mxu0
      %3782 = vmatprep.mubr.bf16.mxu0 0
      %3783 = vmatmul.mubr.bf16.gmra.mrb[0].mxu0 %v3693
      %v3784 = vpop.f32.mrb[0].mxu0
      %v3785 = vadd.f32 0.0, %v3784
      %v3786 = vpop.f32.mrb[0].mxu0
      %v3787 = vpop.f32.mrb[0].mxu0
      %v3788 = vadd.f32 0.0, %v3787
      %v3789 = vpop.f32.mrb[0].mxu0
      %3790 = vmatprep.mubr.bf16.mxu0 0
      %3791 = vmatmul.mubr.bf16.gmra.mrb[0].mxu0 %v3696
      %v3792 = vpop.f32.mrb[0].mxu0
      %v3793 = vadd.f32 0.0, %v3792
      %v3794 = vpop.f32.mrb[0].mxu0
      %v3795 = vpop.f32.mrb[0].mxu0
      %v3796 = vadd.f32 0.0, %v3795
      %v3797 = vpop.f32.mrb[0].mxu0
      %3798 = vmatprep.mubr.bf16.mxu0 0
      %3799 = vmatmul.mubr.bf16.gmra.mrb[0].mxu0 %v3699
      %v3800 = vpop.f32.mrb[0].mxu0
      %v3801 = vadd.f32 0.0, %v3800
      %v3802 = vpop.f32.mrb[0].mxu0
      %v3803 = vpop.f32.mrb[0].mxu0
      %v3804 = vadd.f32 0.0, %v3803
      %v3805 = vpop.f32.mrb[0].mxu0
      %3806 = vmatprep.mubr.bf16.mxu0 0
      %3807 = vmatmul.mubr.bf16.gmra.mrb[0].mxu0 %v3702
      %v3808 = vpop.f32.mrb[0].mxu0
      %v3809 = vadd.f32 0.0, %v3808
      %v3810 = vpop.f32.mrb[0].mxu0
      %v3811 = vpop.f32.mrb[0].mxu0
      %v3812 = vadd.f32 0.0, %v3811
      %v3813 = vpop.f32.mrb[0].mxu0
      %3814 = vmatprep.mubr.bf16.mxu0 0
      %3815 = vmatmul.mubr.bf16.gmra.mrb[0].mxu0 %v3705
      %v3816 = vpop.f32.mrb[0].mxu0
      %v3817 = vadd.f32 0.0, %v3816
      %v3818 = vpop.f32.mrb[0].mxu0
      %v3819 = vpop.f32.mrb[0].mxu0
      %v3820 = vadd.f32 0.0, %v3819
      %v3821 = vpop.f32.mrb[0].mxu0
      %3822 = vmatprep.mubr.bf16.mxu0 0
      %3823 = vmatmul.mubr.bf16.gmra.mrb[0].mxu0 %v3708
      %v3824 = vpop.f32.mrb[0].mxu0
      %v3825 = vadd.f32 0.0, %v3824
      %v3826 = vpop.f32.mrb[0].mxu0
      %v3827 = vpop.f32.mrb[0].mxu0
      %v3828 = vadd.f32 0.0, %v3827
      %v3829 = vpop.f32.mrb[0].mxu0
      %3830 = vmatprep.mubr.bf16.mxu0 0
      %3831 = vmatmul.mubr.bf16.gmra.mrb[0].mxu0 %v3711
      %v3832 = vpop.f32.mrb[0].mxu0
      %v3833 = vadd.f32 0.0, %v3832
      %v3834 = vpop.f32.mrb[0].mxu0
      %v3835 = vpop.f32.mrb[0].mxu0
      %v3836 = vadd.f32 0.0, %v3835
      %v3837 = vpop.f32.mrb[0].mxu0
      %3838 = vmatprep.mubr.bf16.mxu0 0
      %3839 = vmatmul.mubr.bf16.gmra.mrb[0].mxu0 %v3714
      %v3840 = vpop.f32.mrb[0].mxu0
      %v3841 = vadd.f32 0.0, %v3840
      %v3842 = vpop.f32.mrb[0].mxu0
      %v3843 = vpop.f32.mrb[0].mxu0
      %v3844 = vadd.f32 0.0, %v3843
      %v3845 = vpop.f32.mrb[0].mxu0
      %3846 = vmatprep.mubr.bf16.mxu0 0
      %3847 = vmatmul.mubr.bf16.gmra.mrb[0].mxu0 %v3717
      %v3848 = vpop.f32.mrb[0].mxu0
      %v3849 = vadd.f32 0.0, %v3848
      %v3850 = vpop.f32.mrb[0].mxu0
      %v3851 = vpop.f32.mrb[0].mxu0
      %v3852 = vadd.f32 0.0, %v3851
      %v3853 = vpop.f32.mrb[0].mxu0
      %3854 = vmatprep.mubr.bf16.mxu0 0
      %3855 = vmatmul.mubr.bf16.gmra.mrb[0].mxu0 %v3720
      %v3856 = vpop.f32.mrb[0].mxu0
      %v3857 = vadd.f32 0.0, %v3856
      %v3858 = vpop.f32.mrb[0].mxu0
      %v3859 = vpop.f32.mrb[0].mxu0
      %v3860 = vadd.f32 0.0, %v3859
      %v3861 = vpop.f32.mrb[0].mxu0
      %3862 = vmatprep.mubr.bf16.mxu0 0
      %3863 = vmatmul.mubr.bf16.gmra.mrb[0].mxu0 %v3723
      %v3864 = vpop.f32.mrb[0].mxu0
      %v3865 = vadd.f32 0.0, %v3864
      %v3866 = vpop.f32.mrb[0].mxu0
      %v3867 = vpop.f32.mrb[0].mxu0
      %v3868 = vadd.f32 0.0, %v3867
      %v3869 = vpop.f32.mrb[0].mxu0
      %3870 = vmatprep.mubr.bf16.mxu0 0
      %3871 = vmatmul.mubr.bf16.gmra.mrb[0].mxu0 %v3726
      %v3872 = vpop.f32.mrb[0].mxu0
      %v3873 = vadd.f32 0.0, %v3872
      %v3874 = vpop.f32.mrb[0].mxu0
      %v3875 = vpop.f32.mrb[0].mxu0
      %v3876 = vadd.f32 0.0, %v3875
      %v3877 = vpop.f32.mrb[0].mxu0
      %3878 = vmatprep.mubr.bf16.mxu0 0
      %3879 = vmatmul.mubr.bf16.gmra.mrb[0].mxu0 %v3729
      %v3880 = vpop.f32.mrb[0].mxu0
      %v3881 = vadd.f32 0.0, %v3880
      %v3882 = vpop.f32.mrb[0].mxu0
      %v3883 = vpop.f32.mrb[0].mxu0
      %v3884 = vadd.f32 0.0, %v3883
      %v3885 = vpop.f32.mrb[0].mxu0
      %3886 = vmatprep.mubr.bf16.mxu0 0
      %3887 = vmatmul.mubr.bf16.gmra.mrb[0].mxu0 %v3732
      %v3888 = vpop.f32.mrb[0].mxu0
      %v3889 = vadd.f32 0.0, %v3888
      %v3890 = vpop.f32.mrb[0].mxu0
      %v3891 = vpop.f32.mrb[0].mxu0
      %v3892 = vadd.f32 0.0, %v3891
      %v3893 = vpop.f32.mrb[0].mxu0
      %3894 = vdwg.mxu0
      %v3895 = vadd.f32 %v3503, %v3769
      %v3896 = vadd.f32 %v3506, %v3772
      %v3897 = vadd.f32 %v3511, %v3777
      %v3898 = vadd.f32 %v3514, %v3780
      %v3899 = vadd.f32 %v3519, %v3785
      %v3900 = vadd.f32 %v3522, %v3788
      %v3901 = vadd.f32 %v3527, %v3793
      %v3902 = vadd.f32 %v3530, %v3796
      %v3903 = vadd.f32 %v3535, %v3801
      %v3904 = vadd.f32 %v3538, %v3804
      %v3905 = vadd.f32 %v3543, %v3809
      %v3906 = vadd.f32 %v3546, %v3812
      %v3907 = vadd.f32 %v3551, %v3817
      %v3908 = vadd.f32 %v3554, %v3820
      %v3909 = vadd.f32 %v3559, %v3825
      %v3910 = vadd.f32 %v3562, %v3828
      %v3911 = vadd.f32 %v3567, %v3833
      %v3912 = vadd.f32 %v3570, %v3836
      %v3913 = vadd.f32 %v3575, %v3841
      %v3914 = vadd.f32 %v3578, %v3844
      %v3915 = vadd.f32 %v3583, %v3849
      %v3916 = vadd.f32 %v3586, %v3852
      %v3917 = vadd.f32 %v3591, %v3857
      %v3918 = vadd.f32 %v3594, %v3860
      %v3919 = vadd.f32 %v3599, %v3865
      %v3920 = vadd.f32 %v3602, %v3868
      %v3921 = vadd.f32 %v3607, %v3873
      %v3922 = vadd.f32 %v3610, %v3876
      %v3923 = vadd.f32 %v3615, %v3881
      %v3924 = vadd.f32 %v3618, %v3884
      %v3925 = vadd.f32 %v3623, %v3889
      %v3926 = vadd.f32 %v3626, %v3892
      %v3927 = vld [vmem:[%s3065] sm:$0xff]
      %v3928 = vld [vmem:[%s3065 + $0x8] sm:$0xff]
      %v3929 = vld [vmem:[%s3065 + $0x18] sm:$0xff]
      %v3930 = vld [vmem:[%s3065 + $0x20] sm:$0xff]
      %v3931 = vld [vmem:[%s3065 + $0x30] sm:$0xff]
      %v3932 = vld [vmem:[%s3065 + $0x38] sm:$0xff]
      %v3933 = vld [vmem:[%s3065 + $0x48] sm:$0xff]
      %v3934 = vld [vmem:[%s3065 + $0x50] sm:$0xff]
      %v3935 = vld [vmem:[%s3065 + $0x60] sm:$0xff]
      %v3936 = vld [vmem:[%s3065 + $0x68] sm:$0xff]
      %v3937 = vld [vmem:[%s3065 + $0x78] sm:$0xff]
      %v3938 = vld [vmem:[%s3065 + $0x80] sm:$0xff]
      %v3939 = vld [vmem:[%s3065 + $0x90] sm:$0xff]
      %v3940 = vld [vmem:[%s3065 + $0x98] sm:$0xff]
      %v3941 = vld [vmem:[%s3065 + $0xa8] sm:$0xff]
      %v3942 = vld [vmem:[%s3065 + $0xb0] sm:$0xff]
      %v3943 = vld [vmem:[%s3065 + $0xc0] sm:$0xff]
      %v3944 = vld [vmem:[%s3065 + $0xc8] sm:$0xff]
      %v3945 = vld [vmem:[%s3065 + $0xd8] sm:$0xff]
      %v3946 = vld [vmem:[%s3065 + $0xe0] sm:$0xff]
      %v3947 = vld [vmem:[%s3065 + $0xf0] sm:$0xff]
      %v3948 = vld [vmem:[%s3065 + $0xf8] sm:$0xff]
      %v3949 = vld [vmem:[%s3065 + $0x108] sm:$0xff]
      %v3950 = vld [vmem:[%s3065 + $0x110] sm:$0xff]
      %v3951 = vld [vmem:[%s3065 + $0x120] sm:$0xff]
      %v3952 = vld [vmem:[%s3065 + $0x128] sm:$0xff]
      %v3953 = vld [vmem:[%s3065 + $0x138] sm:$0xff]
      %v3954 = vld [vmem:[%s3065 + $0x140] sm:$0xff]
      %v3955 = vld [vmem:[%s3065 + $0x150] sm:$0xff]
      %v3956 = vld [vmem:[%s3065 + $0x158] sm:$0xff]
      %v3957 = vld [vmem:[%s3065 + $0x168] sm:$0xff]
      %v3958 = vld [vmem:[%s3065 + $0x170] sm:$0xff]
      %v3959 = vpack.c.bf16 %v3928, %v3927
      %v3960 = vpack.c.bf16 %v3930, %v3929
      %v3961 = vpack.c.bf16 %v3932, %v3931
      %v3962 = vpack.c.bf16 %v3934, %v3933
      %v3963 = vpack.c.bf16 %v3936, %v3935
      %v3964 = vpack.c.bf16 %v3938, %v3937
      %v3965 = vpack.c.bf16 %v3940, %v3939
      %v3966 = vpack.c.bf16 %v3942, %v3941
      %v3967 = vpack.c.bf16 %v3944, %v3943
      %v3968 = vpack.c.bf16 %v3946, %v3945
      %v3969 = vpack.c.bf16 %v3948, %v3947
      %v3970 = vpack.c.bf16 %v3950, %v3949
      %v3971 = vpack.c.bf16 %v3952, %v3951
      %v3972 = vpack.c.bf16 %v3954, %v3953
      %v3973 = vpack.c.bf16 %v3956, %v3955
      %v3974 = vpack.c.bf16 %v3958, %v3957
      %s3975 = scalar_lea.vmem %s4, 24
      %v3976 = vld [vmem:[%s3975] sm:$0xf]
      %v3977 = vld [vmem:[%s3975 + $0x4] sm:$0xf]
      %v3980 = vunpack.c.l.b16 %v3976
      %v3981 = vunpack.c.l.b16 %v3977
      %v3982 = vpack.c.b16 %v3981, %v3980
      %v3985 = vsel %vm387, %v3959, 0
      %v3988 = vsel %vm387, %v3960, 0
      %v3991 = vsel %vm387, %v3961, 0
      %v3994 = vsel %vm387, %v3962, 0
      %v3997 = vsel %vm387, %v3963, 0
      %v4000 = vsel %vm387, %v3964, 0
      %v4003 = vsel %vm387, %v3965, 0
      %v4006 = vsel %vm387, %v3966, 0
      %v4009 = vsel %vm387, %v3967, 0
      %v4012 = vsel %vm387, %v3968, 0
      %v4015 = vsel %vm387, %v3969, 0
      %v4018 = vsel %vm387, %v3970, 0
      %v4021 = vsel %vm387, %v3971, 0
      %v4024 = vsel %vm387, %v3972, 0
      %v4027 = vsel %vm387, %v3973, 0
      %v4030 = vsel %vm387, %v3974, 0
      %4032 = vmatprep.subr.bf16.mxu0 0
      %4033 = vmatpush1.bf16.msra.mxu0 %v3982
      %4034 = vmatprep.subr.bf16.mxu0 0
      %4035 = vmatpush1.bf16.msra.mxu0 0
      %4036 = vmatprep.subr.bf16.mxu0 0
      %4037 = vmatpush1.bf16.msra.mxu0 0
      %4038 = vmatprep.subr.bf16.mxu0 0
      %4039 = vmatpush1.bf16.msra.mxu0 0
      %4040 = vmatprep.subr.bf16.mxu0 0
      %4041 = vmatpush1.bf16.msra.mxu0 0
      %4042 = vmatprep.subr.bf16.mxu0 0
      %4043 = vmatpush1.bf16.msra.mxu0 0
      %4044 = vmatprep.subr.bf16.mxu0 0
      %4045 = vmatpush1.bf16.msra.mxu0 0
      %4046 = vmatprep.subr.bf16.mxu0 0
      %4047 = vmatpush1.bf16.msra.mxu0 0
      %4048 = vmatprep.subr.bf16.mxu0 0
      %4049 = vmatpush1.bf16.msra.mxu0 0
      %4050 = vmatprep.subr.bf16.mxu0 0
      %4051 = vmatpush1.bf16.msra.mxu0 0
      %4052 = vmatprep.subr.bf16.mxu0 0
      %4053 = vmatpush1.bf16.msra.mxu0 0
      %4054 = vmatprep.subr.bf16.mxu0 0
      %4055 = vmatpush1.bf16.msra.mxu0 0
      %4056 = vmatprep.subr.bf16.mxu0 0
      %4057 = vmatpush1.bf16.msra.mxu0 0
      %4058 = vmatprep.subr.bf16.mxu0 0
      %4059 = vmatpush1.bf16.msra.mxu0 0
      %4060 = vmatprep.subr.bf16.mxu0 0
      %4061 = vmatpush1.bf16.msra.mxu0 0
      %4062 = vmatprep.subr.bf16.mxu0 0
      %4063 = vmatpush1.bf16.msra.mxu0 0
      %4064 = vmatprep.mubr.bf16.mxu0 0
      %4065 = vmatmul.mubr.bf16.gmra.mrb[0].mxu0 %v3985
      %v4066 = vpop.f32.mrb[0].mxu0
      %v4067 = vadd.f32 0.0, %v4066
      %v4068 = vpop.f32.mrb[0].mxu0
      %v4069 = vpop.f32.mrb[0].mxu0
      %v4070 = vadd.f32 0.0, %v4069
      %v4071 = vpop.f32.mrb[0].mxu0
      %4072 = vmatprep.mubr.bf16.mxu0 0
      %4073 = vmatmul.mubr.bf16.gmra.mrb[0].mxu0 %v3988
      %v4074 = vpop.f32.mrb[0].mxu0
      %v4075 = vadd.f32 0.0, %v4074
      %v4076 = vpop.f32.mrb[0].mxu0
      %v4077 = vpop.f32.mrb[0].mxu0
      %v4078 = vadd.f32 0.0, %v4077
      %v4079 = vpop.f32.mrb[0].mxu0
      %4080 = vmatprep.mubr.bf16.mxu0 0
      %4081 = vmatmul.mubr.bf16.gmra.mrb[0].mxu0 %v3991
      %v4082 = vpop.f32.mrb[0].mxu0
      %v4083 = vadd.f32 0.0, %v4082
      %v4084 = vpop.f32.mrb[0].mxu0
      %v4085 = vpop.f32.mrb[0].mxu0
      %v4086 = vadd.f32 0.0, %v4085
      %v4087 = vpop.f32.mrb[0].mxu0
      %4088 = vmatprep.mubr.bf16.mxu0 0
      %4089 = vmatmul.mubr.bf16.gmra.mrb[0].mxu0 %v3994
      %v4090 = vpop.f32.mrb[0].mxu0
      %v4091 = vadd.f32 0.0, %v4090
      %v4092 = vpop.f32.mrb[0].mxu0
      %v4093 = vpop.f32.mrb[0].mxu0
      %v4094 = vadd.f32 0.0, %v4093
      %v4095 = vpop.f32.mrb[0].mxu0
      %4096 = vmatprep.mubr.bf16.mxu0 0
      %4097 = vmatmul.mubr.bf16.gmra.mrb[0].mxu0 %v3997
      %v4098 = vpop.f32.mrb[0].mxu0
      %v4099 = vadd.f32 0.0, %v4098
      %v4100 = vpop.f32.mrb[0].mxu0
      %v4101 = vpop.f32.mrb[0].mxu0
      %v4102 = vadd.f32 0.0, %v4101
      %v4103 = vpop.f32.mrb[0].mxu0
      %4104 = vmatprep.mubr.bf16.mxu0 0
      %4105 = vmatmul.mubr.bf16.gmra.mrb[0].mxu0 %v4000
      %v4106 = vpop.f32.mrb[0].mxu0
      %v4107 = vadd.f32 0.0, %v4106
      %v4108 = vpop.f32.mrb[0].mxu0
      %v4109 = vpop.f32.mrb[0].mxu0
      %v4110 = vadd.f32 0.0, %v4109
      %v4111 = vpop.f32.mrb[0].mxu0
      %4112 = vmatprep.mubr.bf16.mxu0 0
      %4113 = vmatmul.mubr.bf16.gmra.mrb[0].mxu0 %v4003
      %v4114 = vpop.f32.mrb[0].mxu0
      %v4115 = vadd.f32 0.0, %v4114
      %v4116 = vpop.f32.mrb[0].mxu0
      %v4117 = vpop.f32.mrb[0].mxu0
      %v4118 = vadd.f32 0.0, %v4117
      %v4119 = vpop.f32.mrb[0].mxu0
      %4120 = vmatprep.mubr.bf16.mxu0 0
      %4121 = vmatmul.mubr.bf16.gmra.mrb[0].mxu0 %v4006
      %v4122 = vpop.f32.mrb[0].mxu0
      %v4123 = vadd.f32 0.0, %v4122
      %v4124 = vpop.f32.mrb[0].mxu0
      %v4125 = vpop.f32.mrb[0].mxu0
      %v4126 = vadd.f32 0.0, %v4125
      %v4127 = vpop.f32.mrb[0].mxu0
      %4128 = vmatprep.mubr.bf16.mxu0 0
      %4129 = vmatmul.mubr.bf16.gmra.mrb[0].mxu0 %v4009
      %v4130 = vpop.f32.mrb[0].mxu0
      %v4131 = vadd.f32 0.0, %v4130
      %v4132 = vpop.f32.mrb[0].mxu0
      %v4133 = vpop.f32.mrb[0].mxu0
      %v4134 = vadd.f32 0.0, %v4133
      %v4135 = vpop.f32.mrb[0].mxu0
      %4136 = vmatprep.mubr.bf16.mxu0 0
      %4137 = vmatmul.mubr.bf16.gmra.mrb[0].mxu0 %v4012
      %v4138 = vpop.f32.mrb[0].mxu0
      %v4139 = vadd.f32 0.0, %v4138
      %v4140 = vpop.f32.mrb[0].mxu0
      %v4141 = vpop.f32.mrb[0].mxu0
      %v4142 = vadd.f32 0.0, %v4141
      %v4143 = vpop.f32.mrb[0].mxu0
      %4144 = vmatprep.mubr.bf16.mxu0 0
      %4145 = vmatmul.mubr.bf16.gmra.mrb[0].mxu0 %v4015
      %v4146 = vpop.f32.mrb[0].mxu0
      %v4147 = vadd.f32 0.0, %v4146
      %v4148 = vpop.f32.mrb[0].mxu0
      %v4149 = vpop.f32.mrb[0].mxu0
      %v4150 = vadd.f32 0.0, %v4149
      %v4151 = vpop.f32.mrb[0].mxu0
      %4152 = vmatprep.mubr.bf16.mxu0 0
      %4153 = vmatmul.mubr.bf16.gmra.mrb[0].mxu0 %v4018
      %v4154 = vpop.f32.mrb[0].mxu0
      %v4155 = vadd.f32 0.0, %v4154
      %v4156 = vpop.f32.mrb[0].mxu0
      %v4157 = vpop.f32.mrb[0].mxu0
      %v4158 = vadd.f32 0.0, %v4157
      %v4159 = vpop.f32.mrb[0].mxu0
      %4160 = vmatprep.mubr.bf16.mxu0 0
      %4161 = vmatmul.mubr.bf16.gmra.mrb[0].mxu0 %v4021
      %v4162 = vpop.f32.mrb[0].mxu0
      %v4163 = vadd.f32 0.0, %v4162
      %v4164 = vpop.f32.mrb[0].mxu0
      %v4165 = vpop.f32.mrb[0].mxu0
      %v4166 = vadd.f32 0.0, %v4165
      %v4167 = vpop.f32.mrb[0].mxu0
      %4168 = vmatprep.mubr.bf16.mxu0 0
      %4169 = vmatmul.mubr.bf16.gmra.mrb[0].mxu0 %v4024
      %v4170 = vpop.f32.mrb[0].mxu0
      %v4171 = vadd.f32 0.0, %v4170
      %v4172 = vpop.f32.mrb[0].mxu0
      %v4173 = vpop.f32.mrb[0].mxu0
      %v4174 = vadd.f32 0.0, %v4173
      %v4175 = vpop.f32.mrb[0].mxu0
      %4176 = vmatprep.mubr.bf16.mxu0 0
      %4177 = vmatmul.mubr.bf16.gmra.mrb[0].mxu0 %v4027
      %v4178 = vpop.f32.mrb[0].mxu0
      %v4179 = vadd.f32 0.0, %v4178
      %v4180 = vpop.f32.mrb[0].mxu0
      %v4181 = vpop.f32.mrb[0].mxu0
      %v4182 = vadd.f32 0.0, %v4181
      %v4183 = vpop.f32.mrb[0].mxu0
      %4184 = vmatprep.mubr.bf16.mxu0 0
      %4185 = vmatmul.mubr.bf16.gmra.mrb[0].mxu0 %v4030
      %v4186 = vpop.f32.mrb[0].mxu0
      %v4187 = vadd.f32 0.0, %v4186
      %v4188 = vpop.f32.mrb[0].mxu0
      %v4189 = vpop.f32.mrb[0].mxu0
      %v4190 = vadd.f32 0.0, %v4189
      %v4191 = vpop.f32.mrb[0].mxu0
      %4192 = vdwg.mxu0
      %v4193 = vadd.f32 %v3895, %v4067
      %v4194 = vadd.f32 %v3896, %v4070
      %v4195 = vadd.f32 %v3897, %v4075
      %v4196 = vadd.f32 %v3898, %v4078
      %v4197 = vadd.f32 %v3899, %v4083
      %v4198 = vadd.f32 %v3900, %v4086
      %v4199 = vadd.f32 %v3901, %v4091
      %v4200 = vadd.f32 %v3902, %v4094
      %v4201 = vadd.f32 %v3903, %v4099
      %v4202 = vadd.f32 %v3904, %v4102
      %v4203 = vadd.f32 %v3905, %v4107
      %v4204 = vadd.f32 %v3906, %v4110
      %v4205 = vadd.f32 %v3907, %v4115
      %v4206 = vadd.f32 %v3908, %v4118
      %v4207 = vadd.f32 %v3909, %v4123
      %v4208 = vadd.f32 %v3910, %v4126
      %v4209 = vadd.f32 %v3911, %v4131
      %v4210 = vadd.f32 %v3912, %v4134
      %v4211 = vadd.f32 %v3913, %v4139
      %v4212 = vadd.f32 %v3914, %v4142
      %v4213 = vadd.f32 %v3915, %v4147
      %v4214 = vadd.f32 %v3916, %v4150
      %v4215 = vadd.f32 %v3917, %v4155
      %v4216 = vadd.f32 %v3918, %v4158
      %v4217 = vadd.f32 %v3919, %v4163
      %v4218 = vadd.f32 %v3920, %v4166
      %v4219 = vadd.f32 %v3921, %v4171
      %v4220 = vadd.f32 %v3922, %v4174
      %v4221 = vadd.f32 %v3923, %v4179
      %v4222 = vadd.f32 %v3924, %v4182
      %v4223 = vadd.f32 %v3925, %v4187
      %v4224 = vadd.f32 %v3926, %v4190
      %v4225 = vld [vmem:[%s3065 + $0x1] sm:$0xff]
      %v4226 = vld [vmem:[%s3065 + $0x9] sm:$0xff]
      %v4227 = vld [vmem:[%s3065 + $0x19] sm:$0xff]
      %v4228 = vld [vmem:[%s3065 + $0x21] sm:$0xff]
      %v4229 = vld [vmem:[%s3065 + $0x31] sm:$0xff]
      %v4230 = vld [vmem:[%s3065 + $0x39] sm:$0xff]
      %v4231 = vld [vmem:[%s3065 + $0x49] sm:$0xff]
      %v4232 = vld [vmem:[%s3065 + $0x51] sm:$0xff]
      %v4233 = vld [vmem:[%s3065 + $0x61] sm:$0xff]
      %v4234 = vld [vmem:[%s3065 + $0x69] sm:$0xff]
      %v4235 = vld [vmem:[%s3065 + $0x79] sm:$0xff]
      %v4236 = vld [vmem:[%s3065 + $0x81] sm:$0xff]
      %v4237 = vld [vmem:[%s3065 + $0x91] sm:$0xff]
      %v4238 = vld [vmem:[%s3065 + $0x99] sm:$0xff]
      %v4239 = vld [vmem:[%s3065 + $0xa9] sm:$0xff]
      %v4240 = vld [vmem:[%s3065 + $0xb1] sm:$0xff]
      %v4241 = vld [vmem:[%s3065 + $0xc1] sm:$0xff]
      %v4242 = vld [vmem:[%s3065 + $0xc9] sm:$0xff]
      %v4243 = vld [vmem:[%s3065 + $0xd9] sm:$0xff]
      %v4244 = vld [vmem:[%s3065 + $0xe1] sm:$0xff]
      %v4245 = vld [vmem:[%s3065 + $0xf1] sm:$0xff]
      %v4246 = vld [vmem:[%s3065 + $0xf9] sm:$0xff]
      %v4247 = vld [vmem:[%s3065 + $0x109] sm:$0xff]
      %v4248 = vld [vmem:[%s3065 + $0x111] sm:$0xff]
      %v4249 = vld [vmem:[%s3065 + $0x121] sm:$0xff]
      %v4250 = vld [vmem:[%s3065 + $0x129] sm:$0xff]
      %v4251 = vld [vmem:[%s3065 + $0x139] sm:$0xff]
      %v4252 = vld [vmem:[%s3065 + $0x141] sm:$0xff]
      %v4253 = vld [vmem:[%s3065 + $0x151] sm:$0xff]
      %v4254 = vld [vmem:[%s3065 + $0x159] sm:$0xff]
      %v4255 = vld [vmem:[%s3065 + $0x169] sm:$0xff]
      %v4256 = vld [vmem:[%s3065 + $0x171] sm:$0xff]
      %v4257 = vpack.c.bf16 %v4226, %v4225
      %v4258 = vpack.c.bf16 %v4228, %v4227
      %v4259 = vpack.c.bf16 %v4230, %v4229
      %v4260 = vpack.c.bf16 %v4232, %v4231
      %v4261 = vpack.c.bf16 %v4234, %v4233
      %v4262 = vpack.c.bf16 %v4236, %v4235
      %v4263 = vpack.c.bf16 %v4238, %v4237
      %v4264 = vpack.c.bf16 %v4240, %v4239
      %v4265 = vpack.c.bf16 %v4242, %v4241
      %v4266 = vpack.c.bf16 %v4244, %v4243
      %v4267 = vpack.c.bf16 %v4246, %v4245
      %v4268 = vpack.c.bf16 %v4248, %v4247
      %v4269 = vpack.c.bf16 %v4250, %v4249
      %v4270 = vpack.c.bf16 %v4252, %v4251
      %v4271 = vpack.c.bf16 %v4254, %v4253
      %v4272 = vpack.c.bf16 %v4256, %v4255
      %s4273 = scalar_lea.vmem %s4, 32
      %v4274 = vld [vmem:[%s4273] sm:$0xf]
      %v4275 = vld [vmem:[%s4273 + $0x4] sm:$0xf]
      %v4278 = vunpack.c.l.b16 %v4274
      %v4279 = vunpack.c.l.b16 %v4275
      %v4280 = vpack.c.b16 %v4279, %v4278
      %v4283 = vsel %vm387, %v4257, 0
      %v4286 = vsel %vm387, %v4258, 0
      %v4289 = vsel %vm387, %v4259, 0
      %v4292 = vsel %vm387, %v4260, 0
      %v4295 = vsel %vm387, %v4261, 0
      %v4298 = vsel %vm387, %v4262, 0
      %v4301 = vsel %vm387, %v4263, 0
      %v4304 = vsel %vm387, %v4264, 0
      %v4307 = vsel %vm387, %v4265, 0
      %v4310 = vsel %vm387, %v4266, 0
      %v4313 = vsel %vm387, %v4267, 0
      %v4316 = vsel %vm387, %v4268, 0
      %v4319 = vsel %vm387, %v4269, 0
      %v4322 = vsel %vm387, %v4270, 0
      %v4325 = vsel %vm387, %v4271, 0
      %v4328 = vsel %vm387, %v4272, 0
      %4330 = vmatprep.subr.bf16.mxu0 0
      %4331 = vmatpush1.bf16.msra.mxu0 %v4280
      %4332 = vmatprep.subr.bf16.mxu0 0
      %4333 = vmatpush1.bf16.msra.mxu0 0
      %4334 = vmatprep.subr.bf16.mxu0 0
      %4335 = vmatpush1.bf16.msra.mxu0 0
      %4336 = vmatprep.subr.bf16.mxu0 0
      %4337 = vmatpush1.bf16.msra.mxu0 0
      %4338 = vmatprep.subr.bf16.mxu0 0
      %4339 = vmatpush1.bf16.msra.mxu0 0
      %4340 = vmatprep.subr.bf16.mxu0 0
      %4341 = vmatpush1.bf16.msra.mxu0 0
      %4342 = vmatprep.subr.bf16.mxu0 0
      %4343 = vmatpush1.bf16.msra.mxu0 0
      %4344 = vmatprep.subr.bf16.mxu0 0
      %4345 = vmatpush1.bf16.msra.mxu0 0
      %4346 = vmatprep.subr.bf16.mxu0 0
      %4347 = vmatpush1.bf16.msra.mxu0 0
      %4348 = vmatprep.subr.bf16.mxu0 0
      %4349 = vmatpush1.bf16.msra.mxu0 0
      %4350 = vmatprep.subr.bf16.mxu0 0
      %4351 = vmatpush1.bf16.msra.mxu0 0
      %4352 = vmatprep.subr.bf16.mxu0 0
      %4353 = vmatpush1.bf16.msra.mxu0 0
      %4354 = vmatprep.subr.bf16.mxu0 0
      %4355 = vmatpush1.bf16.msra.mxu0 0
      %4356 = vmatprep.subr.bf16.mxu0 0
      %4357 = vmatpush1.bf16.msra.mxu0 0
      %4358 = vmatprep.subr.bf16.mxu0 0
      %4359 = vmatpush1.bf16.msra.mxu0 0
      %4360 = vmatprep.subr.bf16.mxu0 0
      %4361 = vmatpush1.bf16.msra.mxu0 0
      %4362 = vmatprep.mubr.bf16.mxu0 0
      %4363 = vmatmul.mubr.bf16.gmra.mrb[0].mxu0 %v4283
      %v4364 = vpop.f32.mrb[0].mxu0
      %v4365 = vadd.f32 0.0, %v4364
      %v4366 = vpop.f32.mrb[0].mxu0
      %v4367 = vpop.f32.mrb[0].mxu0
      %v4368 = vadd.f32 0.0, %v4367
      %v4369 = vpop.f32.mrb[0].mxu0
      %4370 = vmatprep.mubr.bf16.mxu0 0
      %4371 = vmatmul.mubr.bf16.gmra.mrb[0].mxu0 %v4286
      %v4372 = vpop.f32.mrb[0].mxu0
      %v4373 = vadd.f32 0.0, %v4372
      %v4374 = vpop.f32.mrb[0].mxu0
      %v4375 = vpop.f32.mrb[0].mxu0
      %v4376 = vadd.f32 0.0, %v4375
      %v4377 = vpop.f32.mrb[0].mxu0
      %4378 = vmatprep.mubr.bf16.mxu0 0
      %4379 = vmatmul.mubr.bf16.gmra.mrb[0].mxu0 %v4289
      %v4380 = vpop.f32.mrb[0].mxu0
      %v4381 = vadd.f32 0.0, %v4380
      %v4382 = vpop.f32.mrb[0].mxu0
      %v4383 = vpop.f32.mrb[0].mxu0
      %v4384 = vadd.f32 0.0, %v4383
      %v4385 = vpop.f32.mrb[0].mxu0
      %4386 = vmatprep.mubr.bf16.mxu0 0
      %4387 = vmatmul.mubr.bf16.gmra.mrb[0].mxu0 %v4292
      %v4388 = vpop.f32.mrb[0].mxu0
      %v4389 = vadd.f32 0.0, %v4388
      %v4390 = vpop.f32.mrb[0].mxu0
      %v4391 = vpop.f32.mrb[0].mxu0
      %v4392 = vadd.f32 0.0, %v4391
      %v4393 = vpop.f32.mrb[0].mxu0
      %4394 = vmatprep.mubr.bf16.mxu0 0
      %4395 = vmatmul.mubr.bf16.gmra.mrb[0].mxu0 %v4295
      %v4396 = vpop.f32.mrb[0].mxu0
      %v4397 = vadd.f32 0.0, %v4396
      %v4398 = vpop.f32.mrb[0].mxu0
      %v4399 = vpop.f32.mrb[0].mxu0
      %v4400 = vadd.f32 0.0, %v4399
      %v4401 = vpop.f32.mrb[0].mxu0
      %4402 = vmatprep.mubr.bf16.mxu0 0
      %4403 = vmatmul.mubr.bf16.gmra.mrb[0].mxu0 %v4298
      %v4404 = vpop.f32.mrb[0].mxu0
      %v4405 = vadd.f32 0.0, %v4404
      %v4406 = vpop.f32.mrb[0].mxu0
      %v4407 = vpop.f32.mrb[0].mxu0
      %v4408 = vadd.f32 0.0, %v4407
      %v4409 = vpop.f32.mrb[0].mxu0
      %4410 = vmatprep.mubr.bf16.mxu0 0
      %4411 = vmatmul.mubr.bf16.gmra.mrb[0].mxu0 %v4301
      %v4412 = vpop.f32.mrb[0].mxu0
      %v4413 = vadd.f32 0.0, %v4412
      %v4414 = vpop.f32.mrb[0].mxu0
      %v4415 = vpop.f32.mrb[0].mxu0
      %v4416 = vadd.f32 0.0, %v4415
      %v4417 = vpop.f32.mrb[0].mxu0
      %4418 = vmatprep.mubr.bf16.mxu0 0
      %4419 = vmatmul.mubr.bf16.gmra.mrb[0].mxu0 %v4304
      %v4420 = vpop.f32.mrb[0].mxu0
      %v4421 = vadd.f32 0.0, %v4420
      %v4422 = vpop.f32.mrb[0].mxu0
      %v4423 = vpop.f32.mrb[0].mxu0
      %v4424 = vadd.f32 0.0, %v4423
      %v4425 = vpop.f32.mrb[0].mxu0
      %4426 = vmatprep.mubr.bf16.mxu0 0
      %4427 = vmatmul.mubr.bf16.gmra.mrb[0].mxu0 %v4307
      %v4428 = vpop.f32.mrb[0].mxu0
      %v4429 = vadd.f32 0.0, %v4428
      %v4430 = vpop.f32.mrb[0].mxu0
      %v4431 = vpop.f32.mrb[0].mxu0
      %v4432 = vadd.f32 0.0, %v4431
      %v4433 = vpop.f32.mrb[0].mxu0
      %4434 = vmatprep.mubr.bf16.mxu0 0
      %4435 = vmatmul.mubr.bf16.gmra.mrb[0].mxu0 %v4310
      %v4436 = vpop.f32.mrb[0].mxu0
      %v4437 = vadd.f32 0.0, %v4436
      %v4438 = vpop.f32.mrb[0].mxu0
      %v4439 = vpop.f32.mrb[0].mxu0
      %v4440 = vadd.f32 0.0, %v4439
      %v4441 = vpop.f32.mrb[0].mxu0
      %4442 = vmatprep.mubr.bf16.mxu0 0
      %4443 = vmatmul.mubr.bf16.gmra.mrb[0].mxu0 %v4313
      %v4444 = vpop.f32.mrb[0].mxu0
      %v4445 = vadd.f32 0.0, %v4444
      %v4446 = vpop.f32.mrb[0].mxu0
      %v4447 = vpop.f32.mrb[0].mxu0
      %v4448 = vadd.f32 0.0, %v4447
      %v4449 = vpop.f32.mrb[0].mxu0
      %4450 = vmatprep.mubr.bf16.mxu0 0
      %4451 = vmatmul.mubr.bf16.gmra.mrb[0].mxu0 %v4316
      %v4452 = vpop.f32.mrb[0].mxu0
      %v4453 = vadd.f32 0.0, %v4452
      %v4454 = vpop.f32.mrb[0].mxu0
      %v4455 = vpop.f32.mrb[0].mxu0
      %v4456 = vadd.f32 0.0, %v4455
      %v4457 = vpop.f32.mrb[0].mxu0
      %4458 = vmatprep.mubr.bf16.mxu0 0
      %4459 = vmatmul.mubr.bf16.gmra.mrb[0].mxu0 %v4319
      %v4460 = vpop.f32.mrb[0].mxu0
      %v4461 = vadd.f32 0.0, %v4460
      %v4462 = vpop.f32.mrb[0].mxu0
      %v4463 = vpop.f32.mrb[0].mxu0
      %v4464 = vadd.f32 0.0, %v4463
      %v4465 = vpop.f32.mrb[0].mxu0
      %4466 = vmatprep.mubr.bf16.mxu0 0
      %4467 = vmatmul.mubr.bf16.gmra.mrb[0].mxu0 %v4322
      %v4468 = vpop.f32.mrb[0].mxu0
      %v4469 = vadd.f32 0.0, %v4468
      %v4470 = vpop.f32.mrb[0].mxu0
      %v4471 = vpop.f32.mrb[0].mxu0
      %v4472 = vadd.f32 0.0, %v4471
      %v4473 = vpop.f32.mrb[0].mxu0
      %4474 = vmatprep.mubr.bf16.mxu0 0
      %4475 = vmatmul.mubr.bf16.gmra.mrb[0].mxu0 %v4325
      %v4476 = vpop.f32.mrb[0].mxu0
      %v4477 = vadd.f32 0.0, %v4476
      %v4478 = vpop.f32.mrb[0].mxu0
      %v4479 = vpop.f32.mrb[0].mxu0
      %v4480 = vadd.f32 0.0, %v4479
      %v4481 = vpop.f32.mrb[0].mxu0
      %4482 = vmatprep.mubr.bf16.mxu0 0
      %4483 = vmatmul.mubr.bf16.gmra.mrb[0].mxu0 %v4328
      %v4484 = vpop.f32.mrb[0].mxu0
      %v4485 = vadd.f32 0.0, %v4484
      %v4486 = vpop.f32.mrb[0].mxu0
      %v4487 = vpop.f32.mrb[0].mxu0
      %v4488 = vadd.f32 0.0, %v4487
      %v4489 = vpop.f32.mrb[0].mxu0
      %4490 = vdwg.mxu0
      %v4491 = vadd.f32 %v4193, %v4365
      %v4492 = vadd.f32 %v4194, %v4368
      %v4493 = vadd.f32 %v4195, %v4373
      %v4494 = vadd.f32 %v4196, %v4376
      %v4495 = vadd.f32 %v4197, %v4381
      %v4496 = vadd.f32 %v4198, %v4384
      %v4497 = vadd.f32 %v4199, %v4389
      %v4498 = vadd.f32 %v4200, %v4392
      %v4499 = vadd.f32 %v4201, %v4397
      %v4500 = vadd.f32 %v4202, %v4400
      %v4501 = vadd.f32 %v4203, %v4405
      %v4502 = vadd.f32 %v4204, %v4408
      %v4503 = vadd.f32 %v4205, %v4413
      %v4504 = vadd.f32 %v4206, %v4416
      %v4505 = vadd.f32 %v4207, %v4421
      %v4506 = vadd.f32 %v4208, %v4424
      %v4507 = vadd.f32 %v4209, %v4429
      %v4508 = vadd.f32 %v4210, %v4432
      %v4509 = vadd.f32 %v4211, %v4437
      %v4510 = vadd.f32 %v4212, %v4440
      %v4511 = vadd.f32 %v4213, %v4445
      %v4512 = vadd.f32 %v4214, %v4448
      %v4513 = vadd.f32 %v4215, %v4453
      %v4514 = vadd.f32 %v4216, %v4456
      %v4515 = vadd.f32 %v4217, %v4461
      %v4516 = vadd.f32 %v4218, %v4464
      %v4517 = vadd.f32 %v4219, %v4469
      %v4518 = vadd.f32 %v4220, %v4472
      %v4519 = vadd.f32 %v4221, %v4477
      %v4520 = vadd.f32 %v4222, %v4480
      %v4521 = vadd.f32 %v4223, %v4485
      %v4522 = vadd.f32 %v4224, %v4488
      %v4523 = vld [vmem:[%s3065 + $0x2] sm:$0xff]
      %v4524 = vld [vmem:[%s3065 + $0xa] sm:$0xff]
      %v4525 = vld [vmem:[%s3065 + $0x1a] sm:$0xff]
      %v4526 = vld [vmem:[%s3065 + $0x22] sm:$0xff]
      %v4527 = vld [vmem:[%s3065 + $0x32] sm:$0xff]
      %v4528 = vld [vmem:[%s3065 + $0x3a] sm:$0xff]
      %v4529 = vld [vmem:[%s3065 + $0x4a] sm:$0xff]
      %v4530 = vld [vmem:[%s3065 + $0x52] sm:$0xff]
      %v4531 = vld [vmem:[%s3065 + $0x62] sm:$0xff]
      %v4532 = vld [vmem:[%s3065 + $0x6a] sm:$0xff]
      %v4533 = vld [vmem:[%s3065 + $0x7a] sm:$0xff]
      %v4534 = vld [vmem:[%s3065 + $0x82] sm:$0xff]
      %v4535 = vld [vmem:[%s3065 + $0x92] sm:$0xff]
      %v4536 = vld [vmem:[%s3065 + $0x9a] sm:$0xff]
      %v4537 = vld [vmem:[%s3065 + $0xaa] sm:$0xff]
      %v4538 = vld [vmem:[%s3065 + $0xb2] sm:$0xff]
      %v4539 = vld [vmem:[%s3065 + $0xc2] sm:$0xff]
      %v4540 = vld [vmem:[%s3065 + $0xca] sm:$0xff]
      %v4541 = vld [vmem:[%s3065 + $0xda] sm:$0xff]
      %v4542 = vld [vmem:[%s3065 + $0xe2] sm:$0xff]
      %v4543 = vld [vmem:[%s3065 + $0xf2] sm:$0xff]
      %v4544 = vld [vmem:[%s3065 + $0xfa] sm:$0xff]
      %v4545 = vld [vmem:[%s3065 + $0x10a] sm:$0xff]
      %v4546 = vld [vmem:[%s3065 + $0x112] sm:$0xff]
      %v4547 = vld [vmem:[%s3065 + $0x122] sm:$0xff]
      %v4548 = vld [vmem:[%s3065 + $0x12a] sm:$0xff]
      %v4549 = vld [vmem:[%s3065 + $0x13a] sm:$0xff]
      %v4550 = vld [vmem:[%s3065 + $0x142] sm:$0xff]
      %v4551 = vld [vmem:[%s3065 + $0x152] sm:$0xff]
      %v4552 = vld [vmem:[%s3065 + $0x15a] sm:$0xff]
      %v4553 = vld [vmem:[%s3065 + $0x16a] sm:$0xff]
      %v4554 = vld [vmem:[%s3065 + $0x172] sm:$0xff]
      %v4555 = vpack.c.bf16 %v4524, %v4523
      %v4556 = vpack.c.bf16 %v4526, %v4525
      %v4557 = vpack.c.bf16 %v4528, %v4527
      %v4558 = vpack.c.bf16 %v4530, %v4529
      %v4559 = vpack.c.bf16 %v4532, %v4531
      %v4560 = vpack.c.bf16 %v4534, %v4533
      %v4561 = vpack.c.bf16 %v4536, %v4535
      %v4562 = vpack.c.bf16 %v4538, %v4537
      %v4563 = vpack.c.bf16 %v4540, %v4539
      %v4564 = vpack.c.bf16 %v4542, %v4541
      %v4565 = vpack.c.bf16 %v4544, %v4543
      %v4566 = vpack.c.bf16 %v4546, %v4545
      %v4567 = vpack.c.bf16 %v4548, %v4547
      %v4568 = vpack.c.bf16 %v4550, %v4549
      %v4569 = vpack.c.bf16 %v4552, %v4551
      %v4570 = vpack.c.bf16 %v4554, %v4553
      %s4571 = scalar_lea.vmem %s4, 40
      %v4572 = vld [vmem:[%s4571] sm:$0xf]
      %v4573 = vld [vmem:[%s4571 + $0x4] sm:$0xf]
      %v4576 = vunpack.c.l.b16 %v4572
      %v4577 = vunpack.c.l.b16 %v4573
      %v4578 = vpack.c.b16 %v4577, %v4576
      %v4581 = vsel %vm387, %v4555, 0
      %v4584 = vsel %vm387, %v4556, 0
      %v4587 = vsel %vm387, %v4557, 0
      %v4590 = vsel %vm387, %v4558, 0
      %v4593 = vsel %vm387, %v4559, 0
      %v4596 = vsel %vm387, %v4560, 0
      %v4599 = vsel %vm387, %v4561, 0
      %v4602 = vsel %vm387, %v4562, 0
      %v4605 = vsel %vm387, %v4563, 0
      %v4608 = vsel %vm387, %v4564, 0
      %v4611 = vsel %vm387, %v4565, 0
      %v4614 = vsel %vm387, %v4566, 0
      %v4617 = vsel %vm387, %v4567, 0
      %v4620 = vsel %vm387, %v4568, 0
      %v4623 = vsel %vm387, %v4569, 0
      %v4626 = vsel %vm387, %v4570, 0
      %4628 = vmatprep.subr.bf16.mxu0 0
      %4629 = vmatpush1.bf16.msra.mxu0 %v4578
      %4630 = vmatprep.subr.bf16.mxu0 0
      %4631 = vmatpush1.bf16.msra.mxu0 0
      %4632 = vmatprep.subr.bf16.mxu0 0
      %4633 = vmatpush1.bf16.msra.mxu0 0
      %4634 = vmatprep.subr.bf16.mxu0 0
      %4635 = vmatpush1.bf16.msra.mxu0 0
      %4636 = vmatprep.subr.bf16.mxu0 0
      %4637 = vmatpush1.bf16.msra.mxu0 0
      %4638 = vmatprep.subr.bf16.mxu0 0
      %4639 = vmatpush1.bf16.msra.mxu0 0
      %4640 = vmatprep.subr.bf16.mxu0 0
      %4641 = vmatpush1.bf16.msra.mxu0 0
      %4642 = vmatprep.subr.bf16.mxu0 0
      %4643 = vmatpush1.bf16.msra.mxu0 0
      %4644 = vmatprep.subr.bf16.mxu0 0
      %4645 = vmatpush1.bf16.msra.mxu0 0
      %4646 = vmatprep.subr.bf16.mxu0 0
      %4647 = vmatpush1.bf16.msra.mxu0 0
      %4648 = vmatprep.subr.bf16.mxu0 0
      %4649 = vmatpush1.bf16.msra.mxu0 0
      %4650 = vmatprep.subr.bf16.mxu0 0
      %4651 = vmatpush1.bf16.msra.mxu0 0
      %4652 = vmatprep.subr.bf16.mxu0 0
      %4653 = vmatpush1.bf16.msra.mxu0 0
      %4654 = vmatprep.subr.bf16.mxu0 0
      %4655 = vmatpush1.bf16.msra.mxu0 0
      %4656 = vmatprep.subr.bf16.mxu0 0
      %4657 = vmatpush1.bf16.msra.mxu0 0
      %4658 = vmatprep.subr.bf16.mxu0 0
      %4659 = vmatpush1.bf16.msra.mxu0 0
      %4660 = vmatprep.mubr.bf16.mxu0 0
      %4661 = vmatmul.mubr.bf16.gmra.mrb[0].mxu0 %v4581
      %v4662 = vpop.f32.mrb[0].mxu0
      %v4663 = vadd.f32 0.0, %v4662
      %v4664 = vpop.f32.mrb[0].mxu0
      %v4665 = vpop.f32.mrb[0].mxu0
      %v4666 = vadd.f32 0.0, %v4665
      %v4667 = vpop.f32.mrb[0].mxu0
      %4668 = vmatprep.mubr.bf16.mxu0 0
      %4669 = vmatmul.mubr.bf16.gmra.mrb[0].mxu0 %v4584
      %v4670 = vpop.f32.mrb[0].mxu0
      %v4671 = vadd.f32 0.0, %v4670
      %v4672 = vpop.f32.mrb[0].mxu0
      %v4673 = vpop.f32.mrb[0].mxu0
      %v4674 = vadd.f32 0.0, %v4673
      %v4675 = vpop.f32.mrb[0].mxu0
      %4676 = vmatprep.mubr.bf16.mxu0 0
      %4677 = vmatmul.mubr.bf16.gmra.mrb[0].mxu0 %v4587
      %v4678 = vpop.f32.mrb[0].mxu0
      %v4679 = vadd.f32 0.0, %v4678
      %v4680 = vpop.f32.mrb[0].mxu0
      %v4681 = vpop.f32.mrb[0].mxu0
      %v4682 = vadd.f32 0.0, %v4681
      %v4683 = vpop.f32.mrb[0].mxu0
      %4684 = vmatprep.mubr.bf16.mxu0 0
      %4685 = vmatmul.mubr.bf16.gmra.mrb[0].mxu0 %v4590
      %v4686 = vpop.f32.mrb[0].mxu0
      %v4687 = vadd.f32 0.0, %v4686
      %v4688 = vpop.f32.mrb[0].mxu0
      %v4689 = vpop.f32.mrb[0].mxu0
      %v4690 = vadd.f32 0.0, %v4689
      %v4691 = vpop.f32.mrb[0].mxu0
      %4692 = vmatprep.mubr.bf16.mxu0 0
      %4693 = vmatmul.mubr.bf16.gmra.mrb[0].mxu0 %v4593
      %v4694 = vpop.f32.mrb[0].mxu0
      %v4695 = vadd.f32 0.0, %v4694
      %v4696 = vpop.f32.mrb[0].mxu0
      %v4697 = vpop.f32.mrb[0].mxu0
      %v4698 = vadd.f32 0.0, %v4697
      %v4699 = vpop.f32.mrb[0].mxu0
      %4700 = vmatprep.mubr.bf16.mxu0 0
      %4701 = vmatmul.mubr.bf16.gmra.mrb[0].mxu0 %v4596
      %v4702 = vpop.f32.mrb[0].mxu0
      %v4703 = vadd.f32 0.0, %v4702
      %v4704 = vpop.f32.mrb[0].mxu0
      %v4705 = vpop.f32.mrb[0].mxu0
      %v4706 = vadd.f32 0.0, %v4705
      %v4707 = vpop.f32.mrb[0].mxu0
      %4708 = vmatprep.mubr.bf16.mxu0 0
      %4709 = vmatmul.mubr.bf16.gmra.mrb[0].mxu0 %v4599
      %v4710 = vpop.f32.mrb[0].mxu0
      %v4711 = vadd.f32 0.0, %v4710
      %v4712 = vpop.f32.mrb[0].mxu0
      %v4713 = vpop.f32.mrb[0].mxu0
      %v4714 = vadd.f32 0.0, %v4713
      %v4715 = vpop.f32.mrb[0].mxu0
      %4716 = vmatprep.mubr.bf16.mxu0 0
      %4717 = vmatmul.mubr.bf16.gmra.mrb[0].mxu0 %v4602
      %v4718 = vpop.f32.mrb[0].mxu0
      %v4719 = vadd.f32 0.0, %v4718
      %v4720 = vpop.f32.mrb[0].mxu0
      %v4721 = vpop.f32.mrb[0].mxu0
      %v4722 = vadd.f32 0.0, %v4721
      %v4723 = vpop.f32.mrb[0].mxu0
      %4724 = vmatprep.mubr.bf16.mxu0 0
      %4725 = vmatmul.mubr.bf16.gmra.mrb[0].mxu0 %v4605
      %v4726 = vpop.f32.mrb[0].mxu0
      %v4727 = vadd.f32 0.0, %v4726
      %v4728 = vpop.f32.mrb[0].mxu0
      %v4729 = vpop.f32.mrb[0].mxu0
      %v4730 = vadd.f32 0.0, %v4729
      %v4731 = vpop.f32.mrb[0].mxu0
      %4732 = vmatprep.mubr.bf16.mxu0 0
      %4733 = vmatmul.mubr.bf16.gmra.mrb[0].mxu0 %v4608
      %v4734 = vpop.f32.mrb[0].mxu0
      %v4735 = vadd.f32 0.0, %v4734
      %v4736 = vpop.f32.mrb[0].mxu0
      %v4737 = vpop.f32.mrb[0].mxu0
      %v4738 = vadd.f32 0.0, %v4737
      %v4739 = vpop.f32.mrb[0].mxu0
      %4740 = vmatprep.mubr.bf16.mxu0 0
      %4741 = vmatmul.mubr.bf16.gmra.mrb[0].mxu0 %v4611
      %v4742 = vpop.f32.mrb[0].mxu0
      %v4743 = vadd.f32 0.0, %v4742
      %v4744 = vpop.f32.mrb[0].mxu0
      %v4745 = vpop.f32.mrb[0].mxu0
      %v4746 = vadd.f32 0.0, %v4745
      %v4747 = vpop.f32.mrb[0].mxu0
      %4748 = vmatprep.mubr.bf16.mxu0 0
      %4749 = vmatmul.mubr.bf16.gmra.mrb[0].mxu0 %v4614
      %v4750 = vpop.f32.mrb[0].mxu0
      %v4751 = vadd.f32 0.0, %v4750
      %v4752 = vpop.f32.mrb[0].mxu0
      %v4753 = vpop.f32.mrb[0].mxu0
      %v4754 = vadd.f32 0.0, %v4753
      %v4755 = vpop.f32.mrb[0].mxu0
      %4756 = vmatprep.mubr.bf16.mxu0 0
      %4757 = vmatmul.mubr.bf16.gmra.mrb[0].mxu0 %v4617
      %v4758 = vpop.f32.mrb[0].mxu0
      %v4759 = vadd.f32 0.0, %v4758
      %v4760 = vpop.f32.mrb[0].mxu0
      %v4761 = vpop.f32.mrb[0].mxu0
      %v4762 = vadd.f32 0.0, %v4761
      %v4763 = vpop.f32.mrb[0].mxu0
      %4764 = vmatprep.mubr.bf16.mxu0 0
      %4765 = vmatmul.mubr.bf16.gmra.mrb[0].mxu0 %v4620
      %v4766 = vpop.f32.mrb[0].mxu0
      %v4767 = vadd.f32 0.0, %v4766
      %v4768 = vpop.f32.mrb[0].mxu0
      %v4769 = vpop.f32.mrb[0].mxu0
      %v4770 = vadd.f32 0.0, %v4769
      %v4771 = vpop.f32.mrb[0].mxu0
      %4772 = vmatprep.mubr.bf16.mxu0 0
      %4773 = vmatmul.mubr.bf16.gmra.mrb[0].mxu0 %v4623
      %v4774 = vpop.f32.mrb[0].mxu0
      %v4775 = vadd.f32 0.0, %v4774
      %v4776 = vpop.f32.mrb[0].mxu0
      %v4777 = vpop.f32.mrb[0].mxu0
      %v4778 = vadd.f32 0.0, %v4777
      %v4779 = vpop.f32.mrb[0].mxu0
      %4780 = vmatprep.mubr.bf16.mxu0 0
      %4781 = vmatmul.mubr.bf16.gmra.mrb[0].mxu0 %v4626
      %v4782 = vpop.f32.mrb[0].mxu0
      %v4783 = vadd.f32 0.0, %v4782
      %v4784 = vpop.f32.mrb[0].mxu0
      %v4785 = vpop.f32.mrb[0].mxu0
      %v4786 = vadd.f32 0.0, %v4785
      %v4787 = vpop.f32.mrb[0].mxu0
      %4788 = vdwg.mxu0
      %v4789 = vadd.f32 %v4491, %v4663
      %v4790 = vadd.f32 %v4492, %v4666
      %v4791 = vadd.f32 %v4493, %v4671
      %v4792 = vadd.f32 %v4494, %v4674
      %v4793 = vadd.f32 %v4495, %v4679
      %v4794 = vadd.f32 %v4496, %v4682
      %v4795 = vadd.f32 %v4497, %v4687
      %v4796 = vadd.f32 %v4498, %v4690
      %v4797 = vadd.f32 %v4499, %v4695
      %v4798 = vadd.f32 %v4500, %v4698
      %v4799 = vadd.f32 %v4501, %v4703
      %v4800 = vadd.f32 %v4502, %v4706
      %v4801 = vadd.f32 %v4503, %v4711
      %v4802 = vadd.f32 %v4504, %v4714
      %v4803 = vadd.f32 %v4505, %v4719
      %v4804 = vadd.f32 %v4506, %v4722
      %v4805 = vadd.f32 %v4507, %v4727
      %v4806 = vadd.f32 %v4508, %v4730
      %v4807 = vadd.f32 %v4509, %v4735
      %v4808 = vadd.f32 %v4510, %v4738
      %v4809 = vadd.f32 %v4511, %v4743
      %v4810 = vadd.f32 %v4512, %v4746
      %v4811 = vadd.f32 %v4513, %v4751
      %v4812 = vadd.f32 %v4514, %v4754
      %v4813 = vadd.f32 %v4515, %v4759
      %v4814 = vadd.f32 %v4516, %v4762
      %v4815 = vadd.f32 %v4517, %v4767
      %v4816 = vadd.f32 %v4518, %v4770
      %v4817 = vadd.f32 %v4519, %v4775
      %v4818 = vadd.f32 %v4520, %v4778
      %v4819 = vadd.f32 %v4521, %v4783
      %v4820 = vadd.f32 %v4522, %v4786
      %s4821 = scalar_lea.vmem [#allocation2], 48
      %v4822 = vld [vmem:[%s4821] sm:$0xff]
      %v4823 = vld [vmem:[%s4821 + $0x8] sm:$0xff]
      %v4824 = vld [vmem:[%s4821 + $0x18] sm:$0xff]
      %v4825 = vld [vmem:[%s4821 + $0x20] sm:$0xff]
      %v4826 = vld [vmem:[%s4821 + $0x30] sm:$0xff]
      %v4827 = vld [vmem:[%s4821 + $0x38] sm:$0xff]
      %v4828 = vld [vmem:[%s4821 + $0x48] sm:$0xff]
      %v4829 = vld [vmem:[%s4821 + $0x50] sm:$0xff]
      %v4830 = vld [vmem:[%s4821 + $0x60] sm:$0xff]
      %v4831 = vld [vmem:[%s4821 + $0x68] sm:$0xff]
      %v4832 = vld [vmem:[%s4821 + $0x78] sm:$0xff]
      %v4833 = vld [vmem:[%s4821 + $0x80] sm:$0xff]
      %v4834 = vld [vmem:[%s4821 + $0x90] sm:$0xff]
      %v4835 = vld [vmem:[%s4821 + $0x98] sm:$0xff]
      %v4836 = vld [vmem:[%s4821 + $0xa8] sm:$0xff]
      %v4837 = vld [vmem:[%s4821 + $0xb0] sm:$0xff]
      %v4838 = vld [vmem:[%s4821 + $0xc0] sm:$0xff]
      %v4839 = vld [vmem:[%s4821 + $0xc8] sm:$0xff]
      %v4840 = vld [vmem:[%s4821 + $0xd8] sm:$0xff]
      %v4841 = vld [vmem:[%s4821 + $0xe0] sm:$0xff]
      %v4842 = vld [vmem:[%s4821 + $0xf0] sm:$0xff]
      %v4843 = vld [vmem:[%s4821 + $0xf8] sm:$0xff]
      %v4844 = vld [vmem:[%s4821 + $0x108] sm:$0xff]
      %v4845 = vld [vmem:[%s4821 + $0x110] sm:$0xff]
      %v4846 = vld [vmem:[%s4821 + $0x120] sm:$0xff]
      %v4847 = vld [vmem:[%s4821 + $0x128] sm:$0xff]
      %v4848 = vld [vmem:[%s4821 + $0x138] sm:$0xff]
      %v4849 = vld [vmem:[%s4821 + $0x140] sm:$0xff]
      %v4850 = vld [vmem:[%s4821 + $0x150] sm:$0xff]
      %v4851 = vld [vmem:[%s4821 + $0x158] sm:$0xff]
      %v4852 = vld [vmem:[%s4821 + $0x168] sm:$0xff]
      %v4853 = vld [vmem:[%s4821 + $0x170] sm:$0xff]
      %v4854 = vpack.c.bf16 %v4823, %v4822
      %v4855 = vpack.c.bf16 %v4825, %v4824
      %v4856 = vpack.c.bf16 %v4827, %v4826
      %v4857 = vpack.c.bf16 %v4829, %v4828
      %v4858 = vpack.c.bf16 %v4831, %v4830
      %v4859 = vpack.c.bf16 %v4833, %v4832
      %v4860 = vpack.c.bf16 %v4835, %v4834
      %v4861 = vpack.c.bf16 %v4837, %v4836
      %v4862 = vpack.c.bf16 %v4839, %v4838
      %v4863 = vpack.c.bf16 %v4841, %v4840
      %v4864 = vpack.c.bf16 %v4843, %v4842
      %v4865 = vpack.c.bf16 %v4845, %v4844
      %v4866 = vpack.c.bf16 %v4847, %v4846
      %v4867 = vpack.c.bf16 %v4849, %v4848
      %v4868 = vpack.c.bf16 %v4851, %v4850
      %v4869 = vpack.c.bf16 %v4853, %v4852
      %s4870 = scalar_lea.vmem %s4, 48
      %v4871 = vld [vmem:[%s4870] sm:$0xf]
      %v4872 = vld [vmem:[%s4870 + $0x4] sm:$0xf]
      %v4875 = vunpack.c.l.b16 %v4871
      %v4876 = vunpack.c.l.b16 %v4872
      %v4877 = vpack.c.b16 %v4876, %v4875
      %v4880 = vsel %vm387, %v4854, 0
      %v4883 = vsel %vm387, %v4855, 0
      %v4886 = vsel %vm387, %v4856, 0
      %v4889 = vsel %vm387, %v4857, 0
      %v4892 = vsel %vm387, %v4858, 0
      %v4895 = vsel %vm387, %v4859, 0
      %v4898 = vsel %vm387, %v4860, 0
      %v4901 = vsel %vm387, %v4861, 0
      %v4904 = vsel %vm387, %v4862, 0
      %v4907 = vsel %vm387, %v4863, 0
      %v4910 = vsel %vm387, %v4864, 0
      %v4913 = vsel %vm387, %v4865, 0
      %v4916 = vsel %vm387, %v4866, 0
      %v4919 = vsel %vm387, %v4867, 0
      %v4922 = vsel %vm387, %v4868, 0
      %v4925 = vsel %vm387, %v4869, 0
      %4927 = vmatprep.subr.bf16.mxu0 0
      %4928 = vmatpush1.bf16.msra.mxu0 %v4877
      %4929 = vmatprep.subr.bf16.mxu0 0
      %4930 = vmatpush1.bf16.msra.mxu0 0
      %4931 = vmatprep.subr.bf16.mxu0 0
      %4932 = vmatpush1.bf16.msra.mxu0 0
      %4933 = vmatprep.subr.bf16.mxu0 0
      %4934 = vmatpush1.bf16.msra.mxu0 0
      %4935 = vmatprep.subr.bf16.mxu0 0
      %4936 = vmatpush1.bf16.msra.mxu0 0
      %4937 = vmatprep.subr.bf16.mxu0 0
      %4938 = vmatpush1.bf16.msra.mxu0 0
      %4939 = vmatprep.subr.bf16.mxu0 0
      %4940 = vmatpush1.bf16.msra.mxu0 0
      %4941 = vmatprep.subr.bf16.mxu0 0
      %4942 = vmatpush1.bf16.msra.mxu0 0
      %4943 = vmatprep.subr.bf16.mxu0 0
      %4944 = vmatpush1.bf16.msra.mxu0 0
      %4945 = vmatprep.subr.bf16.mxu0 0
      %4946 = vmatpush1.bf16.msra.mxu0 0
      %4947 = vmatprep.subr.bf16.mxu0 0
      %4948 = vmatpush1.bf16.msra.mxu0 0
      %4949 = vmatprep.subr.bf16.mxu0 0
      %4950 = vmatpush1.bf16.msra.mxu0 0
      %4951 = vmatprep.subr.bf16.mxu0 0
      %4952 = vmatpush1.bf16.msra.mxu0 0
      %4953 = vmatprep.subr.bf16.mxu0 0
      %4954 = vmatpush1.bf16.msra.mxu0 0
      %4955 = vmatprep.subr.bf16.mxu0 0
      %4956 = vmatpush1.bf16.msra.mxu0 0
      %4957 = vmatprep.subr.bf16.mxu0 0
      %4958 = vmatpush1.bf16.msra.mxu0 0
      %4959 = vmatprep.mubr.bf16.mxu0 0
      %4960 = vmatmul.mubr.bf16.gmra.mrb[0].mxu0 %v4880
      %v4961 = vpop.f32.mrb[0].mxu0
      %v4962 = vadd.f32 0.0, %v4961
      %v4963 = vpop.f32.mrb[0].mxu0
      %v4964 = vpop.f32.mrb[0].mxu0
      %v4965 = vadd.f32 0.0, %v4964
      %v4966 = vpop.f32.mrb[0].mxu0
      %4967 = vmatprep.mubr.bf16.mxu0 0
      %4968 = vmatmul.mubr.bf16.gmra.mrb[0].mxu0 %v4883
      %v4969 = vpop.f32.mrb[0].mxu0
      %v4970 = vadd.f32 0.0, %v4969
      %v4971 = vpop.f32.mrb[0].mxu0
      %v4972 = vpop.f32.mrb[0].mxu0
      %v4973 = vadd.f32 0.0, %v4972
      %v4974 = vpop.f32.mrb[0].mxu0
      %4975 = vmatprep.mubr.bf16.mxu0 0
      %4976 = vmatmul.mubr.bf16.gmra.mrb[0].mxu0 %v4886
      %v4977 = vpop.f32.mrb[0].mxu0
      %v4978 = vadd.f32 0.0, %v4977
      %v4979 = vpop.f32.mrb[0].mxu0
      %v4980 = vpop.f32.mrb[0].mxu0
      %v4981 = vadd.f32 0.0, %v4980
      %v4982 = vpop.f32.mrb[0].mxu0
      %4983 = vmatprep.mubr.bf16.mxu0 0
      %4984 = vmatmul.mubr.bf16.gmra.mrb[0].mxu0 %v4889
      %v4985 = vpop.f32.mrb[0].mxu0
      %v4986 = vadd.f32 0.0, %v4985
      %v4987 = vpop.f32.mrb[0].mxu0
      %v4988 = vpop.f32.mrb[0].mxu0
      %v4989 = vadd.f32 0.0, %v4988
      %v4990 = vpop.f32.mrb[0].mxu0
      %4991 = vmatprep.mubr.bf16.mxu0 0
      %4992 = vmatmul.mubr.bf16.gmra.mrb[0].mxu0 %v4892
      %v4993 = vpop.f32.mrb[0].mxu0
      %v4994 = vadd.f32 0.0, %v4993
      %v4995 = vpop.f32.mrb[0].mxu0
      %v4996 = vpop.f32.mrb[0].mxu0
      %v4997 = vadd.f32 0.0, %v4996
      %v4998 = vpop.f32.mrb[0].mxu0
      %4999 = vmatprep.mubr.bf16.mxu0 0
      %5000 = vmatmul.mubr.bf16.gmra.mrb[0].mxu0 %v4895
      %v5001 = vpop.f32.mrb[0].mxu0
      %v5002 = vadd.f32 0.0, %v5001
      %v5003 = vpop.f32.mrb[0].mxu0
      %v5004 = vpop.f32.mrb[0].mxu0
      %v5005 = vadd.f32 0.0, %v5004
      %v5006 = vpop.f32.mrb[0].mxu0
      %5007 = vmatprep.mubr.bf16.mxu0 0
      %5008 = vmatmul.mubr.bf16.gmra.mrb[0].mxu0 %v4898
      %v5009 = vpop.f32.mrb[0].mxu0
      %v5010 = vadd.f32 0.0, %v5009
      %v5011 = vpop.f32.mrb[0].mxu0
      %v5012 = vpop.f32.mrb[0].mxu0
      %v5013 = vadd.f32 0.0, %v5012
      %v5014 = vpop.f32.mrb[0].mxu0
      %5015 = vmatprep.mubr.bf16.mxu0 0
      %5016 = vmatmul.mubr.bf16.gmra.mrb[0].mxu0 %v4901
      %v5017 = vpop.f32.mrb[0].mxu0
      %v5018 = vadd.f32 0.0, %v5017
      %v5019 = vpop.f32.mrb[0].mxu0
      %v5020 = vpop.f32.mrb[0].mxu0
      %v5021 = vadd.f32 0.0, %v5020
      %v5022 = vpop.f32.mrb[0].mxu0
      %5023 = vmatprep.mubr.bf16.mxu0 0
      %5024 = vmatmul.mubr.bf16.gmra.mrb[0].mxu0 %v4904
      %v5025 = vpop.f32.mrb[0].mxu0
      %v5026 = vadd.f32 0.0, %v5025
      %v5027 = vpop.f32.mrb[0].mxu0
      %v5028 = vpop.f32.mrb[0].mxu0
      %v5029 = vadd.f32 0.0, %v5028
      %v5030 = vpop.f32.mrb[0].mxu0
      %5031 = vmatprep.mubr.bf16.mxu0 0
      %5032 = vmatmul.mubr.bf16.gmra.mrb[0].mxu0 %v4907
      %v5033 = vpop.f32.mrb[0].mxu0
      %v5034 = vadd.f32 0.0, %v5033
      %v5035 = vpop.f32.mrb[0].mxu0
      %v5036 = vpop.f32.mrb[0].mxu0
      %v5037 = vadd.f32 0.0, %v5036
      %v5038 = vpop.f32.mrb[0].mxu0
      %5039 = vmatprep.mubr.bf16.mxu0 0
      %5040 = vmatmul.mubr.bf16.gmra.mrb[0].mxu0 %v4910
      %v5041 = vpop.f32.mrb[0].mxu0
      %v5042 = vadd.f32 0.0, %v5041
      %v5043 = vpop.f32.mrb[0].mxu0
      %v5044 = vpop.f32.mrb[0].mxu0
      %v5045 = vadd.f32 0.0, %v5044
      %v5046 = vpop.f32.mrb[0].mxu0
      %5047 = vmatprep.mubr.bf16.mxu0 0
      %5048 = vmatmul.mubr.bf16.gmra.mrb[0].mxu0 %v4913
      %v5049 = vpop.f32.mrb[0].mxu0
      %v5050 = vadd.f32 0.0, %v5049
      %v5051 = vpop.f32.mrb[0].mxu0
      %v5052 = vpop.f32.mrb[0].mxu0
      %v5053 = vadd.f32 0.0, %v5052
      %v5054 = vpop.f32.mrb[0].mxu0
      %5055 = vmatprep.mubr.bf16.mxu0 0
      %5056 = vmatmul.mubr.bf16.gmra.mrb[0].mxu0 %v4916
      %v5057 = vpop.f32.mrb[0].mxu0
      %v5058 = vadd.f32 0.0, %v5057
      %v5059 = vpop.f32.mrb[0].mxu0
      %v5060 = vpop.f32.mrb[0].mxu0
      %v5061 = vadd.f32 0.0, %v5060
      %v5062 = vpop.f32.mrb[0].mxu0
      %5063 = vmatprep.mubr.bf16.mxu0 0
      %5064 = vmatmul.mubr.bf16.gmra.mrb[0].mxu0 %v4919
      %v5065 = vpop.f32.mrb[0].mxu0
      %v5066 = vadd.f32 0.0, %v5065
      %v5067 = vpop.f32.mrb[0].mxu0
      %v5068 = vpop.f32.mrb[0].mxu0
      %v5069 = vadd.f32 0.0, %v5068
      %v5070 = vpop.f32.mrb[0].mxu0
      %5071 = vmatprep.mubr.bf16.mxu0 0
      %5072 = vmatmul.mubr.bf16.gmra.mrb[0].mxu0 %v4922
      %v5073 = vpop.f32.mrb[0].mxu0
      %v5074 = vadd.f32 0.0, %v5073
      %v5075 = vpop.f32.mrb[0].mxu0
      %v5076 = vpop.f32.mrb[0].mxu0
      %v5077 = vadd.f32 0.0, %v5076
      %v5078 = vpop.f32.mrb[0].mxu0
      %5079 = vmatprep.mubr.bf16.mxu0 0
      %5080 = vmatmul.mubr.bf16.gmra.mrb[0].mxu0 %v4925
      %v5081 = vpop.f32.mrb[0].mxu0
      %v5082 = vadd.f32 0.0, %v5081
      %v5083 = vpop.f32.mrb[0].mxu0
      %v5084 = vpop.f32.mrb[0].mxu0
      %v5085 = vadd.f32 0.0, %v5084
      %v5086 = vpop.f32.mrb[0].mxu0
      %5087 = vdwg.mxu0
      %v5088 = vadd.f32 %v4789, %v4962
      %v5089 = vadd.f32 %v4790, %v4965
      %v5090 = vadd.f32 %v4791, %v4970
      %v5091 = vadd.f32 %v4792, %v4973
      %v5092 = vadd.f32 %v4793, %v4978
      %v5093 = vadd.f32 %v4794, %v4981
      %v5094 = vadd.f32 %v4795, %v4986
      %v5095 = vadd.f32 %v4796, %v4989
      %v5096 = vadd.f32 %v4797, %v4994
      %v5097 = vadd.f32 %v4798, %v4997
      %v5098 = vadd.f32 %v4799, %v5002
      %v5099 = vadd.f32 %v4800, %v5005
      %v5100 = vadd.f32 %v4801, %v5010
      %v5101 = vadd.f32 %v4802, %v5013
      %v5102 = vadd.f32 %v4803, %v5018
      %v5103 = vadd.f32 %v4804, %v5021
      %v5104 = vadd.f32 %v4805, %v5026
      %v5105 = vadd.f32 %v4806, %v5029
      %v5106 = vadd.f32 %v4807, %v5034
      %v5107 = vadd.f32 %v4808, %v5037
      %v5108 = vadd.f32 %v4809, %v5042
      %v5109 = vadd.f32 %v4810, %v5045
      %v5110 = vadd.f32 %v4811, %v5050
      %v5111 = vadd.f32 %v4812, %v5053
      %v5112 = vadd.f32 %v4813, %v5058
      %v5113 = vadd.f32 %v4814, %v5061
      %v5114 = vadd.f32 %v4815, %v5066
      %v5115 = vadd.f32 %v4816, %v5069
      %v5116 = vadd.f32 %v4817, %v5074
      %v5117 = vadd.f32 %v4818, %v5077
      %v5118 = vadd.f32 %v4819, %v5082
      %v5119 = vadd.f32 %v4820, %v5085
      %v5120 = vld [vmem:[%s4821 + $0x1] sm:$0xff]
      %v5121 = vld [vmem:[%s4821 + $0x9] sm:$0xff]
      %v5122 = vld [vmem:[%s4821 + $0x19] sm:$0xff]
      %v5123 = vld [vmem:[%s4821 + $0x21] sm:$0xff]
      %v5124 = vld [vmem:[%s4821 + $0x31] sm:$0xff]
      %v5125 = vld [vmem:[%s4821 + $0x39] sm:$0xff]
      %v5126 = vld [vmem:[%s4821 + $0x49] sm:$0xff]
      %v5127 = vld [vmem:[%s4821 + $0x51] sm:$0xff]
      %v5128 = vld [vmem:[%s4821 + $0x61] sm:$0xff]
      %v5129 = vld [vmem:[%s4821 + $0x69] sm:$0xff]
      %v5130 = vld [vmem:[%s4821 + $0x79] sm:$0xff]
      %v5131 = vld [vmem:[%s4821 + $0x81] sm:$0xff]
      %v5132 = vld [vmem:[%s4821 + $0x91] sm:$0xff]
      %v5133 = vld [vmem:[%s4821 + $0x99] sm:$0xff]
      %v5134 = vld [vmem:[%s4821 + $0xa9] sm:$0xff]
      %v5135 = vld [vmem:[%s4821 + $0xb1] sm:$0xff]
      %v5136 = vld [vmem:[%s4821 + $0xc1] sm:$0xff]
      %v5137 = vld [vmem:[%s4821 + $0xc9] sm:$0xff]
      %v5138 = vld [vmem:[%s4821 + $0xd9] sm:$0xff]
      %v5139 = vld [vmem:[%s4821 + $0xe1] sm:$0xff]
      %v5140 = vld [vmem:[%s4821 + $0xf1] sm:$0xff]
      %v5141 = vld [vmem:[%s4821 + $0xf9] sm:$0xff]
      %v5142 = vld [vmem:[%s4821 + $0x109] sm:$0xff]
      %v5143 = vld [vmem:[%s4821 + $0x111] sm:$0xff]
      %v5144 = vld [vmem:[%s4821 + $0x121] sm:$0xff]
      %v5145 = vld [vmem:[%s4821 + $0x129] sm:$0xff]
      %v5146 = vld [vmem:[%s4821 + $0x139] sm:$0xff]
      %v5147 = vld [vmem:[%s4821 + $0x141] sm:$0xff]
      %v5148 = vld [vmem:[%s4821 + $0x151] sm:$0xff]
      %v5149 = vld [vmem:[%s4821 + $0x159] sm:$0xff]
      %v5150 = vld [vmem:[%s4821 + $0x169] sm:$0xff]
      %v5151 = vld [vmem:[%s4821 + $0x171] sm:$0xff]
      %v5152 = vpack.c.bf16 %v5121, %v5120
      %v5153 = vpack.c.bf16 %v5123, %v5122
      %v5154 = vpack.c.bf16 %v5125, %v5124
      %v5155 = vpack.c.bf16 %v5127, %v5126
      %v5156 = vpack.c.bf16 %v5129, %v5128
      %v5157 = vpack.c.bf16 %v5131, %v5130
      %v5158 = vpack.c.bf16 %v5133, %v5132
      %v5159 = vpack.c.bf16 %v5135, %v5134
      %v5160 = vpack.c.bf16 %v5137, %v5136
      %v5161 = vpack.c.bf16 %v5139, %v5138
      %v5162 = vpack.c.bf16 %v5141, %v5140
      %v5163 = vpack.c.bf16 %v5143, %v5142
      %v5164 = vpack.c.bf16 %v5145, %v5144
      %v5165 = vpack.c.bf16 %v5147, %v5146
      %v5166 = vpack.c.bf16 %v5149, %v5148
      %v5167 = vpack.c.bf16 %v5151, %v5150
      %s5168 = scalar_lea.vmem %s4, 56
      %v5169 = vld [vmem:[%s5168] sm:$0xf]
      %v5170 = vld [vmem:[%s5168 + $0x4] sm:$0xf]
      %v5173 = vunpack.c.l.b16 %v5169
      %v5174 = vunpack.c.l.b16 %v5170
      %v5175 = vpack.c.b16 %v5174, %v5173
      %v5178 = vsel %vm387, %v5152, 0
      %v5181 = vsel %vm387, %v5153, 0
      %v5184 = vsel %vm387, %v5154, 0
      %v5187 = vsel %vm387, %v5155, 0
      %v5190 = vsel %vm387, %v5156, 0
      %v5193 = vsel %vm387, %v5157, 0
      %v5196 = vsel %vm387, %v5158, 0
      %v5199 = vsel %vm387, %v5159, 0
      %v5202 = vsel %vm387, %v5160, 0
      %v5205 = vsel %vm387, %v5161, 0
      %v5208 = vsel %vm387, %v5162, 0
      %v5211 = vsel %vm387, %v5163, 0
      %v5214 = vsel %vm387, %v5164, 0
      %v5217 = vsel %vm387, %v5165, 0
      %v5220 = vsel %vm387, %v5166, 0
      %v5223 = vsel %vm387, %v5167, 0
      %5225 = vmatprep.subr.bf16.mxu0 0
      %5226 = vmatpush1.bf16.msra.mxu0 %v5175
      %5227 = vmatprep.subr.bf16.mxu0 0
      %5228 = vmatpush1.bf16.msra.mxu0 0
      %5229 = vmatprep.subr.bf16.mxu0 0
      %5230 = vmatpush1.bf16.msra.mxu0 0
      %5231 = vmatprep.subr.bf16.mxu0 0
      %5232 = vmatpush1.bf16.msra.mxu0 0
      %5233 = vmatprep.subr.bf16.mxu0 0
      %5234 = vmatpush1.bf16.msra.mxu0 0
      %5235 = vmatprep.subr.bf16.mxu0 0
      %5236 = vmatpush1.bf16.msra.mxu0 0
      %5237 = vmatprep.subr.bf16.mxu0 0
      %5238 = vmatpush1.bf16.msra.mxu0 0
      %5239 = vmatprep.subr.bf16.mxu0 0
      %5240 = vmatpush1.bf16.msra.mxu0 0
      %5241 = vmatprep.subr.bf16.mxu0 0
      %5242 = vmatpush1.bf16.msra.mxu0 0
      %5243 = vmatprep.subr.bf16.mxu0 0
      %5244 = vmatpush1.bf16.msra.mxu0 0
      %5245 = vmatprep.subr.bf16.mxu0 0
      %5246 = vmatpush1.bf16.msra.mxu0 0
      %5247 = vmatprep.subr.bf16.mxu0 0
      %5248 = vmatpush1.bf16.msra.mxu0 0
      %5249 = vmatprep.subr.bf16.mxu0 0
      %5250 = vmatpush1.bf16.msra.mxu0 0
      %5251 = vmatprep.subr.bf16.mxu0 0
      %5252 = vmatpush1.bf16.msra.mxu0 0
      %5253 = vmatprep.subr.bf16.mxu0 0
      %5254 = vmatpush1.bf16.msra.mxu0 0
      %5255 = vmatprep.subr.bf16.mxu0 0
      %5256 = vmatpush1.bf16.msra.mxu0 0
      %5257 = vmatprep.mubr.bf16.mxu0 0
      %5258 = vmatmul.mubr.bf16.gmra.mrb[0].mxu0 %v5178
      %v5259 = vpop.f32.mrb[0].mxu0
      %v5260 = vadd.f32 0.0, %v5259
      %v5261 = vpop.f32.mrb[0].mxu0
      %v5262 = vpop.f32.mrb[0].mxu0
      %v5263 = vadd.f32 0.0, %v5262
      %v5264 = vpop.f32.mrb[0].mxu0
      %5265 = vmatprep.mubr.bf16.mxu0 0
      %5266 = vmatmul.mubr.bf16.gmra.mrb[0].mxu0 %v5181
      %v5267 = vpop.f32.mrb[0].mxu0
      %v5268 = vadd.f32 0.0, %v5267
      %v5269 = vpop.f32.mrb[0].mxu0
      %v5270 = vpop.f32.mrb[0].mxu0
      %v5271 = vadd.f32 0.0, %v5270
      %v5272 = vpop.f32.mrb[0].mxu0
      %5273 = vmatprep.mubr.bf16.mxu0 0
      %5274 = vmatmul.mubr.bf16.gmra.mrb[0].mxu0 %v5184
      %v5275 = vpop.f32.mrb[0].mxu0
      %v5276 = vadd.f32 0.0, %v5275
      %v5277 = vpop.f32.mrb[0].mxu0
      %v5278 = vpop.f32.mrb[0].mxu0
      %v5279 = vadd.f32 0.0, %v5278
      %v5280 = vpop.f32.mrb[0].mxu0
      %5281 = vmatprep.mubr.bf16.mxu0 0
      %5282 = vmatmul.mubr.bf16.gmra.mrb[0].mxu0 %v5187
      %v5283 = vpop.f32.mrb[0].mxu0
      %v5284 = vadd.f32 0.0, %v5283
      %v5285 = vpop.f32.mrb[0].mxu0
      %v5286 = vpop.f32.mrb[0].mxu0
      %v5287 = vadd.f32 0.0, %v5286
      %v5288 = vpop.f32.mrb[0].mxu0
      %5289 = vmatprep.mubr.bf16.mxu0 0
      %5290 = vmatmul.mubr.bf16.gmra.mrb[0].mxu0 %v5190
      %v5291 = vpop.f32.mrb[0].mxu0
      %v5292 = vadd.f32 0.0, %v5291
      %v5293 = vpop.f32.mrb[0].mxu0
      %v5294 = vpop.f32.mrb[0].mxu0
      %v5295 = vadd.f32 0.0, %v5294
      %v5296 = vpop.f32.mrb[0].mxu0
      %5297 = vmatprep.mubr.bf16.mxu0 0
      %5298 = vmatmul.mubr.bf16.gmra.mrb[0].mxu0 %v5193
      %v5299 = vpop.f32.mrb[0].mxu0
      %v5300 = vadd.f32 0.0, %v5299
      %v5301 = vpop.f32.mrb[0].mxu0
      %v5302 = vpop.f32.mrb[0].mxu0
      %v5303 = vadd.f32 0.0, %v5302
      %v5304 = vpop.f32.mrb[0].mxu0
      %5305 = vmatprep.mubr.bf16.mxu0 0
      %5306 = vmatmul.mubr.bf16.gmra.mrb[0].mxu0 %v5196
      %v5307 = vpop.f32.mrb[0].mxu0
      %v5308 = vadd.f32 0.0, %v5307
      %v5309 = vpop.f32.mrb[0].mxu0
      %v5310 = vpop.f32.mrb[0].mxu0
      %v5311 = vadd.f32 0.0, %v5310
      %v5312 = vpop.f32.mrb[0].mxu0
      %5313 = vmatprep.mubr.bf16.mxu0 0
      %5314 = vmatmul.mubr.bf16.gmra.mrb[0].mxu0 %v5199
      %v5315 = vpop.f32.mrb[0].mxu0
      %v5316 = vadd.f32 0.0, %v5315
      %v5317 = vpop.f32.mrb[0].mxu0
      %v5318 = vpop.f32.mrb[0].mxu0
      %v5319 = vadd.f32 0.0, %v5318
      %v5320 = vpop.f32.mrb[0].mxu0
      %5321 = vmatprep.mubr.bf16.mxu0 0
      %5322 = vmatmul.mubr.bf16.gmra.mrb[0].mxu0 %v5202
      %v5323 = vpop.f32.mrb[0].mxu0
      %v5324 = vadd.f32 0.0, %v5323
      %v5325 = vpop.f32.mrb[0].mxu0
      %v5326 = vpop.f32.mrb[0].mxu0
      %v5327 = vadd.f32 0.0, %v5326
      %v5328 = vpop.f32.mrb[0].mxu0
      %5329 = vmatprep.mubr.bf16.mxu0 0
      %5330 = vmatmul.mubr.bf16.gmra.mrb[0].mxu0 %v5205
      %v5331 = vpop.f32.mrb[0].mxu0
      %v5332 = vadd.f32 0.0, %v5331
      %v5333 = vpop.f32.mrb[0].mxu0
      %v5334 = vpop.f32.mrb[0].mxu0
      %v5335 = vadd.f32 0.0, %v5334
      %v5336 = vpop.f32.mrb[0].mxu0
      %5337 = vmatprep.mubr.bf16.mxu0 0
      %5338 = vmatmul.mubr.bf16.gmra.mrb[0].mxu0 %v5208
      %v5339 = vpop.f32.mrb[0].mxu0
      %v5340 = vadd.f32 0.0, %v5339
      %v5341 = vpop.f32.mrb[0].mxu0
      %v5342 = vpop.f32.mrb[0].mxu0
      %v5343 = vadd.f32 0.0, %v5342
      %v5344 = vpop.f32.mrb[0].mxu0
      %5345 = vmatprep.mubr.bf16.mxu0 0
      %5346 = vmatmul.mubr.bf16.gmra.mrb[0].mxu0 %v5211
      %v5347 = vpop.f32.mrb[0].mxu0
      %v5348 = vadd.f32 0.0, %v5347
      %v5349 = vpop.f32.mrb[0].mxu0
      %v5350 = vpop.f32.mrb[0].mxu0
      %v5351 = vadd.f32 0.0, %v5350
      %v5352 = vpop.f32.mrb[0].mxu0
      %5353 = vmatprep.mubr.bf16.mxu0 0
      %5354 = vmatmul.mubr.bf16.gmra.mrb[0].mxu0 %v5214
      %v5355 = vpop.f32.mrb[0].mxu0
      %v5356 = vadd.f32 0.0, %v5355
      %v5357 = vpop.f32.mrb[0].mxu0
      %v5358 = vpop.f32.mrb[0].mxu0
      %v5359 = vadd.f32 0.0, %v5358
      %v5360 = vpop.f32.mrb[0].mxu0
      %5361 = vmatprep.mubr.bf16.mxu0 0
      %5362 = vmatmul.mubr.bf16.gmra.mrb[0].mxu0 %v5217
      %v5363 = vpop.f32.mrb[0].mxu0
      %v5364 = vadd.f32 0.0, %v5363
      %v5365 = vpop.f32.mrb[0].mxu0
      %v5366 = vpop.f32.mrb[0].mxu0
      %v5367 = vadd.f32 0.0, %v5366
      %v5368 = vpop.f32.mrb[0].mxu0
      %5369 = vmatprep.mubr.bf16.mxu0 0
      %5370 = vmatmul.mubr.bf16.gmra.mrb[0].mxu0 %v5220
      %v5371 = vpop.f32.mrb[0].mxu0
      %v5372 = vadd.f32 0.0, %v5371
      %v5373 = vpop.f32.mrb[0].mxu0
      %v5374 = vpop.f32.mrb[0].mxu0
      %v5375 = vadd.f32 0.0, %v5374
      %v5376 = vpop.f32.mrb[0].mxu0
      %5377 = vmatprep.mubr.bf16.mxu0 0
      %5378 = vmatmul.mubr.bf16.gmra.mrb[0].mxu0 %v5223
      %v5379 = vpop.f32.mrb[0].mxu0
      %v5380 = vadd.f32 0.0, %v5379
      %v5381 = vpop.f32.mrb[0].mxu0
      %v5382 = vpop.f32.mrb[0].mxu0
      %v5383 = vadd.f32 0.0, %v5382
      %v5384 = vpop.f32.mrb[0].mxu0
      %5385 = vdwg.mxu0
      %v5386 = vadd.f32 %v5088, %v5260
      %v5387 = vadd.f32 %v5089, %v5263
      %v5388 = vadd.f32 %v5090, %v5268
      %v5389 = vadd.f32 %v5091, %v5271
      %v5390 = vadd.f32 %v5092, %v5276
      %v5391 = vadd.f32 %v5093, %v5279
      %v5392 = vadd.f32 %v5094, %v5284
      %v5393 = vadd.f32 %v5095, %v5287
      %v5394 = vadd.f32 %v5096, %v5292
      %v5395 = vadd.f32 %v5097, %v5295
      %v5396 = vadd.f32 %v5098, %v5300
      %v5397 = vadd.f32 %v5099, %v5303
      %v5398 = vadd.f32 %v5100, %v5308
      %v5399 = vadd.f32 %v5101, %v5311
      %v5400 = vadd.f32 %v5102, %v5316
      %v5401 = vadd.f32 %v5103, %v5319
      %v5402 = vadd.f32 %v5104, %v5324
      %v5403 = vadd.f32 %v5105, %v5327
      %v5404 = vadd.f32 %v5106, %v5332
      %v5405 = vadd.f32 %v5107, %v5335
      %v5406 = vadd.f32 %v5108, %v5340
      %v5407 = vadd.f32 %v5109, %v5343
      %v5408 = vadd.f32 %v5110, %v5348
      %v5409 = vadd.f32 %v5111, %v5351
      %v5410 = vadd.f32 %v5112, %v5356
      %v5411 = vadd.f32 %v5113, %v5359
      %v5412 = vadd.f32 %v5114, %v5364
      %v5413 = vadd.f32 %v5115, %v5367
      %v5414 = vadd.f32 %v5116, %v5372
      %v5415 = vadd.f32 %v5117, %v5375
      %v5416 = vadd.f32 %v5118, %v5380
      %v5417 = vadd.f32 %v5119, %v5383
      %v5418 = vld [vmem:[%s4821 + $0x2] sm:$0xff]
      %v5419 = vld [vmem:[%s4821 + $0xa] sm:$0xff]
      %v5420 = vld [vmem:[%s4821 + $0x1a] sm:$0xff]
      %v5421 = vld [vmem:[%s4821 + $0x22] sm:$0xff]
      %v5422 = vld [vmem:[%s4821 + $0x32] sm:$0xff]
      %v5423 = vld [vmem:[%s4821 + $0x3a] sm:$0xff]
      %v5424 = vld [vmem:[%s4821 + $0x4a] sm:$0xff]
      %v5425 = vld [vmem:[%s4821 + $0x52] sm:$0xff]
      %v5426 = vld [vmem:[%s4821 + $0x62] sm:$0xff]
      %v5427 = vld [vmem:[%s4821 + $0x6a] sm:$0xff]
      %v5428 = vld [vmem:[%s4821 + $0x7a] sm:$0xff]
      %v5429 = vld [vmem:[%s4821 + $0x82] sm:$0xff]
      %v5430 = vld [vmem:[%s4821 + $0x92] sm:$0xff]
      %v5431 = vld [vmem:[%s4821 + $0x9a] sm:$0xff]
      %v5432 = vld [vmem:[%s4821 + $0xaa] sm:$0xff]
      %v5433 = vld [vmem:[%s4821 + $0xb2] sm:$0xff]
      %v5434 = vld [vmem:[%s4821 + $0xc2] sm:$0xff]
      %v5435 = vld [vmem:[%s4821 + $0xca] sm:$0xff]
      %v5436 = vld [vmem:[%s4821 + $0xda] sm:$0xff]
      %v5437 = vld [vmem:[%s4821 + $0xe2] sm:$0xff]
      %v5438 = vld [vmem:[%s4821 + $0xf2] sm:$0xff]
      %v5439 = vld [vmem:[%s4821 + $0xfa] sm:$0xff]
      %v5440 = vld [vmem:[%s4821 + $0x10a] sm:$0xff]
      %v5441 = vld [vmem:[%s4821 + $0x112] sm:$0xff]
      %v5442 = vld [vmem:[%s4821 + $0x122] sm:$0xff]
      %v5443 = vld [vmem:[%s4821 + $0x12a] sm:$0xff]
      %v5444 = vld [vmem:[%s4821 + $0x13a] sm:$0xff]
      %v5445 = vld [vmem:[%s4821 + $0x142] sm:$0xff]
      %v5446 = vld [vmem:[%s4821 + $0x152] sm:$0xff]
      %v5447 = vld [vmem:[%s4821 + $0x15a] sm:$0xff]
      %v5448 = vld [vmem:[%s4821 + $0x16a] sm:$0xff]
      %v5449 = vld [vmem:[%s4821 + $0x172] sm:$0xff]
      %v5450 = vpack.c.bf16 %v5419, %v5418
      %v5451 = vpack.c.bf16 %v5421, %v5420
      %v5452 = vpack.c.bf16 %v5423, %v5422
      %v5453 = vpack.c.bf16 %v5425, %v5424
      %v5454 = vpack.c.bf16 %v5427, %v5426
      %v5455 = vpack.c.bf16 %v5429, %v5428
      %v5456 = vpack.c.bf16 %v5431, %v5430
      %v5457 = vpack.c.bf16 %v5433, %v5432
      %v5458 = vpack.c.bf16 %v5435, %v5434
      %v5459 = vpack.c.bf16 %v5437, %v5436
      %v5460 = vpack.c.bf16 %v5439, %v5438
      %v5461 = vpack.c.bf16 %v5441, %v5440
      %v5462 = vpack.c.bf16 %v5443, %v5442
      %v5463 = vpack.c.bf16 %v5445, %v5444
      %v5464 = vpack.c.bf16 %v5447, %v5446
      %v5465 = vpack.c.bf16 %v5449, %v5448
      %s5466 = scalar_lea.vmem %s4, 64
      %v5467 = vld [vmem:[%s5466] sm:$0xf]
      %v5468 = vld [vmem:[%s5466 + $0x4] sm:$0xf]
      %v5471 = vunpack.c.l.b16 %v5467
      %v5472 = vunpack.c.l.b16 %v5468
      %v5473 = vpack.c.b16 %v5472, %v5471
      %v5476 = vsel %vm387, %v5450, 0
      %v5479 = vsel %vm387, %v5451, 0
      %v5482 = vsel %vm387, %v5452, 0
      %v5485 = vsel %vm387, %v5453, 0
      %v5488 = vsel %vm387, %v5454, 0
      %v5491 = vsel %vm387, %v5455, 0
      %v5494 = vsel %vm387, %v5456, 0
      %v5497 = vsel %vm387, %v5457, 0
      %v5500 = vsel %vm387, %v5458, 0
      %v5503 = vsel %vm387, %v5459, 0
      %v5506 = vsel %vm387, %v5460, 0
      %v5509 = vsel %vm387, %v5461, 0
      %v5512 = vsel %vm387, %v5462, 0
      %v5515 = vsel %vm387, %v5463, 0
      %v5518 = vsel %vm387, %v5464, 0
      %v5521 = vsel %vm387, %v5465, 0
      %5523 = vmatprep.subr.bf16.mxu0 0
      %5524 = vmatpush1.bf16.msra.mxu0 %v5473
      %5525 = vmatprep.subr.bf16.mxu0 0
      %5526 = vmatpush1.bf16.msra.mxu0 0
      %5527 = vmatprep.subr.bf16.mxu0 0
      %5528 = vmatpush1.bf16.msra.mxu0 0
      %5529 = vmatprep.subr.bf16.mxu0 0
      %5530 = vmatpush1.bf16.msra.mxu0 0
      %5531 = vmatprep.subr.bf16.mxu0 0
      %5532 = vmatpush1.bf16.msra.mxu0 0
      %5533 = vmatprep.subr.bf16.mxu0 0
      %5534 = vmatpush1.bf16.msra.mxu0 0
      %5535 = vmatprep.subr.bf16.mxu0 0
      %5536 = vmatpush1.bf16.msra.mxu0 0
      %5537 = vmatprep.subr.bf16.mxu0 0
      %5538 = vmatpush1.bf16.msra.mxu0 0
      %5539 = vmatprep.subr.bf16.mxu0 0
      %5540 = vmatpush1.bf16.msra.mxu0 0
      %5541 = vmatprep.subr.bf16.mxu0 0
      %5542 = vmatpush1.bf16.msra.mxu0 0
      %5543 = vmatprep.subr.bf16.mxu0 0
      %5544 = vmatpush1.bf16.msra.mxu0 0
      %5545 = vmatprep.subr.bf16.mxu0 0
      %5546 = vmatpush1.bf16.msra.mxu0 0
      %5547 = vmatprep.subr.bf16.mxu0 0
      %5548 = vmatpush1.bf16.msra.mxu0 0
      %5549 = vmatprep.subr.bf16.mxu0 0
      %5550 = vmatpush1.bf16.msra.mxu0 0
      %5551 = vmatprep.subr.bf16.mxu0 0
      %5552 = vmatpush1.bf16.msra.mxu0 0
      %5553 = vmatprep.subr.bf16.mxu0 0
      %5554 = vmatpush1.bf16.msra.mxu0 0
      %5555 = vmatprep.mubr.bf16.mxu0 0
      %5556 = vmatmul.mubr.bf16.gmra.mrb[0].mxu0 %v5476
      %v5557 = vpop.f32.mrb[0].mxu0
      %v5558 = vadd.f32 0.0, %v5557
      %v5559 = vpop.f32.mrb[0].mxu0
      %v5560 = vpop.f32.mrb[0].mxu0
      %v5561 = vadd.f32 0.0, %v5560
      %v5562 = vpop.f32.mrb[0].mxu0
      %5563 = vmatprep.mubr.bf16.mxu0 0
      %5564 = vmatmul.mubr.bf16.gmra.mrb[0].mxu0 %v5479
      %v5565 = vpop.f32.mrb[0].mxu0
      %v5566 = vadd.f32 0.0, %v5565
      %v5567 = vpop.f32.mrb[0].mxu0
      %v5568 = vpop.f32.mrb[0].mxu0
      %v5569 = vadd.f32 0.0, %v5568
      %v5570 = vpop.f32.mrb[0].mxu0
      %5571 = vmatprep.mubr.bf16.mxu0 0
      %5572 = vmatmul.mubr.bf16.gmra.mrb[0].mxu0 %v5482
      %v5573 = vpop.f32.mrb[0].mxu0
      %v5574 = vadd.f32 0.0, %v5573
      %v5575 = vpop.f32.mrb[0].mxu0
      %v5576 = vpop.f32.mrb[0].mxu0
      %v5577 = vadd.f32 0.0, %v5576
      %v5578 = vpop.f32.mrb[0].mxu0
      %5579 = vmatprep.mubr.bf16.mxu0 0
      %5580 = vmatmul.mubr.bf16.gmra.mrb[0].mxu0 %v5485
      %v5581 = vpop.f32.mrb[0].mxu0
      %v5582 = vadd.f32 0.0, %v5581
      %v5583 = vpop.f32.mrb[0].mxu0
      %v5584 = vpop.f32.mrb[0].mxu0
      %v5585 = vadd.f32 0.0, %v5584
      %v5586 = vpop.f32.mrb[0].mxu0
      %5587 = vmatprep.mubr.bf16.mxu0 0
      %5588 = vmatmul.mubr.bf16.gmra.mrb[0].mxu0 %v5488
      %v5589 = vpop.f32.mrb[0].mxu0
      %v5590 = vadd.f32 0.0, %v5589
      %v5591 = vpop.f32.mrb[0].mxu0
      %v5592 = vpop.f32.mrb[0].mxu0
      %v5593 = vadd.f32 0.0, %v5592
      %v5594 = vpop.f32.mrb[0].mxu0
      %5595 = vmatprep.mubr.bf16.mxu0 0
      %5596 = vmatmul.mubr.bf16.gmra.mrb[0].mxu0 %v5491
      %v5597 = vpop.f32.mrb[0].mxu0
      %v5598 = vadd.f32 0.0, %v5597
      %v5599 = vpop.f32.mrb[0].mxu0
      %v5600 = vpop.f32.mrb[0].mxu0
      %v5601 = vadd.f32 0.0, %v5600
      %v5602 = vpop.f32.mrb[0].mxu0
      %5603 = vmatprep.mubr.bf16.mxu0 0
      %5604 = vmatmul.mubr.bf16.gmra.mrb[0].mxu0 %v5494
      %v5605 = vpop.f32.mrb[0].mxu0
      %v5606 = vadd.f32 0.0, %v5605
      %v5607 = vpop.f32.mrb[0].mxu0
      %v5608 = vpop.f32.mrb[0].mxu0
      %v5609 = vadd.f32 0.0, %v5608
      %v5610 = vpop.f32.mrb[0].mxu0
      %5611 = vmatprep.mubr.bf16.mxu0 0
      %5612 = vmatmul.mubr.bf16.gmra.mrb[0].mxu0 %v5497
      %v5613 = vpop.f32.mrb[0].mxu0
      %v5614 = vadd.f32 0.0, %v5613
      %v5615 = vpop.f32.mrb[0].mxu0
      %v5616 = vpop.f32.mrb[0].mxu0
      %v5617 = vadd.f32 0.0, %v5616
      %v5618 = vpop.f32.mrb[0].mxu0
      %5619 = vmatprep.mubr.bf16.mxu0 0
      %5620 = vmatmul.mubr.bf16.gmra.mrb[0].mxu0 %v5500
      %v5621 = vpop.f32.mrb[0].mxu0
      %v5622 = vadd.f32 0.0, %v5621
      %v5623 = vpop.f32.mrb[0].mxu0
      %v5624 = vpop.f32.mrb[0].mxu0
      %v5625 = vadd.f32 0.0, %v5624
      %v5626 = vpop.f32.mrb[0].mxu0
      %5627 = vmatprep.mubr.bf16.mxu0 0
      %5628 = vmatmul.mubr.bf16.gmra.mrb[0].mxu0 %v5503
      %v5629 = vpop.f32.mrb[0].mxu0
      %v5630 = vadd.f32 0.0, %v5629
      %v5631 = vpop.f32.mrb[0].mxu0
      %v5632 = vpop.f32.mrb[0].mxu0
      %v5633 = vadd.f32 0.0, %v5632
      %v5634 = vpop.f32.mrb[0].mxu0
      %5635 = vmatprep.mubr.bf16.mxu0 0
      %5636 = vmatmul.mubr.bf16.gmra.mrb[0].mxu0 %v5506
      %v5637 = vpop.f32.mrb[0].mxu0
      %v5638 = vadd.f32 0.0, %v5637
      %v5639 = vpop.f32.mrb[0].mxu0
      %v5640 = vpop.f32.mrb[0].mxu0
      %v5641 = vadd.f32 0.0, %v5640
      %v5642 = vpop.f32.mrb[0].mxu0
      %5643 = vmatprep.mubr.bf16.mxu0 0
      %5644 = vmatmul.mubr.bf16.gmra.mrb[0].mxu0 %v5509
      %v5645 = vpop.f32.mrb[0].mxu0
      %v5646 = vadd.f32 0.0, %v5645
      %v5647 = vpop.f32.mrb[0].mxu0
      %v5648 = vpop.f32.mrb[0].mxu0
      %v5649 = vadd.f32 0.0, %v5648
      %v5650 = vpop.f32.mrb[0].mxu0
      %5651 = vmatprep.mubr.bf16.mxu0 0
      %5652 = vmatmul.mubr.bf16.gmra.mrb[0].mxu0 %v5512
      %v5653 = vpop.f32.mrb[0].mxu0
      %v5654 = vadd.f32 0.0, %v5653
      %v5655 = vpop.f32.mrb[0].mxu0
      %v5656 = vpop.f32.mrb[0].mxu0
      %v5657 = vadd.f32 0.0, %v5656
      %v5658 = vpop.f32.mrb[0].mxu0
      %5659 = vmatprep.mubr.bf16.mxu0 0
      %5660 = vmatmul.mubr.bf16.gmra.mrb[0].mxu0 %v5515
      %v5661 = vpop.f32.mrb[0].mxu0
      %v5662 = vadd.f32 0.0, %v5661
      %v5663 = vpop.f32.mrb[0].mxu0
      %v5664 = vpop.f32.mrb[0].mxu0
      %v5665 = vadd.f32 0.0, %v5664
      %v5666 = vpop.f32.mrb[0].mxu0
      %5667 = vmatprep.mubr.bf16.mxu0 0
      %5668 = vmatmul.mubr.bf16.gmra.mrb[0].mxu0 %v5518
      %v5669 = vpop.f32.mrb[0].mxu0
      %v5670 = vadd.f32 0.0, %v5669
      %v5671 = vpop.f32.mrb[0].mxu0
      %v5672 = vpop.f32.mrb[0].mxu0
      %v5673 = vadd.f32 0.0, %v5672
      %v5674 = vpop.f32.mrb[0].mxu0
      %5675 = vmatprep.mubr.bf16.mxu0 0
      %5676 = vmatmul.mubr.bf16.gmra.mrb[0].mxu0 %v5521
      %v5677 = vpop.f32.mrb[0].mxu0
      %v5678 = vadd.f32 0.0, %v5677
      %v5679 = vpop.f32.mrb[0].mxu0
      %v5680 = vpop.f32.mrb[0].mxu0
      %v5681 = vadd.f32 0.0, %v5680
      %v5682 = vpop.f32.mrb[0].mxu0
      %5683 = vdwg.mxu0
      %v5684 = vadd.f32 %v5386, %v5558
      %v5685 = vadd.f32 %v5387, %v5561
      %v5686 = vadd.f32 %v5388, %v5566
      %v5687 = vadd.f32 %v5389, %v5569
      %v5688 = vadd.f32 %v5390, %v5574
      %v5689 = vadd.f32 %v5391, %v5577
      %v5690 = vadd.f32 %v5392, %v5582
      %v5691 = vadd.f32 %v5393, %v5585
      %v5692 = vadd.f32 %v5394, %v5590
      %v5693 = vadd.f32 %v5395, %v5593
      %v5694 = vadd.f32 %v5396, %v5598
      %v5695 = vadd.f32 %v5397, %v5601
      %v5696 = vadd.f32 %v5398, %v5606
      %v5697 = vadd.f32 %v5399, %v5609
      %v5698 = vadd.f32 %v5400, %v5614
      %v5699 = vadd.f32 %v5401, %v5617
      %v5700 = vadd.f32 %v5402, %v5622
      %v5701 = vadd.f32 %v5403, %v5625
      %v5702 = vadd.f32 %v5404, %v5630
      %v5703 = vadd.f32 %v5405, %v5633
      %v5704 = vadd.f32 %v5406, %v5638
      %v5705 = vadd.f32 %v5407, %v5641
      %v5706 = vadd.f32 %v5408, %v5646
      %v5707 = vadd.f32 %v5409, %v5649
      %v5708 = vadd.f32 %v5410, %v5654
      %v5709 = vadd.f32 %v5411, %v5657
      %v5710 = vadd.f32 %v5412, %v5662
      %v5711 = vadd.f32 %v5413, %v5665
      %v5712 = vadd.f32 %v5414, %v5670
      %v5713 = vadd.f32 %v5415, %v5673
      %v5714 = vadd.f32 %v5416, %v5678
      %v5715 = vadd.f32 %v5417, %v5681
      %v5716 = vld [vmem:[%s1110 + $0x1] sm:$0xff]
      %v5717 = vld [vmem:[%s1110 + $0x9] sm:$0xff]
      %v5718 = vld [vmem:[%s1110 + $0x19] sm:$0xff]
      %v5719 = vld [vmem:[%s1110 + $0x21] sm:$0xff]
      %v5720 = vld [vmem:[%s1110 + $0x31] sm:$0xff]
      %v5721 = vld [vmem:[%s1110 + $0x39] sm:$0xff]
      %v5722 = vld [vmem:[%s1110 + $0x49] sm:$0xff]
      %v5723 = vld [vmem:[%s1110 + $0x51] sm:$0xff]
      %v5724 = vld [vmem:[%s1110 + $0x61] sm:$0xff]
      %v5725 = vld [vmem:[%s1110 + $0x69] sm:$0xff]
      %v5726 = vld [vmem:[%s1110 + $0x79] sm:$0xff]
      %v5727 = vld [vmem:[%s1110 + $0x81] sm:$0xff]
      %v5728 = vld [vmem:[%s1110 + $0x91] sm:$0xff]
      %v5729 = vld [vmem:[%s1110 + $0x99] sm:$0xff]
      %v5730 = vld [vmem:[%s1110 + $0xa9] sm:$0xff]
      %v5731 = vld [vmem:[%s1110 + $0xb1] sm:$0xff]
      %v5732 = vld [vmem:[%s1110 + $0xc1] sm:$0xff]
      %v5733 = vld [vmem:[%s1110 + $0xc9] sm:$0xff]
      %v5734 = vld [vmem:[%s1110 + $0xd9] sm:$0xff]
      %v5735 = vld [vmem:[%s1110 + $0xe1] sm:$0xff]
      %v5736 = vld [vmem:[%s1110 + $0xf1] sm:$0xff]
      %v5737 = vld [vmem:[%s1110 + $0xf9] sm:$0xff]
      %v5738 = vld [vmem:[%s1110 + $0x109] sm:$0xff]
      %v5739 = vld [vmem:[%s1110 + $0x111] sm:$0xff]
      %v5740 = vld [vmem:[%s1110 + $0x121] sm:$0xff]
      %v5741 = vld [vmem:[%s1110 + $0x129] sm:$0xff]
      %v5742 = vld [vmem:[%s1110 + $0x139] sm:$0xff]
      %v5743 = vld [vmem:[%s1110 + $0x141] sm:$0xff]
      %v5744 = vld [vmem:[%s1110 + $0x151] sm:$0xff]
      %v5745 = vld [vmem:[%s1110 + $0x159] sm:$0xff]
      %v5746 = vld [vmem:[%s1110 + $0x169] sm:$0xff]
      %v5747 = vld [vmem:[%s1110 + $0x171] sm:$0xff]
      %v5748 = vld [vmem:[%s5] sm:$0x1]
      %v5750 = vlaneseq
      %v5751 = vshrl.u32 %v5750, 7
      %v5752 = vsub.s32 0, %v5751
      %v5753 = vrot.slane %v5748, %v5752
      %v5755 = vmul.f32 %v5684, %v5753
      %v5756 = vmul.f32 %v5685, %v5753
      %v5757 = vmul.f32 %v5686, %v5753
      %v5758 = vmul.f32 %v5687, %v5753
      %v5759 = vmul.f32 %v5688, %v5753
      %v5760 = vmul.f32 %v5689, %v5753
      %v5761 = vmul.f32 %v5690, %v5753
      %v5762 = vmul.f32 %v5691, %v5753
      %v5763 = vmul.f32 %v5692, %v5753
      %v5764 = vmul.f32 %v5693, %v5753
      %v5765 = vmul.f32 %v5694, %v5753
      %v5766 = vmul.f32 %v5695, %v5753
      %v5767 = vmul.f32 %v5696, %v5753
      %v5768 = vmul.f32 %v5697, %v5753
      %v5769 = vmul.f32 %v5698, %v5753
      %v5770 = vmul.f32 %v5699, %v5753
      %v5771 = vmul.f32 %v5700, %v5753
      %v5772 = vmul.f32 %v5701, %v5753
      %v5773 = vmul.f32 %v5702, %v5753
      %v5774 = vmul.f32 %v5703, %v5753
      %v5775 = vmul.f32 %v5704, %v5753
      %v5776 = vmul.f32 %v5705, %v5753
      %v5777 = vmul.f32 %v5706, %v5753
      %v5778 = vmul.f32 %v5707, %v5753
      %v5779 = vmul.f32 %v5708, %v5753
      %v5780 = vmul.f32 %v5709, %v5753
      %v5781 = vmul.f32 %v5710, %v5753
      %v5782 = vmul.f32 %v5711, %v5753
      %v5783 = vmul.f32 %v5712, %v5753
      %v5784 = vmul.f32 %v5713, %v5753
      %v5785 = vmul.f32 %v5714, %v5753
      %v5786 = vmul.f32 %v5715, %v5753
      %v5787 = vld [vmem:[%s6] sm:$0x1]
      %v5789 = vlaneseq
      %v5790 = vshrl.u32 %v5789, 7
      %v5791 = vsub.s32 0, %v5790
      %v5792 = vrot.slane %v5787, %v5791
      %v5794 = vadd.f32 %v5755, %v5792
      %v5795 = vadd.f32 %v5756, %v5792
      %v5796 = vadd.f32 %v5757, %v5792
      %v5797 = vadd.f32 %v5758, %v5792
      %v5798 = vadd.f32 %v5759, %v5792
      %v5799 = vadd.f32 %v5760, %v5792
      %v5800 = vadd.f32 %v5761, %v5792
      %v5801 = vadd.f32 %v5762, %v5792
      %v5802 = vadd.f32 %v5763, %v5792
      %v5803 = vadd.f32 %v5764, %v5792
      %v5804 = vadd.f32 %v5765, %v5792
      %v5805 = vadd.f32 %v5766, %v5792
      %v5806 = vadd.f32 %v5767, %v5792
      %v5807 = vadd.f32 %v5768, %v5792
      %v5808 = vadd.f32 %v5769, %v5792
      %v5809 = vadd.f32 %v5770, %v5792
      %v5810 = vadd.f32 %v5771, %v5792
      %v5811 = vadd.f32 %v5772, %v5792
      %v5812 = vadd.f32 %v5773, %v5792
      %v5813 = vadd.f32 %v5774, %v5792
      %v5814 = vadd.f32 %v5775, %v5792
      %v5815 = vadd.f32 %v5776, %v5792
      %v5816 = vadd.f32 %v5777, %v5792
      %v5817 = vadd.f32 %v5778, %v5792
      %v5818 = vadd.f32 %v5779, %v5792
      %v5819 = vadd.f32 %v5780, %v5792
      %v5820 = vadd.f32 %v5781, %v5792
      %v5821 = vadd.f32 %v5782, %v5792
      %v5822 = vadd.f32 %v5783, %v5792
      %v5823 = vadd.f32 %v5784, %v5792
      %v5824 = vadd.f32 %v5785, %v5792
      %v5825 = vadd.f32 %v5786, %v5792
      %v5826 = vadd.f32 %v5794, %v5716
      %v5827 = vadd.f32 %v5795, %v5717
      %v5828 = vadd.f32 %v5796, %v5718
      %v5829 = vadd.f32 %v5797, %v5719
      %v5830 = vadd.f32 %v5798, %v5720
      %v5831 = vadd.f32 %v5799, %v5721
      %v5832 = vadd.f32 %v5800, %v5722
      %v5833 = vadd.f32 %v5801, %v5723
      %v5834 = vadd.f32 %v5802, %v5724
      %v5835 = vadd.f32 %v5803, %v5725
      %v5836 = vadd.f32 %v5804, %v5726
      %v5837 = vadd.f32 %v5805, %v5727
      %v5838 = vadd.f32 %v5806, %v5728
      %v5839 = vadd.f32 %v5807, %v5729
      %v5840 = vadd.f32 %v5808, %v5730
      %v5841 = vadd.f32 %v5809, %v5731
      %v5842 = vadd.f32 %v5810, %v5732
      %v5843 = vadd.f32 %v5811, %v5733
      %v5844 = vadd.f32 %v5812, %v5734
      %v5845 = vadd.f32 %v5813, %v5735
      %v5846 = vadd.f32 %v5814, %v5736
      %v5847 = vadd.f32 %v5815, %v5737
      %v5848 = vadd.f32 %v5816, %v5738
      %v5849 = vadd.f32 %v5817, %v5739
      %v5850 = vadd.f32 %v5818, %v5740
      %v5851 = vadd.f32 %v5819, %v5741
      %v5852 = vadd.f32 %v5820, %v5742
      %v5853 = vadd.f32 %v5821, %v5743
      %v5854 = vadd.f32 %v5822, %v5744
      %v5855 = vadd.f32 %v5823, %v5745
      %v5856 = vadd.f32 %v5824, %v5746
      %v5857 = vadd.f32 %v5825, %v5747
      %v5858 = vmax.f32 %v5826, 0.0
      %v5859 = vmax.f32 %v5827, 0.0
      %v5860 = vmax.f32 %v5828, 0.0
      %v5861 = vmax.f32 %v5829, 0.0
      %v5862 = vmax.f32 %v5830, 0.0
      %v5863 = vmax.f32 %v5831, 0.0
      %v5864 = vmax.f32 %v5832, 0.0
      %v5865 = vmax.f32 %v5833, 0.0
      %v5866 = vmax.f32 %v5834, 0.0
      %v5867 = vmax.f32 %v5835, 0.0
      %v5868 = vmax.f32 %v5836, 0.0
      %v5869 = vmax.f32 %v5837, 0.0
      %v5870 = vmax.f32 %v5838, 0.0
      %v5871 = vmax.f32 %v5839, 0.0
      %v5872 = vmax.f32 %v5840, 0.0
      %v5873 = vmax.f32 %v5841, 0.0
      %v5874 = vmax.f32 %v5842, 0.0
      %v5875 = vmax.f32 %v5843, 0.0
      %v5876 = vmax.f32 %v5844, 0.0
      %v5877 = vmax.f32 %v5845, 0.0
      %v5878 = vmax.f32 %v5846, 0.0
      %v5879 = vmax.f32 %v5847, 0.0
      %v5880 = vmax.f32 %v5848, 0.0
      %v5881 = vmax.f32 %v5849, 0.0
      %v5882 = vmax.f32 %v5850, 0.0
      %v5883 = vmax.f32 %v5851, 0.0
      %v5884 = vmax.f32 %v5852, 0.0
      %v5885 = vmax.f32 %v5853, 0.0
      %v5886 = vmax.f32 %v5854, 0.0
      %v5887 = vmax.f32 %v5855, 0.0
      %v5888 = vmax.f32 %v5856, 0.0
      %v5889 = vmax.f32 %v5857, 0.0
      %5890 = vst.msk [vmem:[%s278] sm:$0xff] %vm387, %v5858
      %5891 = vst.msk [vmem:[%s278 + $0x8] sm:$0xff] %vm387, %v5859
      %5892 = vst.msk [vmem:[%s278 + $0x10] sm:$0xff] %vm387, %v5860
      %5893 = vst.msk [vmem:[%s278 + $0x18] sm:$0xff] %vm387, %v5861
      %5894 = vst.msk [vmem:[%s278 + $0x20] sm:$0xff] %vm387, %v5862
      %5895 = vst.msk [vmem:[%s278 + $0x28] sm:$0xff] %vm387, %v5863
      %5896 = vst.msk [vmem:[%s278 + $0x30] sm:$0xff] %vm387, %v5864
      %5897 = vst.msk [vmem:[%s278 + $0x38] sm:$0xff] %vm387, %v5865
      %5898 = vst.msk [vmem:[%s278 + $0x40] sm:$0xff] %vm387, %v5866
      %5899 = vst.msk [vmem:[%s278 + $0x48] sm:$0xff] %vm387, %v5867
      %5900 = vst.msk [vmem:[%s278 + $0x50] sm:$0xff] %vm387, %v5868
      %5901 = vst.msk [vmem:[%s278 + $0x58] sm:$0xff] %vm387, %v5869
      %5902 = vst.msk [vmem:[%s278 + $0x60] sm:$0xff] %vm387, %v5870
      %5903 = vst.msk [vmem:[%s278 + $0x68] sm:$0xff] %vm387, %v5871
      %5904 = vst.msk [vmem:[%s278 + $0x70] sm:$0xff] %vm387, %v5872
      %5905 = vst.msk [vmem:[%s278 + $0x78] sm:$0xff] %vm387, %v5873
      %5906 = vst.msk [vmem:[%s278 + $0x80] sm:$0xff] %vm387, %v5874
      %5907 = vst.msk [vmem:[%s278 + $0x88] sm:$0xff] %vm387, %v5875
      %5908 = vst.msk [vmem:[%s278 + $0x90] sm:$0xff] %vm387, %v5876
      %5909 = vst.msk [vmem:[%s278 + $0x98] sm:$0xff] %vm387, %v5877
      %5910 = vst.msk [vmem:[%s278 + $0xa0] sm:$0xff] %vm387, %v5878
      %5911 = vst.msk [vmem:[%s278 + $0xa8] sm:$0xff] %vm387, %v5879
      %5912 = vst.msk [vmem:[%s278 + $0xb0] sm:$0xff] %vm387, %v5880
      %5913 = vst.msk [vmem:[%s278 + $0xb8] sm:$0xff] %vm387, %v5881
      %5914 = vst.msk [vmem:[%s278 + $0xc0] sm:$0xff] %vm387, %v5882
      %5915 = vst.msk [vmem:[%s278 + $0xc8] sm:$0xff] %vm387, %v5883
      %5916 = vst.msk [vmem:[%s278 + $0xd0] sm:$0xff] %vm387, %v5884
      %5917 = vst.msk [vmem:[%s278 + $0xd8] sm:$0xff] %vm387, %v5885
      %5918 = vst.msk [vmem:[%s278 + $0xe0] sm:$0xff] %vm387, %v5886
      %5919 = vst.msk [vmem:[%s278 + $0xe8] sm:$0xff] %vm387, %v5887
      %5920 = vst.msk [vmem:[%s278 + $0xf0] sm:$0xff] %vm387, %v5888
      %5921 = vst.msk [vmem:[%s278 + $0xf8] sm:$0xff] %vm387, %v5889
      %p5922 = scmp.lt.s32.totalorder %s18, 1
      %s5923 = scalar_select %p5922, %s18, 1
      %s5924 = smul.addr %s5923, 32
      %s5925 = smul.addr %s5924, 8
      %s5926 = scalar_lea.vmem %s7, %s5925
      // Predicated region
      $region49: #{basic_block_forward.1} parent=47 // pred_check
        %p5927 = pneg %p188
      $region50: #{basic_block_forward.1} parent=47 // pred_check_branch
        %5929 = sbr.rel (%p5927) target = $region52
      $region51: #{basic_block_forward.1} parent=47 // pred_region
        _
      $region52: #{basic_block_forward.1} parent=47 // pred_fallthru
        _
    $region48: #{basic_block_forward.1} parent=5 // pred_fallthru
      _
    %p5930 = scmp.le.s32.totalorder 2, %s13
    // Predicated region
    $region53: #{basic_block_forward.1} parent=5 // pred_check
      %p5931 = pneg %p5930
    $region54: #{basic_block_forward.1} parent=5 // pred_check_branch
      %5933 = sbr.rel (%p5931) target = $region56
    $region55: #{basic_block_forward.1} parent=5 // pred_region
      %s5934 = ssub.s32 %s13, 2
      // Predicated region
      $region57: #{basic_block_forward.1} parent=55 // pred_check
        %p5935 = pneg %p194
      $region58: #{basic_block_forward.1} parent=55 // pred_check_branch
        %5937 = sbr.rel (%p5935) target = $region60
      $region59: #{basic_block_forward.1} parent=55 // pred_region
        %p5938 = scmp.lt.s32.totalorder %s19, 1
        %s5939 = scalar_select %p5938, %s19, 1
        %s5940 = smul.addr %s5939, 32
        %s5941 = smul.addr %s5940, 8
        %s5942 = scalar_lea.vmem %s7, %s5941
      $region60: #{basic_block_forward.1} parent=55 // pred_fallthru
        _
    $region56: #{basic_block_forward.1} parent=5 // pred_fallthru
      _
  $region6: #{basic_block_forward.1} parent=0 // loop_footer
    %s17 = sadd.s32 1, %s13
  $region7: #{basic_block_forward.1} parent=0 // loop_footer_branch
    %12 = sbr.rel target = $region3
  $region8: #{basic_block_forward.1} parent=0 // loop_exit
    _

</llo_original>
